<compile_context>
chip_gen: v7x
topology: tpu7x:2x2x1
jax: 0.10.0
libtpu: 0.0.40
codegen_flags: <defaults>
</compile_context>

<pallas_src>
import jax
import jax.numpy as jnp
from jax.experimental import pallas as pl
from jax.experimental.pallas import tpu as pltpu


def _forces_kernel(r_ref, w_ref, wrep_ref, a_ref, pool_ref, e_ref, f_ref):
    """One grid step processes a block of Bt molecules (Bt*N atom columns).

    r_ref    : [KP, Bt*N]   rows 0..D-1 = positions^T, row D = 1.0, rest 0
    w_ref    : [H, KP]      cols 0..D-1 = W^T, col D = b, rest 0
    wrep_ref : [SD, H]      wrep[s*D+d, h] = -A[s,h] * W[d,h]  (negation folded)
    a_ref    : [S, H]       per-state readout weights
    pool_ref : [Bt*N, Bt]   one-hot atom -> molecule pooling matrix
    e_ref    : [S, Bt]      per-state energies of the block's molecules
    f_ref    : [SD, Bt*N]   forces, lane-dense (lane axis = atoms)
    """
    # z = W^T R + b : one MXU pass (K padded to 8, bias folded in).  [H, Bt*N]
    z = jnp.dot(w_ref[...], r_ref[...], preferred_element_type=jnp.float32)
    t = jnp.tanh(z)                 # EUP, fully lane-dense (lane axis = Bt*N)
    g = 1.0 - t * t                 # VPU

    # Forces for every atom/state/component in ONE matmul; output is lane-dense
    # so the stores are unmasked vst.  forces = -dE/dR (sign folded into wrep).
    f_ref[...] = jnp.dot(wrep_ref[...], g, preferred_element_type=jnp.float32)

    # Energies: per-atom contributions A @ t, pooled per molecule on the MXU
    # (avoids lane-splitting reshapes / tiny masked stores).
    at = jnp.dot(a_ref[...], t, preferred_element_type=jnp.float32)          # [S, Bt*N]
    e_ref[...] = jnp.dot(at, pool_ref[...], preferred_element_type=jnp.float32)  # [S, Bt]


def forces_forward(R, W, b, A, *, block_molecules=128):
    """R: [B, n_atoms, 3].  Returns (energy [B, n_states],
    forces [B, n_atoms, n_states, 3]) with forces = -dE/dR."""
    B, N, D = R.shape
    _, H = W.shape
    S = A.shape[0]
    SD = S * D
    KP = 8  # padded contraction depth for the position matmul (bias folded in)

    # ---- blocking: many molecules per grid step (amortizes per-step overhead) --
    if B <= block_molecules:
        Bt, nblk = B, 1
    else:
        Bt = max(128, (block_molecules // 128) * 128)  # 128-multiple => lane-dense blocks
        nblk = pl.cdiv(B, Bt)
    B_pad = Bt * nblk
    BtN = Bt * N

    Rp = R if B_pad == B else jnp.concatenate(
        [R, jnp.zeros((B_pad - B, N, D), R.dtype)], axis=0)

    # Positions transposed onto the lane axis + ones-row (bias fold) + zero pad.
    r_t = jnp.transpose(Rp, (2, 0, 1)).reshape(D, B_pad * N).astype(jnp.float32)
    r_aug = jnp.concatenate(
        [r_t,
         jnp.ones((1, B_pad * N), jnp.float32),
         jnp.zeros((KP - D - 1, B_pad * N), jnp.float32)], axis=0)       # [KP, B_pad*N]

    # Parameter-only precompute (shared across all grid steps).
    w_aug = jnp.concatenate(
        [W.T, b.reshape(1, H).T, jnp.zeros((H, KP - D - 1), jnp.float32)],
        axis=1).astype(jnp.float32)                                      # [H, KP]
    wrep = (-(A[:, None, :] * W[None, :, :])).reshape(SD, H).astype(jnp.float32)
    a_mat = A.astype(jnp.float32)                                        # [S, H]
    atom_mol = jnp.arange(BtN, dtype=jnp.int32) // N
    pool = (atom_mol[:, None] == jnp.arange(Bt, dtype=jnp.int32)[None, :]
            ).astype(jnp.float32)                                        # [BtN, Bt]

    cost = pl.CostEstimate(
        flops=nblk * (2 * H * KP * BtN + 5 * H * BtN
                      + 2 * SD * H * BtN + 2 * S * H * BtN + 2 * S * BtN * Bt),
        transcendentals=nblk * H * BtN,
        bytes_accessed=4 * (KP * B_pad * N + H * KP + SD * H + S * H
                            + BtN * Bt + S * B_pad + SD * B_pad * N),
    )

    energy_t, forces_t = pl.pallas_call(
        _forces_kernel,
        out_shape=(
            jax.ShapeDtypeStruct((S, B_pad), jnp.float32),
            jax.ShapeDtypeStruct((SD, B_pad * N), jnp.float32),
        ),
        grid=(nblk,),
        in_specs=[
            pl.BlockSpec((KP, BtN), lambda i: (0, i)),     # positions (per block)
            pl.BlockSpec((H, KP), lambda i: (0, 0)),       # W|b packed (shared)
            pl.BlockSpec((SD, H), lambda i: (0, 0)),       # -A*W packed (shared)
            pl.BlockSpec((S, H), lambda i: (0, 0)),        # A (shared)
            pl.BlockSpec((BtN, Bt), lambda i: (0, 0)),     # pooling matrix (shared)
        ],
        out_specs=(
            pl.BlockSpec((S, Bt), lambda i: (0, i)),       # energies (lane-dense block)
            pl.BlockSpec((SD, BtN), lambda i: (0, i)),     # forces (lane-dense)
        ),
        compiler_params=pltpu.CompilerParams(
            dimension_semantics=("parallel",),             # >=2 steps -> both v7x TCs
        ),
        cost_estimate=cost,
    )(r_aug, w_aug, wrep, a_mat, pool)

    energy = energy_t[:, :B].T                                             # [B, S]
    forces = forces_t[:, :B * N].reshape(S, D, B, N).transpose(2, 3, 0, 1)  # [B, N, S, D]
    return energy, forces


if __name__ == "__main__":
    # 256 molecules x 16 atoms: still tiny (48 KB of positions) but gives two
    # 128-molecule grid blocks so both v7x TensorCores get work.
    B, N, D, H, S = 256, 16, 3, 32, 3

    key = jax.random.PRNGKey(0)
    kR, kW, kb, kA = jax.random.split(key, 4)
    Rb = jax.random.normal(kR, (B, N, D), dtype=jnp.float32)
    W = 0.5 * jax.random.normal(kW, (D, H), dtype=jnp.float32)
    b = 0.1 * jax.random.normal(kb, (1, H), dtype=jnp.float32)
    A = 0.3 * jax.random.normal(kA, (S, H), dtype=jnp.float32)

    energy, forces = forces_forward(Rb, W, b, A)
    jax.block_until_ready((energy, forces))

    # Reference: autodiff of the same energy head (what torch.autograd does in
    # the original module).  Highest matmul precision so the reference itself
    # is not bf16-truncated on TPU.
    hp = jax.lax.Precision.HIGHEST

    def e_fn(r):
        t = jnp.tanh(jnp.dot(r, W, precision=hp) + b)
        return jnp.dot(jnp.sum(t, axis=0), A.T, precision=hp)       # [S]

    e_ref = jax.vmap(e_fn)(Rb)                                      # [B, S]
    jac = jax.vmap(jax.jacobian(e_fn))(Rb)                          # [B, S, N, D]
    forces_ref = -jnp.transpose(jac, (0, 2, 1, 3))                  # [B, N, S, D]

    assert energy.shape == (B, S)
    assert forces.shape == (B, N, S, D)
    # Tolerance leaves headroom for possible reduced-precision MXU passes.
    assert jnp.allclose(energy, e_ref, atol=5e-3, rtol=5e-3), float(
        jnp.max(jnp.abs(energy - e_ref)))
    assert jnp.allclose(forces, forces_ref, atol=5e-3, rtol=5e-3), float(
        jnp.max(jnp.abs(forces - forces_ref)))

    print("KERNEL_OK")
</pallas_src>

<mosaic_0001>
module attributes {stable_mosaic.version = 11 : i64} {
  func.func @_forces_kernel(%arg0: i32, %arg1: memref<8x2048xf32, #tpu.memory_space<vmem>>, %arg2: memref<32x8xf32, #tpu.memory_space<vmem>>, %arg3: memref<9x32xf32, #tpu.memory_space<vmem>>, %arg4: memref<3x32xf32, #tpu.memory_space<vmem>>, %arg5: memref<2048x128xf32, #tpu.memory_space<vmem>>, %arg6: memref<3x128xf32, #tpu.memory_space<vmem>>, %arg7: memref<9x2048xf32, #tpu.memory_space<vmem>>) attributes {dimension_semantics = [#tpu.dimension_semantics<parallel>], iteration_bounds = array<i64: 2>, scalar_prefetch = 0 : i64, scratch_operands = 0 : i64, tpu.core_type = #tpu.core_type<tc>, window_params = [{transform_indices = @transform_0, window_bounds = array<i64: 8, 2048>}, {pipeline_mode = #tpu.pipeline_mode<synchronous>, transform_indices = @transform_1, window_bounds = array<i64: 32, 8>}, {pipeline_mode = #tpu.pipeline_mode<synchronous>, transform_indices = @transform_2, window_bounds = array<i64: 9, 32>}, {pipeline_mode = #tpu.pipeline_mode<synchronous>, transform_indices = @transform_3, window_bounds = array<i64: 3, 32>}, {pipeline_mode = #tpu.pipeline_mode<synchronous>, transform_indices = @transform_4, window_bounds = array<i64: 2048, 128>}, {transform_indices = @transform_5, window_bounds = array<i64: 3, 128>}, {transform_indices = @transform_6, window_bounds = array<i64: 9, 2048>}]} {
    %c0 = arith.constant 0 : index
    %c0_0 = arith.constant 0 : index
    %0 = vector.load %arg2[%c0, %c0_0] : memref<32x8xf32, #tpu.memory_space<vmem>>, vector<32x8xf32>
    %c0_1 = arith.constant 0 : index
    %c0_2 = arith.constant 0 : index
    %1 = vector.load %arg1[%c0_1, %c0_2] : memref<8x2048xf32, #tpu.memory_space<vmem>>, vector<8x2048xf32>
    %cst = arith.constant dense<0.000000e+00> : vector<32x2048xf32>
    %2 = tpu.matmul %0, %1, %cst {dimension_numbers = #tpu.dot_dimension_numbers<[1], [0], [0], [1], [0, 0, 1, 1], [], []>} : vector<32x8xf32>, vector<8x2048xf32>, vector<32x2048xf32> -> vector<32x2048xf32>
    %3 = math.tanh %2 : vector<32x2048xf32>
    %4 = arith.mulf %3, %3 : vector<32x2048xf32>
    %cst_3 = arith.constant 1.000000e+00 : f32
    %5 = vector.broadcast %cst_3 : f32 to vector<32x2048xf32>
    %6 = arith.subf %5, %4 : vector<32x2048xf32>
    %c0_4 = arith.constant 0 : index
    %c0_5 = arith.constant 0 : index
    %7 = vector.load %arg3[%c0_4, %c0_5] : memref<9x32xf32, #tpu.memory_space<vmem>>, vector<9x32xf32>
    %cst_6 = arith.constant dense<0.000000e+00> : vector<9x2048xf32>
    %8 = tpu.matmul %7, %6, %cst_6 {dimension_numbers = #tpu.dot_dimension_numbers<[1], [0], [0], [1], [0, 0, 1, 1], [], []>} : vector<9x32xf32>, vector<32x2048xf32>, vector<9x2048xf32> -> vector<9x2048xf32>
    %c0_7 = arith.constant 0 : index
    %c0_8 = arith.constant 0 : index
    %9 = vector.load %arg7[%c0_7, %c0_8] : memref<9x2048xf32, #tpu.memory_space<vmem>>, vector<9x2048xf32>
    tpu.vector_store %arg7[%c0_7, %c0_8], %8 {strides = array<i32>} : memref<9x2048xf32, #tpu.memory_space<vmem>>, vector<9x2048xf32>,
    %c0_9 = arith.constant 0 : index
    %c0_10 = arith.constant 0 : index
    %10 = vector.load %arg4[%c0_9, %c0_10] : memref<3x32xf32, #tpu.memory_space<vmem>>, vector<3x32xf32>
    %cst_11 = arith.constant dense<0.000000e+00> : vector<3x2048xf32>
    %11 = tpu.matmul %10, %3, %cst_11 {dimension_numbers = #tpu.dot_dimension_numbers<[1], [0], [0], [1], [0, 0, 1, 1], [], []>} : vector<3x32xf32>, vector<32x2048xf32>, vector<3x2048xf32> -> vector<3x2048xf32>
    %c0_12 = arith.constant 0 : index
    %c0_13 = arith.constant 0 : index
    %12 = vector.load %arg5[%c0_12, %c0_13] : memref<2048x128xf32, #tpu.memory_space<vmem>>, vector<2048x128xf32>
    %cst_14 = arith.constant dense<0.000000e+00> : vector<3x128xf32>
    %13 = tpu.matmul %11, %12, %cst_14 {dimension_numbers = #tpu.dot_dimension_numbers<[1], [0], [0], [1], [0, 0, 1, 1], [], []>} : vector<3x2048xf32>, vector<2048x128xf32>, vector<3x128xf32> -> vector<3x128xf32>
    %c0_15 = arith.constant 0 : index
    %c0_16 = arith.constant 0 : index
    %14 = vector.load %arg6[%c0_15, %c0_16] : memref<3x128xf32, #tpu.memory_space<vmem>>, vector<3x128xf32>
    tpu.vector_store %arg6[%c0_15, %c0_16], %13 {strides = array<i32>} : memref<3x128xf32, #tpu.memory_space<vmem>>, vector<3x128xf32>,
    return
  }
  func.func @transform_0(%arg0: i32) -> (i32, i32) {
    %c0_i32 = arith.constant 0 : i32
    %c0_i32_0 = arith.constant 0 : i32
    return %c0_i32, %arg0 : i32, i32
  }
  func.func @transform_1(%arg0: i32) -> (i32, i32) {
    %c0_i32 = arith.constant 0 : i32
    %c0_i32_0 = arith.constant 0 : i32
    %c0_i32_1 = arith.constant 0 : i32
    return %c0_i32, %c0_i32_0 : i32, i32
  }
  func.func @transform_2(%arg0: i32) -> (i32, i32) {
    %c0_i32 = arith.constant 0 : i32
    %c0_i32_0 = arith.constant 0 : i32
    %c0_i32_1 = arith.constant 0 : i32
    return %c0_i32, %c0_i32_0 : i32, i32
  }
  func.func @transform_3(%arg0: i32) -> (i32, i32) {
    %c0_i32 = arith.constant 0 : i32
    %c0_i32_0 = arith.constant 0 : i32
    %c0_i32_1 = arith.constant 0 : i32
    return %c0_i32, %c0_i32_0 : i32, i32
  }
  func.func @transform_4(%arg0: i32) -> (i32, i32) {
    %c0_i32 = arith.constant 0 : i32
    %c0_i32_0 = arith.constant 0 : i32
    %c0_i32_1 = arith.constant 0 : i32
    return %c0_i32, %c0_i32_0 : i32, i32
  }
  func.func @transform_5(%arg0: i32) -> (i32, i32) {
    %c0_i32 = arith.constant 0 : i32
    %c0_i32_0 = arith.constant 0 : i32
    return %c0_i32, %arg0 : i32, i32
  }
  func.func @transform_6(%arg0: i32) -> (i32, i32) {
    %c0_i32 = arith.constant 0 : i32
    %c0_i32_0 = arith.constant 0 : i32
    return %c0_i32, %arg0 : i32, i32
  }
}

</mosaic_0001>

<llo_original>
// kernel: tpu_custom_call.1
$region0: #{tpu_custom_call.1}
  #allocation0 [shape = 'u32[]', space=smem, size = 0x4, offset = 0x4, fixed_abs, tag = 'smem constant byte address 0x4 - core index']
  #allocation1 [shape = 'u32[144,128]{1,0:T(1,128)}', space=vmem, size = 0x12000, scoped, tag = 'internal scratch']
  %s0 = inlined_call_operand.hbm [shape: f32[8,4096], index: 0, kind: input, shape index: {}]
  %s1 = inlined_call_operand.vmem [shape: f32[32,8], index: 1, kind: input, shape index: {}]
  %s2 = inlined_call_operand.vmem [shape: f32[9,32], index: 2, kind: input, shape index: {}]
  %s3 = inlined_call_operand.vmem [shape: f32[3,32], index: 3, kind: input, shape index: {}]
  %s4 = inlined_call_operand.hbm [shape: f32[2048,128], index: 4, kind: input, shape index: {}]
  %s5 = inlined_call_operand.hbm [shape: f32[3,256], index: 5, kind: output, shape index: {0}]
  %s6 = inlined_call_operand.hbm [shape: f32[9,4096], index: 6, kind: output, shape index: {1}]
  %7 = xla_tuple %s5, %s6
  %s8 = sld [smem:[#allocation0]]
  $region69: #{tpu_custom_call.1} parent=0
    _
  %s10 = ssub.s32 1, %s8
  %s11 = scalar_select 0, %s10, %s8
  $region1: #{tpu_custom_call.1} parent=0
    #allocation2 [shape = 'u8[131072]{0}', space=vmem, size = 0x20000, scoped, tag = 'input window, operand 0']
    #allocation3 [shape = 's32[2]{0}', space=sflag, size = 0x8, scoped, tag = 'scoped memory for tpu_custom_call.1']
    #allocation4 [shape = 's32[2]{0}', space=sflag, size = 0x8, scoped, tag = 'scoped memory for tpu_custom_call.1']
    #allocation5 [shape = 'u8[1048576]{0}', space=vmem, size = 0x100000, scoped, tag = 'input window, operand 4, single buffered']
    #allocation6 [shape = 's32[1]{0}', space=sflag, size = 0x4, scoped, tag = 'scoped memory for tpu_custom_call.1']
    #allocation7 [shape = 'u8[4096]{0}', space=vmem, size = 0x1000, scoped, tag = 'output window, operand 0']
    #allocation8 [shape = 'u8[262144]{0}', space=vmem, size = 0x40000, scoped, tag = 'output window, operand 1']
    #allocation9 [shape = 's32[2]{0}', space=sflag, size = 0x8, scoped, tag = 'scoped memory for tpu_custom_call.1']
    %12 = vsyncpa [#allocation3], 0
    %s13 = scalar_lea.sflag [#allocation3], 1
    %14 = vsyncpa %s13, 0
    %15 = vsyncpa [#allocation6], 0
    %16 = vsyncpa [#allocation4], 0
    %s17 = scalar_lea.sflag [#allocation4], 1
    %18 = vsyncpa %s17, 0
    %19 = vsyncpa [#allocation9], 0
    %s20 = scalar_lea.sflag [#allocation9], 1
    %21 = vsyncpa %s20, 0
    loop: start=0, step=1, limit=4
    $region2: #{tpu_custom_call.1} parent=1 // loop_pre_header
      _
    $region3: #{tpu_custom_call.1} parent=1 // loop_header
      %s23 = sphi 0, %s27
      %p24 = scmp.ge.s32.totalorder %s23, 4
      %s33 = sphi 0, %s35
      %s36 = sphi 0, %s33
      %s37 = sphi 0, %s36
      %s53 = sphi 0, %s37
      %s57 = sphi 0, %s57
      %s59 = sphi 0, %s57
      %s60 = sphi 0, %s59
      %s74 = sphi 0, %s60
      %s78 = sphi 0, %s78
      %s80 = sphi 0, %s78
      %s81 = sphi 0, %s80
      %s95 = sphi 0, %s81
      %s99 = sphi 0, %s99
      %s101 = sphi 0, %s99
      %s102 = sphi 0, %s101
      %s116 = sphi 0, %s102
      %s120 = sphi 0, %s120
      %s122 = sphi 0, %s120
      %s123 = sphi 0, %s122
      %s137 = sphi 0, %s123
      %s143 = sphi 0, %s145
      %s146 = sphi 0, %s143
      %s147 = sphi 0, %s146
      %s163 = sphi 0, %s147
      %s169 = sphi 0, %s171
      %s172 = sphi 0, %s169
      %s173 = sphi 0, %s172
      %s189 = sphi 0, %s173
    $region4: #{tpu_custom_call.1} parent=1 // loop_header_branch
      %26 = sbr.rel (%p24) target = $region8
    $region5: #{tpu_custom_call.1} parent=1 // loop_body
      %s28 = ssub.s32 %s23, 1
      %s29 = ssub.s32 %s23, 2
      %s30 = sadd.s32 %s23, 1
      %s31 = ssub.s32 %s23, %s30
      %p32 = scmp.eq.s32.totalorder %s31, 0
      %s34 = sadd.s32 %s33, 1
      %s35 = scalar_select %p32, %s33, %s34
      %p38 = pneg %p32
      %p39 = scmp.eq.s32.totalorder %s23, 1
      %p40 = por %p38, %p39
      %p41 = scmp.ne.s32.totalorder %s33, %s36
      %p42 = scmp.eq.s32.totalorder %s23, 0
      %p43 = por %p41, %p42
      %p44 = scmp.ne.s32.totalorder %s33, %s36
      %p45 = scmp.eq.s32.totalorder %s28, 1
      %p46 = por %p44, %p45
      %p47 = scmp.ne.s32.totalorder %s36, %s37
      %p48 = scmp.eq.s32.totalorder %s28, 0
      %p49 = por %p47, %p48
      %p50 = scmp.ne.s32.totalorder %s36, %s37
      %p51 = scmp.eq.s32.totalorder %s29, 1
      %p52 = por %p50, %p51
      %p54 = scmp.ne.s32.totalorder %s37, %s53
      %p55 = scmp.eq.s32.totalorder %s29, 0
      %p56 = por %p54, %p55
      %s58 = sadd.s32 %s57, 1
      %p61 = scmp.eq.s32.totalorder %s23, 1
      %p62 = scmp.ne.s32.totalorder %s57, %s59
      %p63 = scmp.eq.s32.totalorder %s23, 0
      %p64 = por %p62, %p63
      %p65 = scmp.ne.s32.totalorder %s57, %s59
      %p66 = scmp.eq.s32.totalorder %s28, 1
      %p67 = por %p65, %p66
      %p68 = scmp.ne.s32.totalorder %s59, %s60
      %p69 = scmp.eq.s32.totalorder %s28, 0
      %p70 = por %p68, %p69
      %p71 = scmp.ne.s32.totalorder %s59, %s60
      %p72 = scmp.eq.s32.totalorder %s29, 1
      %p73 = por %p71, %p72
      %p75 = scmp.ne.s32.totalorder %s60, %s74
      %p76 = scmp.eq.s32.totalorder %s29, 0
      %p77 = por %p75, %p76
      %s79 = sadd.s32 %s78, 1
      %p82 = scmp.eq.s32.totalorder %s23, 1
      %p83 = scmp.ne.s32.totalorder %s78, %s80
      %p84 = scmp.eq.s32.totalorder %s23, 0
      %p85 = por %p83, %p84
      %p86 = scmp.ne.s32.totalorder %s78, %s80
      %p87 = scmp.eq.s32.totalorder %s28, 1
      %p88 = por %p86, %p87
      %p89 = scmp.ne.s32.totalorder %s80, %s81
      %p90 = scmp.eq.s32.totalorder %s28, 0
      %p91 = por %p89, %p90
      %p92 = scmp.ne.s32.totalorder %s80, %s81
      %p93 = scmp.eq.s32.totalorder %s29, 1
      %p94 = por %p92, %p93
      %p96 = scmp.ne.s32.totalorder %s81, %s95
      %p97 = scmp.eq.s32.totalorder %s29, 0
      %p98 = por %p96, %p97
      %s100 = sadd.s32 %s99, 1
      %p103 = scmp.eq.s32.totalorder %s23, 1
      %p104 = scmp.ne.s32.totalorder %s99, %s101
      %p105 = scmp.eq.s32.totalorder %s23, 0
      %p106 = por %p104, %p105
      %p107 = scmp.ne.s32.totalorder %s99, %s101
      %p108 = scmp.eq.s32.totalorder %s28, 1
      %p109 = por %p107, %p108
      %p110 = scmp.ne.s32.totalorder %s101, %s102
      %p111 = scmp.eq.s32.totalorder %s28, 0
      %p112 = por %p110, %p111
      %p113 = scmp.ne.s32.totalorder %s101, %s102
      %p114 = scmp.eq.s32.totalorder %s29, 1
      %p115 = por %p113, %p114
      %p117 = scmp.ne.s32.totalorder %s102, %s116
      %p118 = scmp.eq.s32.totalorder %s29, 0
      %p119 = por %p117, %p118
      %s121 = sadd.s32 %s120, 1
      %p124 = scmp.eq.s32.totalorder %s23, 1
      %p125 = scmp.ne.s32.totalorder %s120, %s122
      %p126 = scmp.eq.s32.totalorder %s23, 0
      %p127 = por %p125, %p126
      %p128 = scmp.ne.s32.totalorder %s120, %s122
      %p129 = scmp.eq.s32.totalorder %s28, 1
      %p130 = por %p128, %p129
      %p131 = scmp.ne.s32.totalorder %s122, %s123
      %p132 = scmp.eq.s32.totalorder %s28, 0
      %p133 = por %p131, %p132
      %p134 = scmp.ne.s32.totalorder %s122, %s123
      %p135 = scmp.eq.s32.totalorder %s29, 1
      %p136 = por %p134, %p135
      %p138 = scmp.ne.s32.totalorder %s123, %s137
      %p139 = scmp.eq.s32.totalorder %s29, 0
      %p140 = por %p138, %p139
      %s141 = ssub.s32 %s23, %s30
      %p142 = scmp.eq.s32.totalorder %s141, 0
      %s144 = sadd.s32 %s143, 1
      %s145 = scalar_select %p142, %s143, %s144
      %p148 = pneg %p142
      %p149 = scmp.eq.s32.totalorder %s23, 1
      %p150 = por %p148, %p149
      %p151 = scmp.ne.s32.totalorder %s143, %s146
      %p152 = scmp.eq.s32.totalorder %s23, 0
      %p153 = por %p151, %p152
      %p154 = scmp.ne.s32.totalorder %s143, %s146
      %p155 = scmp.eq.s32.totalorder %s28, 1
      %p156 = por %p154, %p155
      %p157 = scmp.ne.s32.totalorder %s146, %s147
      %p158 = scmp.eq.s32.totalorder %s28, 0
      %p159 = por %p157, %p158
      %p160 = scmp.ne.s32.totalorder %s146, %s147
      %p161 = scmp.eq.s32.totalorder %s29, 1
      %p162 = por %p160, %p161
      %p164 = scmp.ne.s32.totalorder %s147, %s163
      %p165 = scmp.eq.s32.totalorder %s29, 0
      %p166 = por %p164, %p165
      %s167 = ssub.s32 %s23, %s30
      %p168 = scmp.eq.s32.totalorder %s167, 0
      %s170 = sadd.s32 %s169, 1
      %s171 = scalar_select %p168, %s169, %s170
      %p174 = pneg %p168
      %p175 = scmp.eq.s32.totalorder %s23, 1
      %p176 = por %p174, %p175
      %p177 = scmp.ne.s32.totalorder %s169, %s172
      %p178 = scmp.eq.s32.totalorder %s23, 0
      %p179 = por %p177, %p178
      %p180 = scmp.ne.s32.totalorder %s169, %s172
      %p181 = scmp.eq.s32.totalorder %s28, 1
      %p182 = por %p180, %p181
      %p183 = scmp.ne.s32.totalorder %s172, %s173
      %p184 = scmp.eq.s32.totalorder %s28, 0
      %p185 = por %p183, %p184
      %p186 = scmp.ne.s32.totalorder %s172, %s173
      %p187 = scmp.eq.s32.totalorder %s29, 1
      %p188 = por %p186, %p187
      %p190 = scmp.ne.s32.totalorder %s173, %s189
      %p191 = scmp.eq.s32.totalorder %s29, 0
      %p192 = por %p190, %p191
      %p193 = scmp.le.s32.totalorder 1, %s23
      %p194 = scmp.lt.s32.totalorder %s23, 3
      %p195 = pnand %p193, %p194
      %p196 = pneg %p195
      // Predicated region
      $region9: #{tpu_custom_call.1} parent=5 // pred_check
        _
      $region10: #{tpu_custom_call.1} parent=5 // pred_check_branch
        %198 = sbr.rel (%p195) target = $region12
      $region11: #{tpu_custom_call.1} parent=5 // pred_region
        %s199 = ssub.s32 %s23, 1
        // Predicated region
        $region13: #{tpu_custom_call.1} parent=11 // pred_check
          %p200 = pneg %p70
        $region14: #{tpu_custom_call.1} parent=11 // pred_check_branch
          %202 = sbr.rel (%p200) target = $region16
        $region15: #{tpu_custom_call.1} parent=11 // pred_region
          _
        $region16: #{tpu_custom_call.1} parent=11 // pred_fallthru
          _
        // Predicated region
        $region17: #{tpu_custom_call.1} parent=11 // pred_check
          %p203 = pneg %p91
        $region18: #{tpu_custom_call.1} parent=11 // pred_check_branch
          %205 = sbr.rel (%p203) target = $region20
        $region19: #{tpu_custom_call.1} parent=11 // pred_region
          _
        $region20: #{tpu_custom_call.1} parent=11 // pred_fallthru
          _
        // Predicated region
        $region21: #{tpu_custom_call.1} parent=11 // pred_check
          %p206 = pneg %p112
        $region22: #{tpu_custom_call.1} parent=11 // pred_check_branch
          %208 = sbr.rel (%p206) target = $region24
        $region23: #{tpu_custom_call.1} parent=11 // pred_region
          _
        $region24: #{tpu_custom_call.1} parent=11 // pred_fallthru
          _
        // Predicated region
        $region25: #{tpu_custom_call.1} parent=11 // pred_check
          %p209 = pneg %p133
        $region26: #{tpu_custom_call.1} parent=11 // pred_check_branch
          %211 = sbr.rel (%p209) target = $region28
        $region27: #{tpu_custom_call.1} parent=11 // pred_region
          %s213 = ssub.s32 32768, 32768
          %214 = vsyncadd [#allocation6], %s213
          %s215 = sshll.u32 [#allocation5], 4
          %s216 = int_to_ptr.vmem [resolvable:$true] %s215
          %221 = dma.hbm_to_vmem [thread:$0]  %s4, 32768, %s216, [#allocation6], 128, 128, 8
        $region28: #{tpu_custom_call.1} parent=11 // pred_fallthru
          _
      $region12: #{tpu_custom_call.1} parent=5 // pred_fallthru
        _
      %p222 = scmp.lt.s32.totalorder %s23, 2
      // Predicated region
      $region29: #{tpu_custom_call.1} parent=5 // pred_check
        %p223 = pneg %p222
      $region30: #{tpu_custom_call.1} parent=5 // pred_check_branch
        %225 = sbr.rel (%p223) target = $region32
      $region31: #{tpu_custom_call.1} parent=5 // pred_region
        // Predicated region
        $region33: #{tpu_custom_call.1} parent=31 // pred_check
          %p226 = pneg %p43
        $region34: #{tpu_custom_call.1} parent=31 // pred_check_branch
          %228 = sbr.rel (%p226) target = $region36
        $region35: #{tpu_custom_call.1} parent=31 // pred_region
          %s229 = sand.u32 %s33, 1
          %s230 = scalar_lea.sflag [#allocation3], %s229
          %s231 = sand.u32 %s33, 1
          %s232 = smul.addr %s231, 128
          %s233 = scalar_lea.vmem [#allocation2], %s232
          %s234 = smul.u32 16, %s23
          %s236 = ssub.s32 2048, 2048
          %237 = vsyncadd %s230, %s236
          %s238 = smul.addr %s234, 128
          %s239 = scalar_lea.hbm %s0, %s238
          %s241 = sshll.u32 %s233, 4
          %s242 = int_to_ptr.vmem [resolvable:$true] %s241
          %244 = dma.hbm_to_vmem [thread:$0]  %s239, 2048, %s242, %s230
        $region36: #{tpu_custom_call.1} parent=31 // pred_fallthru
          _
      $region32: #{tpu_custom_call.1} parent=5 // pred_fallthru
        _
      %p245 = scmp.le.s32.totalorder 1, %s23
      %p246 = scmp.lt.s32.totalorder %s23, 3
      %p247 = pnand %p245, %p246
      %p248 = pneg %p247
      // Predicated region
      $region37: #{tpu_custom_call.1} parent=5 // pred_check
        _
      $region38: #{tpu_custom_call.1} parent=5 // pred_check_branch
        %250 = sbr.rel (%p247) target = $region40
      $region39: #{tpu_custom_call.1} parent=5 // pred_region
        %s251 = ssub.s32 %s23, 1
        %s252 = sand.u32 %s36, 1
        %s253 = scalar_lea.sflag [#allocation3], %s252
        %s254 = sand.u32 %s36, 1
        %s255 = smul.addr %s254, 128
        %s256 = scalar_lea.vmem [#allocation2], %s255
        // Predicated region
        $region41: #{tpu_custom_call.1} parent=39 // pred_check
          %p257 = pneg %p49
        $region42: #{tpu_custom_call.1} parent=39 // pred_check_branch
          %259 = sbr.rel (%p257) target = $region44
        $region43: #{tpu_custom_call.1} parent=39 // pred_region
          %260 = dma.done %s253, 2048
        $region44: #{tpu_custom_call.1} parent=39 // pred_fallthru
          _
        // Predicated region
        $region45: #{tpu_custom_call.1} parent=39 // pred_check
          %p261 = pneg %p133
        $region46: #{tpu_custom_call.1} parent=39 // pred_check_branch
          %263 = sbr.rel (%p261) target = $region48
        $region47: #{tpu_custom_call.1} parent=39 // pred_region
          %264 = dma.done [#allocation6], 32768
        $region48: #{tpu_custom_call.1} parent=39 // pred_fallthru
          _
        %s265 = sand.u32 %s36, 1
        %s266 = scalar_lea.sflag [#allocation3], %s265
        %s267 = sand.u32 %s36, 1
        %s268 = smul.addr %s267, 128
        %s269 = scalar_lea.vmem [#allocation2], %s268
        %p270 = pneg %p49
        %p271 = pneg %p46
        %p272 = pneg %p70
        %p273 = pneg %p67
        %p274 = pneg %p91
        %p275 = pneg %p88
        %p276 = pneg %p112
        %p277 = pneg %p109
        %p278 = pneg %p133
        %p279 = pneg %p130
        %p280 = pneg %p159
        %p281 = pneg %p156
        %s282 = sand.u32 %s146, 1
        %s283 = scalar_lea.sflag [#allocation4], %s282
        %s284 = sand.u32 %s146, 1
        %s285 = smul.addr %s284, 4
        %s286 = scalar_lea.vmem [#allocation7], %s285
        %p287 = pneg %p185
        %p288 = pneg %p182
        %s289 = sand.u32 %s172, 1
        %s290 = scalar_lea.sflag [#allocation9], %s289
        %s291 = sand.u32 %s172, 1
        %s292 = smul.addr %s291, 256
        %s293 = scalar_lea.vmem [#allocation8], %s292
        %s294 = smul.u32 16, %s28
        %s295 = smul.u32 16, %s28
        %v296 = vld [vmem:[%s1] sm:$0xff]
        %v297 = vld [vmem:[%s1 + $0x8] sm:$0xff]
        %v298 = vld [vmem:[%s1 + $0x10] sm:$0xff]
        %v299 = vld [vmem:[%s1 + $0x18] sm:$0xff]
        %v300 = vld [vmem:[%s256] sm:$0xff]
        %v301 = vld [vmem:[%s256 + $0x8] sm:$0xff]
        %v302 = vld [vmem:[%s256 + $0x10] sm:$0xff]
        %v303 = vld [vmem:[%s256 + $0x18] sm:$0xff]
        %v304 = vld [vmem:[%s256 + $0x20] sm:$0xff]
        %v305 = vld [vmem:[%s256 + $0x28] sm:$0xff]
        %v306 = vld [vmem:[%s256 + $0x30] sm:$0xff]
        %v307 = vld [vmem:[%s256 + $0x38] sm:$0xff]
        %v308 = vld [vmem:[%s256 + $0x40] sm:$0xff]
        %v309 = vld [vmem:[%s256 + $0x48] sm:$0xff]
        %v310 = vld [vmem:[%s256 + $0x50] sm:$0xff]
        %v311 = vld [vmem:[%s256 + $0x58] sm:$0xff]
        %v312 = vld [vmem:[%s256 + $0x60] sm:$0xff]
        %v313 = vld [vmem:[%s256 + $0x68] sm:$0xff]
        %v314 = vld [vmem:[%s256 + $0x70] sm:$0xff]
        %v315 = vld [vmem:[%s256 + $0x78] sm:$0xff]
        %vm316 = vcmask 64512
        %v318 = vsel %vm316, %v296, 0
        %v321 = vsel %vm316, %v297, 0
        %v324 = vsel %vm316, %v298, 0
        %v327 = vsel %vm316, %v299, 0
        %329 = vmatprep.subr.mxu0 %v301
        %330 = vmatpush1.msra.mxu0 %v300
        %331 = vmatprep.subr.mxu0 0.0
        %332 = vmatpush1.msra.mxu0 0.0
        %333 = vmatprep.subr.mxu0 0.0
        %334 = vmatpush1.msra.mxu0 0.0
        %335 = vmatprep.subr.mxu0 0.0
        %336 = vmatpush1.msra.mxu0 0.0
        %337 = vmatprep.subr.mxu0 0.0
        %338 = vmatpush1.msra.mxu0 0.0
        %339 = vmatprep.subr.mxu0 0.0
        %340 = vmatpush1.msra.mxu0 0.0
        %341 = vmatprep.subr.mxu0 0.0
        %342 = vmatpush1.msra.mxu0 0.0
        %343 = vmatprep.subr.mxu0 0.0
        %344 = vmatpush1.msra.mxu0 0.0
        %345 = vmatprep.subr.mxu0 0.0
        %346 = vmatpush1.msra.mxu0 0.0
        %347 = vmatprep.subr.mxu0 0.0
        %348 = vmatpush1.msra.mxu0 0.0
        %349 = vmatprep.subr.mxu0 0.0
        %350 = vmatpush1.msra.mxu0 0.0
        %351 = vmatprep.subr.mxu0 0.0
        %352 = vmatpush1.msra.mxu0 0.0
        %353 = vmatprep.subr.mxu0 0.0
        %354 = vmatpush1.msra.mxu0 0.0
        %355 = vmatprep.subr.mxu0 0.0
        %356 = vmatpush1.msra.mxu0 0.0
        %357 = vmatprep.subr.mxu0 0.0
        %358 = vmatpush1.msra.mxu0 0.0
        %359 = vmatprep.subr.mxu0 0.0
        %360 = vmatpush1.msra.mxu0 0.0
        %361 = vmatprep.subr.mxu0 0.0
        %362 = vmatpush1.msra.mxu0 0.0
        %363 = vmatprep.subr.mxu0 0.0
        %364 = vmatpush1.msra.mxu0 0.0
        %365 = vmatprep.subr.mxu0 0.0
        %366 = vmatpush1.msra.mxu0 0.0
        %367 = vmatprep.subr.mxu0 0.0
        %368 = vmatpush1.msra.mxu0 0.0
        %369 = vmatprep.subr.mxu0 0.0
        %370 = vmatpush1.msra.mxu0 0.0
        %371 = vmatprep.subr.mxu0 0.0
        %372 = vmatpush1.msra.mxu0 0.0
        %373 = vmatprep.subr.mxu0 0.0
        %374 = vmatpush1.msra.mxu0 0.0
        %375 = vmatprep.subr.mxu0 0.0
        %376 = vmatpush1.msra.mxu0 0.0
        %377 = vmatprep.subr.mxu0 0.0
        %378 = vmatpush1.msra.mxu0 0.0
        %379 = vmatprep.subr.mxu0 0.0
        %380 = vmatpush1.msra.mxu0 0.0
        %381 = vmatprep.subr.mxu0 0.0
        %382 = vmatpush1.msra.mxu0 0.0
        %383 = vmatprep.subr.mxu0 0.0
        %384 = vmatpush1.msra.mxu0 0.0
        %385 = vmatprep.subr.mxu0 0.0
        %386 = vmatpush1.msra.mxu0 0.0
        %387 = vmatprep.subr.mxu0 0.0
        %388 = vmatpush1.msra.mxu0 0.0
        %389 = vmatprep.subr.mxu0 0.0
        %390 = vmatpush1.msra.mxu0 0.0
        %391 = vmatprep.subr.mxu0 0.0
        %392 = vmatpush1.msra.mxu0 0.0
        %393 = vmatprep.mubr.f32.mxu0 0.0
        %394 = vmatmul.mubr.f32.gmra.mrb[0].mxu0 %v318
        %v395 = vpop.f32.mrb[0].mxu0
        %v396 = vadd.f32 0.0, %v395
        %v397 = vpop.f32.mrb[0].mxu0
        %v398 = vadd.f32 0.0, %v397
        %399 = vmatprep.mubr.f32.mxu0 0.0
        %400 = vmatmul.mubr.f32.gmra.mrb[0].mxu0 %v321
        %v401 = vpop.f32.mrb[0].mxu0
        %v402 = vadd.f32 0.0, %v401
        %v403 = vpop.f32.mrb[0].mxu0
        %v404 = vadd.f32 0.0, %v403
        %405 = vmatprep.mubr.f32.mxu0 0.0
        %406 = vmatmul.mubr.f32.gmra.mrb[0].mxu0 %v324
        %v407 = vpop.f32.mrb[0].mxu0
        %v408 = vadd.f32 0.0, %v407
        %v409 = vpop.f32.mrb[0].mxu0
        %v410 = vadd.f32 0.0, %v409
        %411 = vmatprep.mubr.f32.mxu0 0.0
        %412 = vmatmul.mubr.f32.gmra.mrb[0].mxu0 %v327
        %v413 = vpop.f32.mrb[0].mxu0
        %v414 = vadd.f32 0.0, %v413
        %v415 = vpop.f32.mrb[0].mxu0
        %v416 = vadd.f32 0.0, %v415
        %417 = vdwg.mxu0
        %418 = vmatprep.subr.mxu0 %v303
        %419 = vmatpush1.msra.mxu0 %v302
        %420 = vmatprep.subr.mxu0 0.0
        %421 = vmatpush1.msra.mxu0 0.0
        %422 = vmatprep.subr.mxu0 0.0
        %423 = vmatpush1.msra.mxu0 0.0
        %424 = vmatprep.subr.mxu0 0.0
        %425 = vmatpush1.msra.mxu0 0.0
        %426 = vmatprep.subr.mxu0 0.0
        %427 = vmatpush1.msra.mxu0 0.0
        %428 = vmatprep.subr.mxu0 0.0
        %429 = vmatpush1.msra.mxu0 0.0
        %430 = vmatprep.subr.mxu0 0.0
        %431 = vmatpush1.msra.mxu0 0.0
        %432 = vmatprep.subr.mxu0 0.0
        %433 = vmatpush1.msra.mxu0 0.0
        %434 = vmatprep.subr.mxu0 0.0
        %435 = vmatpush1.msra.mxu0 0.0
        %436 = vmatprep.subr.mxu0 0.0
        %437 = vmatpush1.msra.mxu0 0.0
        %438 = vmatprep.subr.mxu0 0.0
        %439 = vmatpush1.msra.mxu0 0.0
        %440 = vmatprep.subr.mxu0 0.0
        %441 = vmatpush1.msra.mxu0 0.0
        %442 = vmatprep.subr.mxu0 0.0
        %443 = vmatpush1.msra.mxu0 0.0
        %444 = vmatprep.subr.mxu0 0.0
        %445 = vmatpush1.msra.mxu0 0.0
        %446 = vmatprep.subr.mxu0 0.0
        %447 = vmatpush1.msra.mxu0 0.0
        %448 = vmatprep.subr.mxu0 0.0
        %449 = vmatpush1.msra.mxu0 0.0
        %450 = vmatprep.subr.mxu0 0.0
        %451 = vmatpush1.msra.mxu0 0.0
        %452 = vmatprep.subr.mxu0 0.0
        %453 = vmatpush1.msra.mxu0 0.0
        %454 = vmatprep.subr.mxu0 0.0
        %455 = vmatpush1.msra.mxu0 0.0
        %456 = vmatprep.subr.mxu0 0.0
        %457 = vmatpush1.msra.mxu0 0.0
        %458 = vmatprep.subr.mxu0 0.0
        %459 = vmatpush1.msra.mxu0 0.0
        %460 = vmatprep.subr.mxu0 0.0
        %461 = vmatpush1.msra.mxu0 0.0
        %462 = vmatprep.subr.mxu0 0.0
        %463 = vmatpush1.msra.mxu0 0.0
        %464 = vmatprep.subr.mxu0 0.0
        %465 = vmatpush1.msra.mxu0 0.0
        %466 = vmatprep.subr.mxu0 0.0
        %467 = vmatpush1.msra.mxu0 0.0
        %468 = vmatprep.subr.mxu0 0.0
        %469 = vmatpush1.msra.mxu0 0.0
        %470 = vmatprep.subr.mxu0 0.0
        %471 = vmatpush1.msra.mxu0 0.0
        %472 = vmatprep.subr.mxu0 0.0
        %473 = vmatpush1.msra.mxu0 0.0
        %474 = vmatprep.subr.mxu0 0.0
        %475 = vmatpush1.msra.mxu0 0.0
        %476 = vmatprep.subr.mxu0 0.0
        %477 = vmatpush1.msra.mxu0 0.0
        %478 = vmatprep.subr.mxu0 0.0
        %479 = vmatpush1.msra.mxu0 0.0
        %480 = vmatprep.subr.mxu0 0.0
        %481 = vmatpush1.msra.mxu0 0.0
        %482 = vmatprep.mubr.f32.mxu0 0.0
        %483 = vmatmul.mubr.f32.gmra.mrb[0].mxu0 %v318
        %v484 = vpop.f32.mrb[0].mxu0
        %v485 = vadd.f32 0.0, %v484
        %v486 = vpop.f32.mrb[0].mxu0
        %v487 = vadd.f32 0.0, %v486
        %488 = vmatprep.mubr.f32.mxu0 0.0
        %489 = vmatmul.mubr.f32.gmra.mrb[0].mxu0 %v321
        %v490 = vpop.f32.mrb[0].mxu0
        %v491 = vadd.f32 0.0, %v490
        %v492 = vpop.f32.mrb[0].mxu0
        %v493 = vadd.f32 0.0, %v492
        %494 = vmatprep.mubr.f32.mxu0 0.0
        %495 = vmatmul.mubr.f32.gmra.mrb[0].mxu0 %v324
        %v496 = vpop.f32.mrb[0].mxu0
        %v497 = vadd.f32 0.0, %v496
        %v498 = vpop.f32.mrb[0].mxu0
        %v499 = vadd.f32 0.0, %v498
        %500 = vmatprep.mubr.f32.mxu0 0.0
        %501 = vmatmul.mubr.f32.gmra.mrb[0].mxu0 %v327
        %v502 = vpop.f32.mrb[0].mxu0
        %v503 = vadd.f32 0.0, %v502
        %v504 = vpop.f32.mrb[0].mxu0
        %v505 = vadd.f32 0.0, %v504
        %506 = vdwg.mxu0
        %507 = vmatprep.subr.mxu0 %v305
        %508 = vmatpush1.msra.mxu0 %v304
        %509 = vmatprep.subr.mxu0 0.0
        %510 = vmatpush1.msra.mxu0 0.0
        %511 = vmatprep.subr.mxu0 0.0
        %512 = vmatpush1.msra.mxu0 0.0
        %513 = vmatprep.subr.mxu0 0.0
        %514 = vmatpush1.msra.mxu0 0.0
        %515 = vmatprep.subr.mxu0 0.0
        %516 = vmatpush1.msra.mxu0 0.0
        %517 = vmatprep.subr.mxu0 0.0
        %518 = vmatpush1.msra.mxu0 0.0
        %519 = vmatprep.subr.mxu0 0.0
        %520 = vmatpush1.msra.mxu0 0.0
        %521 = vmatprep.subr.mxu0 0.0
        %522 = vmatpush1.msra.mxu0 0.0
        %523 = vmatprep.subr.mxu0 0.0
        %524 = vmatpush1.msra.mxu0 0.0
        %525 = vmatprep.subr.mxu0 0.0
        %526 = vmatpush1.msra.mxu0 0.0
        %527 = vmatprep.subr.mxu0 0.0
        %528 = vmatpush1.msra.mxu0 0.0
        %529 = vmatprep.subr.mxu0 0.0
        %530 = vmatpush1.msra.mxu0 0.0
        %531 = vmatprep.subr.mxu0 0.0
        %532 = vmatpush1.msra.mxu0 0.0
        %533 = vmatprep.subr.mxu0 0.0
        %534 = vmatpush1.msra.mxu0 0.0
        %535 = vmatprep.subr.mxu0 0.0
        %536 = vmatpush1.msra.mxu0 0.0
        %537 = vmatprep.subr.mxu0 0.0
        %538 = vmatpush1.msra.mxu0 0.0
        %539 = vmatprep.subr.mxu0 0.0
        %540 = vmatpush1.msra.mxu0 0.0
        %541 = vmatprep.subr.mxu0 0.0
        %542 = vmatpush1.msra.mxu0 0.0
        %543 = vmatprep.subr.mxu0 0.0
        %544 = vmatpush1.msra.mxu0 0.0
        %545 = vmatprep.subr.mxu0 0.0
        %546 = vmatpush1.msra.mxu0 0.0
        %547 = vmatprep.subr.mxu0 0.0
        %548 = vmatpush1.msra.mxu0 0.0
        %549 = vmatprep.subr.mxu0 0.0
        %550 = vmatpush1.msra.mxu0 0.0
        %551 = vmatprep.subr.mxu0 0.0
        %552 = vmatpush1.msra.mxu0 0.0
        %553 = vmatprep.subr.mxu0 0.0
        %554 = vmatpush1.msra.mxu0 0.0
        %555 = vmatprep.subr.mxu0 0.0
        %556 = vmatpush1.msra.mxu0 0.0
        %557 = vmatprep.subr.mxu0 0.0
        %558 = vmatpush1.msra.mxu0 0.0
        %559 = vmatprep.subr.mxu0 0.0
        %560 = vmatpush1.msra.mxu0 0.0
        %561 = vmatprep.subr.mxu0 0.0
        %562 = vmatpush1.msra.mxu0 0.0
        %563 = vmatprep.subr.mxu0 0.0
        %564 = vmatpush1.msra.mxu0 0.0
        %565 = vmatprep.subr.mxu0 0.0
        %566 = vmatpush1.msra.mxu0 0.0
        %567 = vmatprep.subr.mxu0 0.0
        %568 = vmatpush1.msra.mxu0 0.0
        %569 = vmatprep.subr.mxu0 0.0
        %570 = vmatpush1.msra.mxu0 0.0
        %571 = vmatprep.mubr.f32.mxu0 0.0
        %572 = vmatmul.mubr.f32.gmra.mrb[0].mxu0 %v318
        %v573 = vpop.f32.mrb[0].mxu0
        %v574 = vadd.f32 0.0, %v573
        %v575 = vpop.f32.mrb[0].mxu0
        %v576 = vadd.f32 0.0, %v575
        %577 = vmatprep.mubr.f32.mxu0 0.0
        %578 = vmatmul.mubr.f32.gmra.mrb[0].mxu0 %v321
        %v579 = vpop.f32.mrb[0].mxu0
        %v580 = vadd.f32 0.0, %v579
        %v581 = vpop.f32.mrb[0].mxu0
        %v582 = vadd.f32 0.0, %v581
        %583 = vmatprep.mubr.f32.mxu0 0.0
        %584 = vmatmul.mubr.f32.gmra.mrb[0].mxu0 %v324
        %v585 = vpop.f32.mrb[0].mxu0
        %v586 = vadd.f32 0.0, %v585
        %v587 = vpop.f32.mrb[0].mxu0
        %v588 = vadd.f32 0.0, %v587
        %589 = vmatprep.mubr.f32.mxu0 0.0
        %590 = vmatmul.mubr.f32.gmra.mrb[0].mxu0 %v327
        %v591 = vpop.f32.mrb[0].mxu0
        %v592 = vadd.f32 0.0, %v591
        %v593 = vpop.f32.mrb[0].mxu0
        %v594 = vadd.f32 0.0, %v593
        %595 = vdwg.mxu0
        %596 = vmatprep.subr.mxu0 %v307
        %597 = vmatpush1.msra.mxu0 %v306
        %598 = vmatprep.subr.mxu0 0.0
        %599 = vmatpush1.msra.mxu0 0.0
        %600 = vmatprep.subr.mxu0 0.0
        %601 = vmatpush1.msra.mxu0 0.0
        %602 = vmatprep.subr.mxu0 0.0
        %603 = vmatpush1.msra.mxu0 0.0
        %604 = vmatprep.subr.mxu0 0.0
        %605 = vmatpush1.msra.mxu0 0.0
        %606 = vmatprep.subr.mxu0 0.0
        %607 = vmatpush1.msra.mxu0 0.0
        %608 = vmatprep.subr.mxu0 0.0
        %609 = vmatpush1.msra.mxu0 0.0
        %610 = vmatprep.subr.mxu0 0.0
        %611 = vmatpush1.msra.mxu0 0.0
        %612 = vmatprep.subr.mxu0 0.0
        %613 = vmatpush1.msra.mxu0 0.0
        %614 = vmatprep.subr.mxu0 0.0
        %615 = vmatpush1.msra.mxu0 0.0
        %616 = vmatprep.subr.mxu0 0.0
        %617 = vmatpush1.msra.mxu0 0.0
        %618 = vmatprep.subr.mxu0 0.0
        %619 = vmatpush1.msra.mxu0 0.0
        %620 = vmatprep.subr.mxu0 0.0
        %621 = vmatpush1.msra.mxu0 0.0
        %622 = vmatprep.subr.mxu0 0.0
        %623 = vmatpush1.msra.mxu0 0.0
        %624 = vmatprep.subr.mxu0 0.0
        %625 = vmatpush1.msra.mxu0 0.0
        %626 = vmatprep.subr.mxu0 0.0
        %627 = vmatpush1.msra.mxu0 0.0
        %628 = vmatprep.subr.mxu0 0.0
        %629 = vmatpush1.msra.mxu0 0.0
        %630 = vmatprep.subr.mxu0 0.0
        %631 = vmatpush1.msra.mxu0 0.0
        %632 = vmatprep.subr.mxu0 0.0
        %633 = vmatpush1.msra.mxu0 0.0
        %634 = vmatprep.subr.mxu0 0.0
        %635 = vmatpush1.msra.mxu0 0.0
        %636 = vmatprep.subr.mxu0 0.0
        %637 = vmatpush1.msra.mxu0 0.0
        %638 = vmatprep.subr.mxu0 0.0
        %639 = vmatpush1.msra.mxu0 0.0
        %640 = vmatprep.subr.mxu0 0.0
        %641 = vmatpush1.msra.mxu0 0.0
        %642 = vmatprep.subr.mxu0 0.0
        %643 = vmatpush1.msra.mxu0 0.0
        %644 = vmatprep.subr.mxu0 0.0
        %645 = vmatpush1.msra.mxu0 0.0
        %646 = vmatprep.subr.mxu0 0.0
        %647 = vmatpush1.msra.mxu0 0.0
        %648 = vmatprep.subr.mxu0 0.0
        %649 = vmatpush1.msra.mxu0 0.0
        %650 = vmatprep.subr.mxu0 0.0
        %651 = vmatpush1.msra.mxu0 0.0
        %652 = vmatprep.subr.mxu0 0.0
        %653 = vmatpush1.msra.mxu0 0.0
        %654 = vmatprep.subr.mxu0 0.0
        %655 = vmatpush1.msra.mxu0 0.0
        %656 = vmatprep.subr.mxu0 0.0
        %657 = vmatpush1.msra.mxu0 0.0
        %658 = vmatprep.subr.mxu0 0.0
        %659 = vmatpush1.msra.mxu0 0.0
        %660 = vmatprep.mubr.f32.mxu0 0.0
        %661 = vmatmul.mubr.f32.gmra.mrb[0].mxu0 %v318
        %v662 = vpop.f32.mrb[0].mxu0
        %v663 = vadd.f32 0.0, %v662
        %v664 = vpop.f32.mrb[0].mxu0
        %v665 = vadd.f32 0.0, %v664
        %666 = vmatprep.mubr.f32.mxu0 0.0
        %667 = vmatmul.mubr.f32.gmra.mrb[0].mxu0 %v321
        %v668 = vpop.f32.mrb[0].mxu0
        %v669 = vadd.f32 0.0, %v668
        %v670 = vpop.f32.mrb[0].mxu0
        %v671 = vadd.f32 0.0, %v670
        %672 = vmatprep.mubr.f32.mxu0 0.0
        %673 = vmatmul.mubr.f32.gmra.mrb[0].mxu0 %v324
        %v674 = vpop.f32.mrb[0].mxu0
        %v675 = vadd.f32 0.0, %v674
        %v676 = vpop.f32.mrb[0].mxu0
        %v677 = vadd.f32 0.0, %v676
        %678 = vmatprep.mubr.f32.mxu0 0.0
        %679 = vmatmul.mubr.f32.gmra.mrb[0].mxu0 %v327
        %v680 = vpop.f32.mrb[0].mxu0
        %v681 = vadd.f32 0.0, %v680
        %v682 = vpop.f32.mrb[0].mxu0
        %v683 = vadd.f32 0.0, %v682
        %684 = vdwg.mxu0
        %685 = vmatprep.subr.mxu0 %v309
        %686 = vmatpush1.msra.mxu0 %v308
        %687 = vmatprep.subr.mxu0 0.0
        %688 = vmatpush1.msra.mxu0 0.0
        %689 = vmatprep.subr.mxu0 0.0
        %690 = vmatpush1.msra.mxu0 0.0
        %691 = vmatprep.subr.mxu0 0.0
        %692 = vmatpush1.msra.mxu0 0.0
        %693 = vmatprep.subr.mxu0 0.0
        %694 = vmatpush1.msra.mxu0 0.0
        %695 = vmatprep.subr.mxu0 0.0
        %696 = vmatpush1.msra.mxu0 0.0
        %697 = vmatprep.subr.mxu0 0.0
        %698 = vmatpush1.msra.mxu0 0.0
        %699 = vmatprep.subr.mxu0 0.0
        %700 = vmatpush1.msra.mxu0 0.0
        %701 = vmatprep.subr.mxu0 0.0
        %702 = vmatpush1.msra.mxu0 0.0
        %703 = vmatprep.subr.mxu0 0.0
        %704 = vmatpush1.msra.mxu0 0.0
        %705 = vmatprep.subr.mxu0 0.0
        %706 = vmatpush1.msra.mxu0 0.0
        %707 = vmatprep.subr.mxu0 0.0
        %708 = vmatpush1.msra.mxu0 0.0
        %709 = vmatprep.subr.mxu0 0.0
        %710 = vmatpush1.msra.mxu0 0.0
        %711 = vmatprep.subr.mxu0 0.0
        %712 = vmatpush1.msra.mxu0 0.0
        %713 = vmatprep.subr.mxu0 0.0
        %714 = vmatpush1.msra.mxu0 0.0
        %715 = vmatprep.subr.mxu0 0.0
        %716 = vmatpush1.msra.mxu0 0.0
        %717 = vmatprep.subr.mxu0 0.0
        %718 = vmatpush1.msra.mxu0 0.0
        %719 = vmatprep.subr.mxu0 0.0
        %720 = vmatpush1.msra.mxu0 0.0
        %721 = vmatprep.subr.mxu0 0.0
        %722 = vmatpush1.msra.mxu0 0.0
        %723 = vmatprep.subr.mxu0 0.0
        %724 = vmatpush1.msra.mxu0 0.0
        %725 = vmatprep.subr.mxu0 0.0
        %726 = vmatpush1.msra.mxu0 0.0
        %727 = vmatprep.subr.mxu0 0.0
        %728 = vmatpush1.msra.mxu0 0.0
        %729 = vmatprep.subr.mxu0 0.0
        %730 = vmatpush1.msra.mxu0 0.0
        %731 = vmatprep.subr.mxu0 0.0
        %732 = vmatpush1.msra.mxu0 0.0
        %733 = vmatprep.subr.mxu0 0.0
        %734 = vmatpush1.msra.mxu0 0.0
        %735 = vmatprep.subr.mxu0 0.0
        %736 = vmatpush1.msra.mxu0 0.0
        %737 = vmatprep.subr.mxu0 0.0
        %738 = vmatpush1.msra.mxu0 0.0
        %739 = vmatprep.subr.mxu0 0.0
        %740 = vmatpush1.msra.mxu0 0.0
        %741 = vmatprep.subr.mxu0 0.0
        %742 = vmatpush1.msra.mxu0 0.0
        %743 = vmatprep.subr.mxu0 0.0
        %744 = vmatpush1.msra.mxu0 0.0
        %745 = vmatprep.subr.mxu0 0.0
        %746 = vmatpush1.msra.mxu0 0.0
        %747 = vmatprep.subr.mxu0 0.0
        %748 = vmatpush1.msra.mxu0 0.0
        %749 = vmatprep.mubr.f32.mxu0 0.0
        %750 = vmatmul.mubr.f32.gmra.mrb[0].mxu0 %v318
        %v751 = vpop.f32.mrb[0].mxu0
        %v752 = vadd.f32 0.0, %v751
        %v753 = vpop.f32.mrb[0].mxu0
        %v754 = vadd.f32 0.0, %v753
        %755 = vmatprep.mubr.f32.mxu0 0.0
        %756 = vmatmul.mubr.f32.gmra.mrb[0].mxu0 %v321
        %v757 = vpop.f32.mrb[0].mxu0
        %v758 = vadd.f32 0.0, %v757
        %v759 = vpop.f32.mrb[0].mxu0
        %v760 = vadd.f32 0.0, %v759
        %761 = vmatprep.mubr.f32.mxu0 0.0
        %762 = vmatmul.mubr.f32.gmra.mrb[0].mxu0 %v324
        %v763 = vpop.f32.mrb[0].mxu0
        %v764 = vadd.f32 0.0, %v763
        %v765 = vpop.f32.mrb[0].mxu0
        %v766 = vadd.f32 0.0, %v765
        %767 = vmatprep.mubr.f32.mxu0 0.0
        %768 = vmatmul.mubr.f32.gmra.mrb[0].mxu0 %v327
        %v769 = vpop.f32.mrb[0].mxu0
        %v770 = vadd.f32 0.0, %v769
        %v771 = vpop.f32.mrb[0].mxu0
        %v772 = vadd.f32 0.0, %v771
        %773 = vdwg.mxu0
        %774 = vmatprep.subr.mxu0 %v311
        %775 = vmatpush1.msra.mxu0 %v310
        %776 = vmatprep.subr.mxu0 0.0
        %777 = vmatpush1.msra.mxu0 0.0
        %778 = vmatprep.subr.mxu0 0.0
        %779 = vmatpush1.msra.mxu0 0.0
        %780 = vmatprep.subr.mxu0 0.0
        %781 = vmatpush1.msra.mxu0 0.0
        %782 = vmatprep.subr.mxu0 0.0
        %783 = vmatpush1.msra.mxu0 0.0
        %784 = vmatprep.subr.mxu0 0.0
        %785 = vmatpush1.msra.mxu0 0.0
        %786 = vmatprep.subr.mxu0 0.0
        %787 = vmatpush1.msra.mxu0 0.0
        %788 = vmatprep.subr.mxu0 0.0
        %789 = vmatpush1.msra.mxu0 0.0
        %790 = vmatprep.subr.mxu0 0.0
        %791 = vmatpush1.msra.mxu0 0.0
        %792 = vmatprep.subr.mxu0 0.0
        %793 = vmatpush1.msra.mxu0 0.0
        %794 = vmatprep.subr.mxu0 0.0
        %795 = vmatpush1.msra.mxu0 0.0
        %796 = vmatprep.subr.mxu0 0.0
        %797 = vmatpush1.msra.mxu0 0.0
        %798 = vmatprep.subr.mxu0 0.0
        %799 = vmatpush1.msra.mxu0 0.0
        %800 = vmatprep.subr.mxu0 0.0
        %801 = vmatpush1.msra.mxu0 0.0
        %802 = vmatprep.subr.mxu0 0.0
        %803 = vmatpush1.msra.mxu0 0.0
        %804 = vmatprep.subr.mxu0 0.0
        %805 = vmatpush1.msra.mxu0 0.0
        %806 = vmatprep.subr.mxu0 0.0
        %807 = vmatpush1.msra.mxu0 0.0
        %808 = vmatprep.subr.mxu0 0.0
        %809 = vmatpush1.msra.mxu0 0.0
        %810 = vmatprep.subr.mxu0 0.0
        %811 = vmatpush1.msra.mxu0 0.0
        %812 = vmatprep.subr.mxu0 0.0
        %813 = vmatpush1.msra.mxu0 0.0
        %814 = vmatprep.subr.mxu0 0.0
        %815 = vmatpush1.msra.mxu0 0.0
        %816 = vmatprep.subr.mxu0 0.0
        %817 = vmatpush1.msra.mxu0 0.0
        %818 = vmatprep.subr.mxu0 0.0
        %819 = vmatpush1.msra.mxu0 0.0
        %820 = vmatprep.subr.mxu0 0.0
        %821 = vmatpush1.msra.mxu0 0.0
        %822 = vmatprep.subr.mxu0 0.0
        %823 = vmatpush1.msra.mxu0 0.0
        %824 = vmatprep.subr.mxu0 0.0
        %825 = vmatpush1.msra.mxu0 0.0
        %826 = vmatprep.subr.mxu0 0.0
        %827 = vmatpush1.msra.mxu0 0.0
        %828 = vmatprep.subr.mxu0 0.0
        %829 = vmatpush1.msra.mxu0 0.0
        %830 = vmatprep.subr.mxu0 0.0
        %831 = vmatpush1.msra.mxu0 0.0
        %832 = vmatprep.subr.mxu0 0.0
        %833 = vmatpush1.msra.mxu0 0.0
        %834 = vmatprep.subr.mxu0 0.0
        %835 = vmatpush1.msra.mxu0 0.0
        %836 = vmatprep.subr.mxu0 0.0
        %837 = vmatpush1.msra.mxu0 0.0
        %838 = vmatprep.mubr.f32.mxu0 0.0
        %839 = vmatmul.mubr.f32.gmra.mrb[0].mxu0 %v318
        %v840 = vpop.f32.mrb[0].mxu0
        %v841 = vadd.f32 0.0, %v840
        %v842 = vpop.f32.mrb[0].mxu0
        %v843 = vadd.f32 0.0, %v842
        %844 = vmatprep.mubr.f32.mxu0 0.0
        %845 = vmatmul.mubr.f32.gmra.mrb[0].mxu0 %v321
        %v846 = vpop.f32.mrb[0].mxu0
        %v847 = vadd.f32 0.0, %v846
        %v848 = vpop.f32.mrb[0].mxu0
        %v849 = vadd.f32 0.0, %v848
        %850 = vmatprep.mubr.f32.mxu0 0.0
        %851 = vmatmul.mubr.f32.gmra.mrb[0].mxu0 %v324
        %v852 = vpop.f32.mrb[0].mxu0
        %v853 = vadd.f32 0.0, %v852
        %v854 = vpop.f32.mrb[0].mxu0
        %v855 = vadd.f32 0.0, %v854
        %856 = vmatprep.mubr.f32.mxu0 0.0
        %857 = vmatmul.mubr.f32.gmra.mrb[0].mxu0 %v327
        %v858 = vpop.f32.mrb[0].mxu0
        %v859 = vadd.f32 0.0, %v858
        %v860 = vpop.f32.mrb[0].mxu0
        %v861 = vadd.f32 0.0, %v860
        %862 = vdwg.mxu0
        %863 = vmatprep.subr.mxu0 %v313
        %864 = vmatpush1.msra.mxu0 %v312
        %865 = vmatprep.subr.mxu0 0.0
        %866 = vmatpush1.msra.mxu0 0.0
        %867 = vmatprep.subr.mxu0 0.0
        %868 = vmatpush1.msra.mxu0 0.0
        %869 = vmatprep.subr.mxu0 0.0
        %870 = vmatpush1.msra.mxu0 0.0
        %871 = vmatprep.subr.mxu0 0.0
        %872 = vmatpush1.msra.mxu0 0.0
        %873 = vmatprep.subr.mxu0 0.0
        %874 = vmatpush1.msra.mxu0 0.0
        %875 = vmatprep.subr.mxu0 0.0
        %876 = vmatpush1.msra.mxu0 0.0
        %877 = vmatprep.subr.mxu0 0.0
        %878 = vmatpush1.msra.mxu0 0.0
        %879 = vmatprep.subr.mxu0 0.0
        %880 = vmatpush1.msra.mxu0 0.0
        %881 = vmatprep.subr.mxu0 0.0
        %882 = vmatpush1.msra.mxu0 0.0
        %883 = vmatprep.subr.mxu0 0.0
        %884 = vmatpush1.msra.mxu0 0.0
        %885 = vmatprep.subr.mxu0 0.0
        %886 = vmatpush1.msra.mxu0 0.0
        %887 = vmatprep.subr.mxu0 0.0
        %888 = vmatpush1.msra.mxu0 0.0
        %889 = vmatprep.subr.mxu0 0.0
        %890 = vmatpush1.msra.mxu0 0.0
        %891 = vmatprep.subr.mxu0 0.0
        %892 = vmatpush1.msra.mxu0 0.0
        %893 = vmatprep.subr.mxu0 0.0
        %894 = vmatpush1.msra.mxu0 0.0
        %895 = vmatprep.subr.mxu0 0.0
        %896 = vmatpush1.msra.mxu0 0.0
        %897 = vmatprep.subr.mxu0 0.0
        %898 = vmatpush1.msra.mxu0 0.0
        %899 = vmatprep.subr.mxu0 0.0
        %900 = vmatpush1.msra.mxu0 0.0
        %901 = vmatprep.subr.mxu0 0.0
        %902 = vmatpush1.msra.mxu0 0.0
        %903 = vmatprep.subr.mxu0 0.0
        %904 = vmatpush1.msra.mxu0 0.0
        %905 = vmatprep.subr.mxu0 0.0
        %906 = vmatpush1.msra.mxu0 0.0
        %907 = vmatprep.subr.mxu0 0.0
        %908 = vmatpush1.msra.mxu0 0.0
        %909 = vmatprep.subr.mxu0 0.0
        %910 = vmatpush1.msra.mxu0 0.0
        %911 = vmatprep.subr.mxu0 0.0
        %912 = vmatpush1.msra.mxu0 0.0
        %913 = vmatprep.subr.mxu0 0.0
        %914 = vmatpush1.msra.mxu0 0.0
        %915 = vmatprep.subr.mxu0 0.0
        %916 = vmatpush1.msra.mxu0 0.0
        %917 = vmatprep.subr.mxu0 0.0
        %918 = vmatpush1.msra.mxu0 0.0
        %919 = vmatprep.subr.mxu0 0.0
        %920 = vmatpush1.msra.mxu0 0.0
        %921 = vmatprep.subr.mxu0 0.0
        %922 = vmatpush1.msra.mxu0 0.0
        %923 = vmatprep.subr.mxu0 0.0
        %924 = vmatpush1.msra.mxu0 0.0
        %925 = vmatprep.subr.mxu0 0.0
        %926 = vmatpush1.msra.mxu0 0.0
        %927 = vmatprep.mubr.f32.mxu0 0.0
        %928 = vmatmul.mubr.f32.gmra.mrb[0].mxu0 %v318
        %v929 = vpop.f32.mrb[0].mxu0
        %v930 = vadd.f32 0.0, %v929
        %v931 = vpop.f32.mrb[0].mxu0
        %v932 = vadd.f32 0.0, %v931
        %933 = vmatprep.mubr.f32.mxu0 0.0
        %934 = vmatmul.mubr.f32.gmra.mrb[0].mxu0 %v321
        %v935 = vpop.f32.mrb[0].mxu0
        %v936 = vadd.f32 0.0, %v935
        %v937 = vpop.f32.mrb[0].mxu0
        %v938 = vadd.f32 0.0, %v937
        %939 = vmatprep.mubr.f32.mxu0 0.0
        %940 = vmatmul.mubr.f32.gmra.mrb[0].mxu0 %v324
        %v941 = vpop.f32.mrb[0].mxu0
        %v942 = vadd.f32 0.0, %v941
        %v943 = vpop.f32.mrb[0].mxu0
        %v944 = vadd.f32 0.0, %v943
        %945 = vmatprep.mubr.f32.mxu0 0.0
        %946 = vmatmul.mubr.f32.gmra.mrb[0].mxu0 %v327
        %v947 = vpop.f32.mrb[0].mxu0
        %v948 = vadd.f32 0.0, %v947
        %v949 = vpop.f32.mrb[0].mxu0
        %v950 = vadd.f32 0.0, %v949
        %951 = vdwg.mxu0
        %952 = vmatprep.subr.mxu0 %v315
        %953 = vmatpush1.msra.mxu0 %v314
        %954 = vmatprep.subr.mxu0 0.0
        %955 = vmatpush1.msra.mxu0 0.0
        %956 = vmatprep.subr.mxu0 0.0
        %957 = vmatpush1.msra.mxu0 0.0
        %958 = vmatprep.subr.mxu0 0.0
        %959 = vmatpush1.msra.mxu0 0.0
        %960 = vmatprep.subr.mxu0 0.0
        %961 = vmatpush1.msra.mxu0 0.0
        %962 = vmatprep.subr.mxu0 0.0
        %963 = vmatpush1.msra.mxu0 0.0
        %964 = vmatprep.subr.mxu0 0.0
        %965 = vmatpush1.msra.mxu0 0.0
        %966 = vmatprep.subr.mxu0 0.0
        %967 = vmatpush1.msra.mxu0 0.0
        %968 = vmatprep.subr.mxu0 0.0
        %969 = vmatpush1.msra.mxu0 0.0
        %970 = vmatprep.subr.mxu0 0.0
        %971 = vmatpush1.msra.mxu0 0.0
        %972 = vmatprep.subr.mxu0 0.0
        %973 = vmatpush1.msra.mxu0 0.0
        %974 = vmatprep.subr.mxu0 0.0
        %975 = vmatpush1.msra.mxu0 0.0
        %976 = vmatprep.subr.mxu0 0.0
        %977 = vmatpush1.msra.mxu0 0.0
        %978 = vmatprep.subr.mxu0 0.0
        %979 = vmatpush1.msra.mxu0 0.0
        %980 = vmatprep.subr.mxu0 0.0
        %981 = vmatpush1.msra.mxu0 0.0
        %982 = vmatprep.subr.mxu0 0.0
        %983 = vmatpush1.msra.mxu0 0.0
        %984 = vmatprep.subr.mxu0 0.0
        %985 = vmatpush1.msra.mxu0 0.0
        %986 = vmatprep.subr.mxu0 0.0
        %987 = vmatpush1.msra.mxu0 0.0
        %988 = vmatprep.subr.mxu0 0.0
        %989 = vmatpush1.msra.mxu0 0.0
        %990 = vmatprep.subr.mxu0 0.0
        %991 = vmatpush1.msra.mxu0 0.0
        %992 = vmatprep.subr.mxu0 0.0
        %993 = vmatpush1.msra.mxu0 0.0
        %994 = vmatprep.subr.mxu0 0.0
        %995 = vmatpush1.msra.mxu0 0.0
        %996 = vmatprep.subr.mxu0 0.0
        %997 = vmatpush1.msra.mxu0 0.0
        %998 = vmatprep.subr.mxu0 0.0
        %999 = vmatpush1.msra.mxu0 0.0
        %1000 = vmatprep.subr.mxu0 0.0
        %1001 = vmatpush1.msra.mxu0 0.0
        %1002 = vmatprep.subr.mxu0 0.0
        %1003 = vmatpush1.msra.mxu0 0.0
        %1004 = vmatprep.subr.mxu0 0.0
        %1005 = vmatpush1.msra.mxu0 0.0
        %1006 = vmatprep.subr.mxu0 0.0
        %1007 = vmatpush1.msra.mxu0 0.0
        %1008 = vmatprep.subr.mxu0 0.0
        %1009 = vmatpush1.msra.mxu0 0.0
        %1010 = vmatprep.subr.mxu0 0.0
        %1011 = vmatpush1.msra.mxu0 0.0
        %1012 = vmatprep.subr.mxu0 0.0
        %1013 = vmatpush1.msra.mxu0 0.0
        %1014 = vmatprep.subr.mxu0 0.0
        %1015 = vmatpush1.msra.mxu0 0.0
        %1016 = vmatprep.mubr.f32.mxu0 0.0
        %1017 = vmatmul.mubr.f32.gmra.mrb[0].mxu0 %v318
        %v1018 = vpop.f32.mrb[0].mxu0
        %v1019 = vadd.f32 0.0, %v1018
        %v1020 = vpop.f32.mrb[0].mxu0
        %v1021 = vadd.f32 0.0, %v1020
        %1022 = vmatprep.mubr.f32.mxu0 0.0
        %1023 = vmatmul.mubr.f32.gmra.mrb[0].mxu0 %v321
        %v1024 = vpop.f32.mrb[0].mxu0
        %v1025 = vadd.f32 0.0, %v1024
        %v1026 = vpop.f32.mrb[0].mxu0
        %v1027 = vadd.f32 0.0, %v1026
        %1028 = vmatprep.mubr.f32.mxu0 0.0
        %1029 = vmatmul.mubr.f32.gmra.mrb[0].mxu0 %v324
        %v1030 = vpop.f32.mrb[0].mxu0
        %v1031 = vadd.f32 0.0, %v1030
        %v1032 = vpop.f32.mrb[0].mxu0
        %v1033 = vadd.f32 0.0, %v1032
        %1034 = vmatprep.mubr.f32.mxu0 0.0
        %1035 = vmatmul.mubr.f32.gmra.mrb[0].mxu0 %v327
        %v1036 = vpop.f32.mrb[0].mxu0
        %v1037 = vadd.f32 0.0, %v1036
        %v1038 = vpop.f32.mrb[0].mxu0
        %v1039 = vadd.f32 0.0, %v1038
        %1040 = vdwg.mxu0
        %v1041 = vtanh.pop %v396
        %v1042 = vtanh.pop %v398
        %v1043 = vtanh.pop %v485
        %v1044 = vtanh.pop %v487
        %v1045 = vtanh.pop %v574
        %v1046 = vtanh.pop %v576
        %v1047 = vtanh.pop %v663
        %v1048 = vtanh.pop %v665
        %v1049 = vtanh.pop %v752
        %v1050 = vtanh.pop %v754
        %v1051 = vtanh.pop %v841
        %v1052 = vtanh.pop %v843
        %v1053 = vtanh.pop %v930
        %v1054 = vtanh.pop %v932
        %v1055 = vtanh.pop %v1019
        %v1056 = vtanh.pop %v1021
        %v1057 = vtanh.pop %v402
        %v1058 = vtanh.pop %v404
        %v1059 = vtanh.pop %v491
        %v1060 = vtanh.pop %v493
        %v1061 = vtanh.pop %v580
        %v1062 = vtanh.pop %v582
        %v1063 = vtanh.pop %v669
        %v1064 = vtanh.pop %v671
        %v1065 = vtanh.pop %v758
        %v1066 = vtanh.pop %v760
        %v1067 = vtanh.pop %v847
        %v1068 = vtanh.pop %v849
        %v1069 = vtanh.pop %v936
        %v1070 = vtanh.pop %v938
        %v1071 = vtanh.pop %v1025
        %v1072 = vtanh.pop %v1027
        %v1073 = vtanh.pop %v408
        %v1074 = vtanh.pop %v410
        %v1075 = vtanh.pop %v497
        %v1076 = vtanh.pop %v499
        %v1077 = vtanh.pop %v586
        %v1078 = vtanh.pop %v588
        %v1079 = vtanh.pop %v675
        %v1080 = vtanh.pop %v677
        %v1081 = vtanh.pop %v764
        %v1082 = vtanh.pop %v766
        %v1083 = vtanh.pop %v853
        %v1084 = vtanh.pop %v855
        %v1085 = vtanh.pop %v942
        %v1086 = vtanh.pop %v944
        %v1087 = vtanh.pop %v1031
        %v1088 = vtanh.pop %v1033
        %v1089 = vtanh.pop %v414
        %v1090 = vtanh.pop %v416
        %v1091 = vtanh.pop %v503
        %v1092 = vtanh.pop %v505
        %v1093 = vtanh.pop %v592
        %v1094 = vtanh.pop %v594
        %v1095 = vtanh.pop %v681
        %v1096 = vtanh.pop %v683
        %v1097 = vtanh.pop %v770
        %v1098 = vtanh.pop %v772
        %v1099 = vtanh.pop %v859
        %v1100 = vtanh.pop %v861
        %v1101 = vtanh.pop %v948
        %v1102 = vtanh.pop %v950
        %v1103 = vtanh.pop %v1037
        %v1104 = vtanh.pop %v1039
        %v1105 = vmul.f32 %v1041, %v1041
        %v1106 = vmul.f32 %v1042, %v1042
        %v1107 = vmul.f32 %v1043, %v1043
        %v1108 = vmul.f32 %v1044, %v1044
        %v1109 = vmul.f32 %v1045, %v1045
        %v1110 = vmul.f32 %v1046, %v1046
        %v1111 = vmul.f32 %v1047, %v1047
        %v1112 = vmul.f32 %v1048, %v1048
        %v1113 = vmul.f32 %v1049, %v1049
        %v1114 = vmul.f32 %v1050, %v1050
        %v1115 = vmul.f32 %v1051, %v1051
        %v1116 = vmul.f32 %v1052, %v1052
        %v1117 = vmul.f32 %v1053, %v1053
        %v1118 = vmul.f32 %v1054, %v1054
        %v1119 = vmul.f32 %v1055, %v1055
        %v1120 = vmul.f32 %v1056, %v1056
        %v1121 = vmul.f32 %v1057, %v1057
        %v1122 = vmul.f32 %v1058, %v1058
        %v1123 = vmul.f32 %v1059, %v1059
        %v1124 = vmul.f32 %v1060, %v1060
        %v1125 = vmul.f32 %v1061, %v1061
        %v1126 = vmul.f32 %v1062, %v1062
        %v1127 = vmul.f32 %v1063, %v1063
        %v1128 = vmul.f32 %v1064, %v1064
        %v1129 = vmul.f32 %v1065, %v1065
        %v1130 = vmul.f32 %v1066, %v1066
        %v1131 = vmul.f32 %v1067, %v1067
        %v1132 = vmul.f32 %v1068, %v1068
        %v1133 = vmul.f32 %v1069, %v1069
        %v1134 = vmul.f32 %v1070, %v1070
        %v1135 = vmul.f32 %v1071, %v1071
        %v1136 = vmul.f32 %v1072, %v1072
        %v1137 = vmul.f32 %v1073, %v1073
        %v1138 = vmul.f32 %v1074, %v1074
        %v1139 = vmul.f32 %v1075, %v1075
        %v1140 = vmul.f32 %v1076, %v1076
        %v1141 = vmul.f32 %v1077, %v1077
        %v1142 = vmul.f32 %v1078, %v1078
        %v1143 = vmul.f32 %v1079, %v1079
        %v1144 = vmul.f32 %v1080, %v1080
        %v1145 = vmul.f32 %v1081, %v1081
        %v1146 = vmul.f32 %v1082, %v1082
        %v1147 = vmul.f32 %v1083, %v1083
        %v1148 = vmul.f32 %v1084, %v1084
        %v1149 = vmul.f32 %v1085, %v1085
        %v1150 = vmul.f32 %v1086, %v1086
        %v1151 = vmul.f32 %v1087, %v1087
        %v1152 = vmul.f32 %v1088, %v1088
        %v1153 = vmul.f32 %v1089, %v1089
        %v1154 = vmul.f32 %v1090, %v1090
        %v1155 = vmul.f32 %v1091, %v1091
        %v1156 = vmul.f32 %v1092, %v1092
        %v1157 = vmul.f32 %v1093, %v1093
        %v1158 = vmul.f32 %v1094, %v1094
        %v1159 = vmul.f32 %v1095, %v1095
        %v1160 = vmul.f32 %v1096, %v1096
        %v1161 = vmul.f32 %v1097, %v1097
        %v1162 = vmul.f32 %v1098, %v1098
        %v1163 = vmul.f32 %v1099, %v1099
        %v1164 = vmul.f32 %v1100, %v1100
        %v1165 = vmul.f32 %v1101, %v1101
        %v1166 = vmul.f32 %v1102, %v1102
        %v1167 = vmul.f32 %v1103, %v1103
        %v1168 = vmul.f32 %v1104, %v1104
        %v1169 = vsub.f32 1.0, %v1105
        %v1170 = vsub.f32 1.0, %v1106
        %v1171 = vsub.f32 1.0, %v1107
        %v1172 = vsub.f32 1.0, %v1108
        %v1173 = vsub.f32 1.0, %v1109
        %v1174 = vsub.f32 1.0, %v1110
        %v1175 = vsub.f32 1.0, %v1111
        %v1176 = vsub.f32 1.0, %v1112
        %v1177 = vsub.f32 1.0, %v1113
        %v1178 = vsub.f32 1.0, %v1114
        %v1179 = vsub.f32 1.0, %v1115
        %v1180 = vsub.f32 1.0, %v1116
        %v1181 = vsub.f32 1.0, %v1117
        %v1182 = vsub.f32 1.0, %v1118
        %v1183 = vsub.f32 1.0, %v1119
        %v1184 = vsub.f32 1.0, %v1120
        %v1185 = vsub.f32 1.0, %v1121
        %v1186 = vsub.f32 1.0, %v1122
        %v1187 = vsub.f32 1.0, %v1123
        %v1188 = vsub.f32 1.0, %v1124
        %v1189 = vsub.f32 1.0, %v1125
        %v1190 = vsub.f32 1.0, %v1126
        %v1191 = vsub.f32 1.0, %v1127
        %v1192 = vsub.f32 1.0, %v1128
        %v1193 = vsub.f32 1.0, %v1129
        %v1194 = vsub.f32 1.0, %v1130
        %v1195 = vsub.f32 1.0, %v1131
        %v1196 = vsub.f32 1.0, %v1132
        %v1197 = vsub.f32 1.0, %v1133
        %v1198 = vsub.f32 1.0, %v1134
        %v1199 = vsub.f32 1.0, %v1135
        %v1200 = vsub.f32 1.0, %v1136
        %v1201 = vsub.f32 1.0, %v1137
        %v1202 = vsub.f32 1.0, %v1138
        %v1203 = vsub.f32 1.0, %v1139
        %v1204 = vsub.f32 1.0, %v1140
        %v1205 = vsub.f32 1.0, %v1141
        %v1206 = vsub.f32 1.0, %v1142
        %v1207 = vsub.f32 1.0, %v1143
        %v1208 = vsub.f32 1.0, %v1144
        %v1209 = vsub.f32 1.0, %v1145
        %v1210 = vsub.f32 1.0, %v1146
        %v1211 = vsub.f32 1.0, %v1147
        %v1212 = vsub.f32 1.0, %v1148
        %v1213 = vsub.f32 1.0, %v1149
        %v1214 = vsub.f32 1.0, %v1150
        %v1215 = vsub.f32 1.0, %v1151
        %v1216 = vsub.f32 1.0, %v1152
        %v1217 = vsub.f32 1.0, %v1153
        %v1218 = vsub.f32 1.0, %v1154
        %v1219 = vsub.f32 1.0, %v1155
        %v1220 = vsub.f32 1.0, %v1156
        %v1221 = vsub.f32 1.0, %v1157
        %v1222 = vsub.f32 1.0, %v1158
        %v1223 = vsub.f32 1.0, %v1159
        %v1224 = vsub.f32 1.0, %v1160
        %v1225 = vsub.f32 1.0, %v1161
        %v1226 = vsub.f32 1.0, %v1162
        %v1227 = vsub.f32 1.0, %v1163
        %v1228 = vsub.f32 1.0, %v1164
        %v1229 = vsub.f32 1.0, %v1165
        %v1230 = vsub.f32 1.0, %v1166
        %v1231 = vsub.f32 1.0, %v1167
        %v1232 = vsub.f32 1.0, %v1168
        %v1233 = vld [vmem:[%s2] sm:$0xff]
        %v1234 = vld [vmem:[%s2 + $0x8] sm:$0x1]
        %vm1235 = vcmask 261120
        %v1237 = vsel %vm1235, %v1233, 0
        %v1240 = vsel %vm1235, %v1234, 0
        %1242 = vmatprep.subr.mxu0 %v1170
        %1243 = vmatpush1.msra.mxu0 %v1169
        %1244 = vmatprep.subr.mxu0 %v1186
        %1245 = vmatpush1.msra.mxu0 %v1185
        %1246 = vmatprep.subr.mxu0 %v1202
        %1247 = vmatpush1.msra.mxu0 %v1201
        %1248 = vmatprep.subr.mxu0 %v1218
        %1249 = vmatpush1.msra.mxu0 %v1217
        %1250 = vmatprep.subr.mxu0 0.0
        %1251 = vmatpush1.msra.mxu0 0.0
        %1252 = vmatprep.subr.mxu0 0.0
        %1253 = vmatpush1.msra.mxu0 0.0
        %1254 = vmatprep.subr.mxu0 0.0
        %1255 = vmatpush1.msra.mxu0 0.0
        %1256 = vmatprep.subr.mxu0 0.0
        %1257 = vmatpush1.msra.mxu0 0.0
        %1258 = vmatprep.subr.mxu0 0.0
        %1259 = vmatpush1.msra.mxu0 0.0
        %1260 = vmatprep.subr.mxu0 0.0
        %1261 = vmatpush1.msra.mxu0 0.0
        %1262 = vmatprep.subr.mxu0 0.0
        %1263 = vmatpush1.msra.mxu0 0.0
        %1264 = vmatprep.subr.mxu0 0.0
        %1265 = vmatpush1.msra.mxu0 0.0
        %1266 = vmatprep.subr.mxu0 0.0
        %1267 = vmatpush1.msra.mxu0 0.0
        %1268 = vmatprep.subr.mxu0 0.0
        %1269 = vmatpush1.msra.mxu0 0.0
        %1270 = vmatprep.subr.mxu0 0.0
        %1271 = vmatpush1.msra.mxu0 0.0
        %1272 = vmatprep.subr.mxu0 0.0
        %1273 = vmatpush1.msra.mxu0 0.0
        %1274 = vmatprep.subr.mxu0 0.0
        %1275 = vmatpush1.msra.mxu0 0.0
        %1276 = vmatprep.subr.mxu0 0.0
        %1277 = vmatpush1.msra.mxu0 0.0
        %1278 = vmatprep.subr.mxu0 0.0
        %1279 = vmatpush1.msra.mxu0 0.0
        %1280 = vmatprep.subr.mxu0 0.0
        %1281 = vmatpush1.msra.mxu0 0.0
        %1282 = vmatprep.subr.mxu0 0.0
        %1283 = vmatpush1.msra.mxu0 0.0
        %1284 = vmatprep.subr.mxu0 0.0
        %1285 = vmatpush1.msra.mxu0 0.0
        %1286 = vmatprep.subr.mxu0 0.0
        %1287 = vmatpush1.msra.mxu0 0.0
        %1288 = vmatprep.subr.mxu0 0.0
        %1289 = vmatpush1.msra.mxu0 0.0
        %1290 = vmatprep.subr.mxu0 0.0
        %1291 = vmatpush1.msra.mxu0 0.0
        %1292 = vmatprep.subr.mxu0 0.0
        %1293 = vmatpush1.msra.mxu0 0.0
        %1294 = vmatprep.subr.mxu0 0.0
        %1295 = vmatpush1.msra.mxu0 0.0
        %1296 = vmatprep.subr.mxu0 0.0
        %1297 = vmatpush1.msra.mxu0 0.0
        %1298 = vmatprep.subr.mxu0 0.0
        %1299 = vmatpush1.msra.mxu0 0.0
        %1300 = vmatprep.subr.mxu0 0.0
        %1301 = vmatpush1.msra.mxu0 0.0
        %1302 = vmatprep.subr.mxu0 0.0
        %1303 = vmatpush1.msra.mxu0 0.0
        %1304 = vmatprep.subr.mxu0 0.0
        %1305 = vmatpush1.msra.mxu0 0.0
        %1306 = vmatprep.mubr.f32.mxu0 0.0
        %1307 = vmatmul.mubr.f32.gmra.mrb[0].mxu0 %v1237
        %v1308 = vpop.f32.mrb[0].mxu0
        %v1309 = vadd.f32 0.0, %v1308
        %v1310 = vpop.f32.mrb[0].mxu0
        %v1311 = vadd.f32 0.0, %v1310
        %1312 = vmatprep.mubr.f32.mxu0 0.0
        %1313 = vmatmul.mubr.f32.gmra.mrb[0].mxu0 %v1240
        %v1314 = vpop.f32.mrb[0].mxu0
        %v1315 = vadd.f32 0.0, %v1314
        %v1316 = vpop.f32.mrb[0].mxu0
        %v1317 = vadd.f32 0.0, %v1316
        %1318 = vdwg.mxu0
        %1319 = vmatprep.subr.mxu0 %v1172
        %1320 = vmatpush1.msra.mxu0 %v1171
        %1321 = vmatprep.subr.mxu0 %v1188
        %1322 = vmatpush1.msra.mxu0 %v1187
        %1323 = vmatprep.subr.mxu0 %v1204
        %1324 = vmatpush1.msra.mxu0 %v1203
        %1325 = vmatprep.subr.mxu0 %v1220
        %1326 = vmatpush1.msra.mxu0 %v1219
        %1327 = vmatprep.subr.mxu0 0.0
        %1328 = vmatpush1.msra.mxu0 0.0
        %1329 = vmatprep.subr.mxu0 0.0
        %1330 = vmatpush1.msra.mxu0 0.0
        %1331 = vmatprep.subr.mxu0 0.0
        %1332 = vmatpush1.msra.mxu0 0.0
        %1333 = vmatprep.subr.mxu0 0.0
        %1334 = vmatpush1.msra.mxu0 0.0
        %1335 = vmatprep.subr.mxu0 0.0
        %1336 = vmatpush1.msra.mxu0 0.0
        %1337 = vmatprep.subr.mxu0 0.0
        %1338 = vmatpush1.msra.mxu0 0.0
        %1339 = vmatprep.subr.mxu0 0.0
        %1340 = vmatpush1.msra.mxu0 0.0
        %1341 = vmatprep.subr.mxu0 0.0
        %1342 = vmatpush1.msra.mxu0 0.0
        %1343 = vmatprep.subr.mxu0 0.0
        %1344 = vmatpush1.msra.mxu0 0.0
        %1345 = vmatprep.subr.mxu0 0.0
        %1346 = vmatpush1.msra.mxu0 0.0
        %1347 = vmatprep.subr.mxu0 0.0
        %1348 = vmatpush1.msra.mxu0 0.0
        %1349 = vmatprep.subr.mxu0 0.0
        %1350 = vmatpush1.msra.mxu0 0.0
        %1351 = vmatprep.subr.mxu0 0.0
        %1352 = vmatpush1.msra.mxu0 0.0
        %1353 = vmatprep.subr.mxu0 0.0
        %1354 = vmatpush1.msra.mxu0 0.0
        %1355 = vmatprep.subr.mxu0 0.0
        %1356 = vmatpush1.msra.mxu0 0.0
        %1357 = vmatprep.subr.mxu0 0.0
        %1358 = vmatpush1.msra.mxu0 0.0
        %1359 = vmatprep.subr.mxu0 0.0
        %1360 = vmatpush1.msra.mxu0 0.0
        %1361 = vmatprep.subr.mxu0 0.0
        %1362 = vmatpush1.msra.mxu0 0.0
        %1363 = vmatprep.subr.mxu0 0.0
        %1364 = vmatpush1.msra.mxu0 0.0
        %1365 = vmatprep.subr.mxu0 0.0
        %1366 = vmatpush1.msra.mxu0 0.0
        %1367 = vmatprep.subr.mxu0 0.0
        %1368 = vmatpush1.msra.mxu0 0.0
        %1369 = vmatprep.subr.mxu0 0.0
        %1370 = vmatpush1.msra.mxu0 0.0
        %1371 = vmatprep.subr.mxu0 0.0
        %1372 = vmatpush1.msra.mxu0 0.0
        %1373 = vmatprep.subr.mxu0 0.0
        %1374 = vmatpush1.msra.mxu0 0.0
        %1375 = vmatprep.subr.mxu0 0.0
        %1376 = vmatpush1.msra.mxu0 0.0
        %1377 = vmatprep.subr.mxu0 0.0
        %1378 = vmatpush1.msra.mxu0 0.0
        %1379 = vmatprep.subr.mxu0 0.0
        %1380 = vmatpush1.msra.mxu0 0.0
        %1381 = vmatprep.subr.mxu0 0.0
        %1382 = vmatpush1.msra.mxu0 0.0
        %1383 = vmatprep.mubr.f32.mxu0 0.0
        %1384 = vmatmul.mubr.f32.gmra.mrb[0].mxu0 %v1237
        %v1385 = vpop.f32.mrb[0].mxu0
        %v1386 = vadd.f32 0.0, %v1385
        %v1387 = vpop.f32.mrb[0].mxu0
        %v1388 = vadd.f32 0.0, %v1387
        %1389 = vmatprep.mubr.f32.mxu0 0.0
        %1390 = vmatmul.mubr.f32.gmra.mrb[0].mxu0 %v1240
        %v1391 = vpop.f32.mrb[0].mxu0
        %v1392 = vadd.f32 0.0, %v1391
        %v1393 = vpop.f32.mrb[0].mxu0
        %v1394 = vadd.f32 0.0, %v1393
        %1395 = vdwg.mxu0
        %1396 = vmatprep.subr.mxu0 %v1174
        %1397 = vmatpush1.msra.mxu0 %v1173
        %1398 = vmatprep.subr.mxu0 %v1190
        %1399 = vmatpush1.msra.mxu0 %v1189
        %1400 = vmatprep.subr.mxu0 %v1206
        %1401 = vmatpush1.msra.mxu0 %v1205
        %1402 = vmatprep.subr.mxu0 %v1222
        %1403 = vmatpush1.msra.mxu0 %v1221
        %1404 = vmatprep.subr.mxu0 0.0
        %1405 = vmatpush1.msra.mxu0 0.0
        %1406 = vmatprep.subr.mxu0 0.0
        %1407 = vmatpush1.msra.mxu0 0.0
        %1408 = vmatprep.subr.mxu0 0.0
        %1409 = vmatpush1.msra.mxu0 0.0
        %1410 = vmatprep.subr.mxu0 0.0
        %1411 = vmatpush1.msra.mxu0 0.0
        %1412 = vmatprep.subr.mxu0 0.0
        %1413 = vmatpush1.msra.mxu0 0.0
        %1414 = vmatprep.subr.mxu0 0.0
        %1415 = vmatpush1.msra.mxu0 0.0
        %1416 = vmatprep.subr.mxu0 0.0
        %1417 = vmatpush1.msra.mxu0 0.0
        %1418 = vmatprep.subr.mxu0 0.0
        %1419 = vmatpush1.msra.mxu0 0.0
        %1420 = vmatprep.subr.mxu0 0.0
        %1421 = vmatpush1.msra.mxu0 0.0
        %1422 = vmatprep.subr.mxu0 0.0
        %1423 = vmatpush1.msra.mxu0 0.0
        %1424 = vmatprep.subr.mxu0 0.0
        %1425 = vmatpush1.msra.mxu0 0.0
        %1426 = vmatprep.subr.mxu0 0.0
        %1427 = vmatpush1.msra.mxu0 0.0
        %1428 = vmatprep.subr.mxu0 0.0
        %1429 = vmatpush1.msra.mxu0 0.0
        %1430 = vmatprep.subr.mxu0 0.0
        %1431 = vmatpush1.msra.mxu0 0.0
        %1432 = vmatprep.subr.mxu0 0.0
        %1433 = vmatpush1.msra.mxu0 0.0
        %1434 = vmatprep.subr.mxu0 0.0
        %1435 = vmatpush1.msra.mxu0 0.0
        %1436 = vmatprep.subr.mxu0 0.0
        %1437 = vmatpush1.msra.mxu0 0.0
        %1438 = vmatprep.subr.mxu0 0.0
        %1439 = vmatpush1.msra.mxu0 0.0
        %1440 = vmatprep.subr.mxu0 0.0
        %1441 = vmatpush1.msra.mxu0 0.0
        %1442 = vmatprep.subr.mxu0 0.0
        %1443 = vmatpush1.msra.mxu0 0.0
        %1444 = vmatprep.subr.mxu0 0.0
        %1445 = vmatpush1.msra.mxu0 0.0
        %1446 = vmatprep.subr.mxu0 0.0
        %1447 = vmatpush1.msra.mxu0 0.0
        %1448 = vmatprep.subr.mxu0 0.0
        %1449 = vmatpush1.msra.mxu0 0.0
        %1450 = vmatprep.subr.mxu0 0.0
        %1451 = vmatpush1.msra.mxu0 0.0
        %1452 = vmatprep.subr.mxu0 0.0
        %1453 = vmatpush1.msra.mxu0 0.0
        %1454 = vmatprep.subr.mxu0 0.0
        %1455 = vmatpush1.msra.mxu0 0.0
        %1456 = vmatprep.subr.mxu0 0.0
        %1457 = vmatpush1.msra.mxu0 0.0
        %1458 = vmatprep.subr.mxu0 0.0
        %1459 = vmatpush1.msra.mxu0 0.0
        %1460 = vmatprep.mubr.f32.mxu0 0.0
        %1461 = vmatmul.mubr.f32.gmra.mrb[0].mxu0 %v1237
        %v1462 = vpop.f32.mrb[0].mxu0
        %v1463 = vadd.f32 0.0, %v1462
        %v1464 = vpop.f32.mrb[0].mxu0
        %v1465 = vadd.f32 0.0, %v1464
        %1466 = vmatprep.mubr.f32.mxu0 0.0
        %1467 = vmatmul.mubr.f32.gmra.mrb[0].mxu0 %v1240
        %v1468 = vpop.f32.mrb[0].mxu0
        %v1469 = vadd.f32 0.0, %v1468
        %v1470 = vpop.f32.mrb[0].mxu0
        %v1471 = vadd.f32 0.0, %v1470
        %1472 = vdwg.mxu0
        %1473 = vmatprep.subr.mxu0 %v1176
        %1474 = vmatpush1.msra.mxu0 %v1175
        %1475 = vmatprep.subr.mxu0 %v1192
        %1476 = vmatpush1.msra.mxu0 %v1191
        %1477 = vmatprep.subr.mxu0 %v1208
        %1478 = vmatpush1.msra.mxu0 %v1207
        %1479 = vmatprep.subr.mxu0 %v1224
        %1480 = vmatpush1.msra.mxu0 %v1223
        %1481 = vmatprep.subr.mxu0 0.0
        %1482 = vmatpush1.msra.mxu0 0.0
        %1483 = vmatprep.subr.mxu0 0.0
        %1484 = vmatpush1.msra.mxu0 0.0
        %1485 = vmatprep.subr.mxu0 0.0
        %1486 = vmatpush1.msra.mxu0 0.0
        %1487 = vmatprep.subr.mxu0 0.0
        %1488 = vmatpush1.msra.mxu0 0.0
        %1489 = vmatprep.subr.mxu0 0.0
        %1490 = vmatpush1.msra.mxu0 0.0
        %1491 = vmatprep.subr.mxu0 0.0
        %1492 = vmatpush1.msra.mxu0 0.0
        %1493 = vmatprep.subr.mxu0 0.0
        %1494 = vmatpush1.msra.mxu0 0.0
        %1495 = vmatprep.subr.mxu0 0.0
        %1496 = vmatpush1.msra.mxu0 0.0
        %1497 = vmatprep.subr.mxu0 0.0
        %1498 = vmatpush1.msra.mxu0 0.0
        %1499 = vmatprep.subr.mxu0 0.0
        %1500 = vmatpush1.msra.mxu0 0.0
        %1501 = vmatprep.subr.mxu0 0.0
        %1502 = vmatpush1.msra.mxu0 0.0
        %1503 = vmatprep.subr.mxu0 0.0
        %1504 = vmatpush1.msra.mxu0 0.0
        %1505 = vmatprep.subr.mxu0 0.0
        %1506 = vmatpush1.msra.mxu0 0.0
        %1507 = vmatprep.subr.mxu0 0.0
        %1508 = vmatpush1.msra.mxu0 0.0
        %1509 = vmatprep.subr.mxu0 0.0
        %1510 = vmatpush1.msra.mxu0 0.0
        %1511 = vmatprep.subr.mxu0 0.0
        %1512 = vmatpush1.msra.mxu0 0.0
        %1513 = vmatprep.subr.mxu0 0.0
        %1514 = vmatpush1.msra.mxu0 0.0
        %1515 = vmatprep.subr.mxu0 0.0
        %1516 = vmatpush1.msra.mxu0 0.0
        %1517 = vmatprep.subr.mxu0 0.0
        %1518 = vmatpush1.msra.mxu0 0.0
        %1519 = vmatprep.subr.mxu0 0.0
        %1520 = vmatpush1.msra.mxu0 0.0
        %1521 = vmatprep.subr.mxu0 0.0
        %1522 = vmatpush1.msra.mxu0 0.0
        %1523 = vmatprep.subr.mxu0 0.0
        %1524 = vmatpush1.msra.mxu0 0.0
        %1525 = vmatprep.subr.mxu0 0.0
        %1526 = vmatpush1.msra.mxu0 0.0
        %1527 = vmatprep.subr.mxu0 0.0
        %1528 = vmatpush1.msra.mxu0 0.0
        %1529 = vmatprep.subr.mxu0 0.0
        %1530 = vmatpush1.msra.mxu0 0.0
        %1531 = vmatprep.subr.mxu0 0.0
        %1532 = vmatpush1.msra.mxu0 0.0
        %1533 = vmatprep.subr.mxu0 0.0
        %1534 = vmatpush1.msra.mxu0 0.0
        %1535 = vmatprep.subr.mxu0 0.0
        %1536 = vmatpush1.msra.mxu0 0.0
        %1537 = vmatprep.mubr.f32.mxu0 0.0
        %1538 = vmatmul.mubr.f32.gmra.mrb[0].mxu0 %v1237
        %v1539 = vpop.f32.mrb[0].mxu0
        %v1540 = vadd.f32 0.0, %v1539
        %v1541 = vpop.f32.mrb[0].mxu0
        %v1542 = vadd.f32 0.0, %v1541
        %1543 = vmatprep.mubr.f32.mxu0 0.0
        %1544 = vmatmul.mubr.f32.gmra.mrb[0].mxu0 %v1240
        %v1545 = vpop.f32.mrb[0].mxu0
        %v1546 = vadd.f32 0.0, %v1545
        %v1547 = vpop.f32.mrb[0].mxu0
        %v1548 = vadd.f32 0.0, %v1547
        %1549 = vdwg.mxu0
        %1550 = vmatprep.subr.mxu0 %v1178
        %1551 = vmatpush1.msra.mxu0 %v1177
        %1552 = vmatprep.subr.mxu0 %v1194
        %1553 = vmatpush1.msra.mxu0 %v1193
        %1554 = vmatprep.subr.mxu0 %v1210
        %1555 = vmatpush1.msra.mxu0 %v1209
        %1556 = vmatprep.subr.mxu0 %v1226
        %1557 = vmatpush1.msra.mxu0 %v1225
        %1558 = vmatprep.subr.mxu0 0.0
        %1559 = vmatpush1.msra.mxu0 0.0
        %1560 = vmatprep.subr.mxu0 0.0
        %1561 = vmatpush1.msra.mxu0 0.0
        %1562 = vmatprep.subr.mxu0 0.0
        %1563 = vmatpush1.msra.mxu0 0.0
        %1564 = vmatprep.subr.mxu0 0.0
        %1565 = vmatpush1.msra.mxu0 0.0
        %1566 = vmatprep.subr.mxu0 0.0
        %1567 = vmatpush1.msra.mxu0 0.0
        %1568 = vmatprep.subr.mxu0 0.0
        %1569 = vmatpush1.msra.mxu0 0.0
        %1570 = vmatprep.subr.mxu0 0.0
        %1571 = vmatpush1.msra.mxu0 0.0
        %1572 = vmatprep.subr.mxu0 0.0
        %1573 = vmatpush1.msra.mxu0 0.0
        %1574 = vmatprep.subr.mxu0 0.0
        %1575 = vmatpush1.msra.mxu0 0.0
        %1576 = vmatprep.subr.mxu0 0.0
        %1577 = vmatpush1.msra.mxu0 0.0
        %1578 = vmatprep.subr.mxu0 0.0
        %1579 = vmatpush1.msra.mxu0 0.0
        %1580 = vmatprep.subr.mxu0 0.0
        %1581 = vmatpush1.msra.mxu0 0.0
        %1582 = vmatprep.subr.mxu0 0.0
        %1583 = vmatpush1.msra.mxu0 0.0
        %1584 = vmatprep.subr.mxu0 0.0
        %1585 = vmatpush1.msra.mxu0 0.0
        %1586 = vmatprep.subr.mxu0 0.0
        %1587 = vmatpush1.msra.mxu0 0.0
        %1588 = vmatprep.subr.mxu0 0.0
        %1589 = vmatpush1.msra.mxu0 0.0
        %1590 = vmatprep.subr.mxu0 0.0
        %1591 = vmatpush1.msra.mxu0 0.0
        %1592 = vmatprep.subr.mxu0 0.0
        %1593 = vmatpush1.msra.mxu0 0.0
        %1594 = vmatprep.subr.mxu0 0.0
        %1595 = vmatpush1.msra.mxu0 0.0
        %1596 = vmatprep.subr.mxu0 0.0
        %1597 = vmatpush1.msra.mxu0 0.0
        %1598 = vmatprep.subr.mxu0 0.0
        %1599 = vmatpush1.msra.mxu0 0.0
        %1600 = vmatprep.subr.mxu0 0.0
        %1601 = vmatpush1.msra.mxu0 0.0
        %1602 = vmatprep.subr.mxu0 0.0
        %1603 = vmatpush1.msra.mxu0 0.0
        %1604 = vmatprep.subr.mxu0 0.0
        %1605 = vmatpush1.msra.mxu0 0.0
        %1606 = vmatprep.subr.mxu0 0.0
        %1607 = vmatpush1.msra.mxu0 0.0
        %1608 = vmatprep.subr.mxu0 0.0
        %1609 = vmatpush1.msra.mxu0 0.0
        %1610 = vmatprep.subr.mxu0 0.0
        %1611 = vmatpush1.msra.mxu0 0.0
        %1612 = vmatprep.subr.mxu0 0.0
        %1613 = vmatpush1.msra.mxu0 0.0
        %1614 = vmatprep.mubr.f32.mxu0 0.0
        %1615 = vmatmul.mubr.f32.gmra.mrb[0].mxu0 %v1237
        %v1616 = vpop.f32.mrb[0].mxu0
        %v1617 = vadd.f32 0.0, %v1616
        %v1618 = vpop.f32.mrb[0].mxu0
        %v1619 = vadd.f32 0.0, %v1618
        %1620 = vmatprep.mubr.f32.mxu0 0.0
        %1621 = vmatmul.mubr.f32.gmra.mrb[0].mxu0 %v1240
        %v1622 = vpop.f32.mrb[0].mxu0
        %v1623 = vadd.f32 0.0, %v1622
        %v1624 = vpop.f32.mrb[0].mxu0
        %v1625 = vadd.f32 0.0, %v1624
        %1626 = vdwg.mxu0
        %1627 = vmatprep.subr.mxu0 %v1180
        %1628 = vmatpush1.msra.mxu0 %v1179
        %1629 = vmatprep.subr.mxu0 %v1196
        %1630 = vmatpush1.msra.mxu0 %v1195
        %1631 = vmatprep.subr.mxu0 %v1212
        %1632 = vmatpush1.msra.mxu0 %v1211
        %1633 = vmatprep.subr.mxu0 %v1228
        %1634 = vmatpush1.msra.mxu0 %v1227
        %1635 = vmatprep.subr.mxu0 0.0
        %1636 = vmatpush1.msra.mxu0 0.0
        %1637 = vmatprep.subr.mxu0 0.0
        %1638 = vmatpush1.msra.mxu0 0.0
        %1639 = vmatprep.subr.mxu0 0.0
        %1640 = vmatpush1.msra.mxu0 0.0
        %1641 = vmatprep.subr.mxu0 0.0
        %1642 = vmatpush1.msra.mxu0 0.0
        %1643 = vmatprep.subr.mxu0 0.0
        %1644 = vmatpush1.msra.mxu0 0.0
        %1645 = vmatprep.subr.mxu0 0.0
        %1646 = vmatpush1.msra.mxu0 0.0
        %1647 = vmatprep.subr.mxu0 0.0
        %1648 = vmatpush1.msra.mxu0 0.0
        %1649 = vmatprep.subr.mxu0 0.0
        %1650 = vmatpush1.msra.mxu0 0.0
        %1651 = vmatprep.subr.mxu0 0.0
        %1652 = vmatpush1.msra.mxu0 0.0
        %1653 = vmatprep.subr.mxu0 0.0
        %1654 = vmatpush1.msra.mxu0 0.0
        %1655 = vmatprep.subr.mxu0 0.0
        %1656 = vmatpush1.msra.mxu0 0.0
        %1657 = vmatprep.subr.mxu0 0.0
        %1658 = vmatpush1.msra.mxu0 0.0
        %1659 = vmatprep.subr.mxu0 0.0
        %1660 = vmatpush1.msra.mxu0 0.0
        %1661 = vmatprep.subr.mxu0 0.0
        %1662 = vmatpush1.msra.mxu0 0.0
        %1663 = vmatprep.subr.mxu0 0.0
        %1664 = vmatpush1.msra.mxu0 0.0
        %1665 = vmatprep.subr.mxu0 0.0
        %1666 = vmatpush1.msra.mxu0 0.0
        %1667 = vmatprep.subr.mxu0 0.0
        %1668 = vmatpush1.msra.mxu0 0.0
        %1669 = vmatprep.subr.mxu0 0.0
        %1670 = vmatpush1.msra.mxu0 0.0
        %1671 = vmatprep.subr.mxu0 0.0
        %1672 = vmatpush1.msra.mxu0 0.0
        %1673 = vmatprep.subr.mxu0 0.0
        %1674 = vmatpush1.msra.mxu0 0.0
        %1675 = vmatprep.subr.mxu0 0.0
        %1676 = vmatpush1.msra.mxu0 0.0
        %1677 = vmatprep.subr.mxu0 0.0
        %1678 = vmatpush1.msra.mxu0 0.0
        %1679 = vmatprep.subr.mxu0 0.0
        %1680 = vmatpush1.msra.mxu0 0.0
        %1681 = vmatprep.subr.mxu0 0.0
        %1682 = vmatpush1.msra.mxu0 0.0
        %1683 = vmatprep.subr.mxu0 0.0
        %1684 = vmatpush1.msra.mxu0 0.0
        %1685 = vmatprep.subr.mxu0 0.0
        %1686 = vmatpush1.msra.mxu0 0.0
        %1687 = vmatprep.subr.mxu0 0.0
        %1688 = vmatpush1.msra.mxu0 0.0
        %1689 = vmatprep.subr.mxu0 0.0
        %1690 = vmatpush1.msra.mxu0 0.0
        %1691 = vmatprep.mubr.f32.mxu0 0.0
        %1692 = vmatmul.mubr.f32.gmra.mrb[0].mxu0 %v1237
        %v1693 = vpop.f32.mrb[0].mxu0
        %v1694 = vadd.f32 0.0, %v1693
        %v1695 = vpop.f32.mrb[0].mxu0
        %v1696 = vadd.f32 0.0, %v1695
        %1697 = vmatprep.mubr.f32.mxu0 0.0
        %1698 = vmatmul.mubr.f32.gmra.mrb[0].mxu0 %v1240
        %v1699 = vpop.f32.mrb[0].mxu0
        %v1700 = vadd.f32 0.0, %v1699
        %v1701 = vpop.f32.mrb[0].mxu0
        %v1702 = vadd.f32 0.0, %v1701
        %1703 = vdwg.mxu0
        %1704 = vmatprep.subr.mxu0 %v1182
        %1705 = vmatpush1.msra.mxu0 %v1181
        %1706 = vmatprep.subr.mxu0 %v1198
        %1707 = vmatpush1.msra.mxu0 %v1197
        %1708 = vmatprep.subr.mxu0 %v1214
        %1709 = vmatpush1.msra.mxu0 %v1213
        %1710 = vmatprep.subr.mxu0 %v1230
        %1711 = vmatpush1.msra.mxu0 %v1229
        %1712 = vmatprep.subr.mxu0 0.0
        %1713 = vmatpush1.msra.mxu0 0.0
        %1714 = vmatprep.subr.mxu0 0.0
        %1715 = vmatpush1.msra.mxu0 0.0
        %1716 = vmatprep.subr.mxu0 0.0
        %1717 = vmatpush1.msra.mxu0 0.0
        %1718 = vmatprep.subr.mxu0 0.0
        %1719 = vmatpush1.msra.mxu0 0.0
        %1720 = vmatprep.subr.mxu0 0.0
        %1721 = vmatpush1.msra.mxu0 0.0
        %1722 = vmatprep.subr.mxu0 0.0
        %1723 = vmatpush1.msra.mxu0 0.0
        %1724 = vmatprep.subr.mxu0 0.0
        %1725 = vmatpush1.msra.mxu0 0.0
        %1726 = vmatprep.subr.mxu0 0.0
        %1727 = vmatpush1.msra.mxu0 0.0
        %1728 = vmatprep.subr.mxu0 0.0
        %1729 = vmatpush1.msra.mxu0 0.0
        %1730 = vmatprep.subr.mxu0 0.0
        %1731 = vmatpush1.msra.mxu0 0.0
        %1732 = vmatprep.subr.mxu0 0.0
        %1733 = vmatpush1.msra.mxu0 0.0
        %1734 = vmatprep.subr.mxu0 0.0
        %1735 = vmatpush1.msra.mxu0 0.0
        %1736 = vmatprep.subr.mxu0 0.0
        %1737 = vmatpush1.msra.mxu0 0.0
        %1738 = vmatprep.subr.mxu0 0.0
        %1739 = vmatpush1.msra.mxu0 0.0
        %1740 = vmatprep.subr.mxu0 0.0
        %1741 = vmatpush1.msra.mxu0 0.0
        %1742 = vmatprep.subr.mxu0 0.0
        %1743 = vmatpush1.msra.mxu0 0.0
        %1744 = vmatprep.subr.mxu0 0.0
        %1745 = vmatpush1.msra.mxu0 0.0
        %1746 = vmatprep.subr.mxu0 0.0
        %1747 = vmatpush1.msra.mxu0 0.0
        %1748 = vmatprep.subr.mxu0 0.0
        %1749 = vmatpush1.msra.mxu0 0.0
        %1750 = vmatprep.subr.mxu0 0.0
        %1751 = vmatpush1.msra.mxu0 0.0
        %1752 = vmatprep.subr.mxu0 0.0
        %1753 = vmatpush1.msra.mxu0 0.0
        %1754 = vmatprep.subr.mxu0 0.0
        %1755 = vmatpush1.msra.mxu0 0.0
        %1756 = vmatprep.subr.mxu0 0.0
        %1757 = vmatpush1.msra.mxu0 0.0
        %1758 = vmatprep.subr.mxu0 0.0
        %1759 = vmatpush1.msra.mxu0 0.0
        %1760 = vmatprep.subr.mxu0 0.0
        %1761 = vmatpush1.msra.mxu0 0.0
        %1762 = vmatprep.subr.mxu0 0.0
        %1763 = vmatpush1.msra.mxu0 0.0
        %1764 = vmatprep.subr.mxu0 0.0
        %1765 = vmatpush1.msra.mxu0 0.0
        %1766 = vmatprep.subr.mxu0 0.0
        %1767 = vmatpush1.msra.mxu0 0.0
        %1768 = vmatprep.mubr.f32.mxu0 0.0
        %1769 = vmatmul.mubr.f32.gmra.mrb[0].mxu0 %v1237
        %v1770 = vpop.f32.mrb[0].mxu0
        %v1771 = vadd.f32 0.0, %v1770
        %v1772 = vpop.f32.mrb[0].mxu0
        %v1773 = vadd.f32 0.0, %v1772
        %1774 = vmatprep.mubr.f32.mxu0 0.0
        %1775 = vmatmul.mubr.f32.gmra.mrb[0].mxu0 %v1240
        %v1776 = vpop.f32.mrb[0].mxu0
        %v1777 = vadd.f32 0.0, %v1776
        %v1778 = vpop.f32.mrb[0].mxu0
        %v1779 = vadd.f32 0.0, %v1778
        %1780 = vdwg.mxu0
        %1781 = vmatprep.subr.mxu0 %v1184
        %1782 = vmatpush1.msra.mxu0 %v1183
        %1783 = vmatprep.subr.mxu0 %v1200
        %1784 = vmatpush1.msra.mxu0 %v1199
        %1785 = vmatprep.subr.mxu0 %v1216
        %1786 = vmatpush1.msra.mxu0 %v1215
        %1787 = vmatprep.subr.mxu0 %v1232
        %1788 = vmatpush1.msra.mxu0 %v1231
        %1789 = vmatprep.subr.mxu0 0.0
        %1790 = vmatpush1.msra.mxu0 0.0
        %1791 = vmatprep.subr.mxu0 0.0
        %1792 = vmatpush1.msra.mxu0 0.0
        %1793 = vmatprep.subr.mxu0 0.0
        %1794 = vmatpush1.msra.mxu0 0.0
        %1795 = vmatprep.subr.mxu0 0.0
        %1796 = vmatpush1.msra.mxu0 0.0
        %1797 = vmatprep.subr.mxu0 0.0
        %1798 = vmatpush1.msra.mxu0 0.0
        %1799 = vmatprep.subr.mxu0 0.0
        %1800 = vmatpush1.msra.mxu0 0.0
        %1801 = vmatprep.subr.mxu0 0.0
        %1802 = vmatpush1.msra.mxu0 0.0
        %1803 = vmatprep.subr.mxu0 0.0
        %1804 = vmatpush1.msra.mxu0 0.0
        %1805 = vmatprep.subr.mxu0 0.0
        %1806 = vmatpush1.msra.mxu0 0.0
        %1807 = vmatprep.subr.mxu0 0.0
        %1808 = vmatpush1.msra.mxu0 0.0
        %1809 = vmatprep.subr.mxu0 0.0
        %1810 = vmatpush1.msra.mxu0 0.0
        %1811 = vmatprep.subr.mxu0 0.0
        %1812 = vmatpush1.msra.mxu0 0.0
        %1813 = vmatprep.subr.mxu0 0.0
        %1814 = vmatpush1.msra.mxu0 0.0
        %1815 = vmatprep.subr.mxu0 0.0
        %1816 = vmatpush1.msra.mxu0 0.0
        %1817 = vmatprep.subr.mxu0 0.0
        %1818 = vmatpush1.msra.mxu0 0.0
        %1819 = vmatprep.subr.mxu0 0.0
        %1820 = vmatpush1.msra.mxu0 0.0
        %1821 = vmatprep.subr.mxu0 0.0
        %1822 = vmatpush1.msra.mxu0 0.0
        %1823 = vmatprep.subr.mxu0 0.0
        %1824 = vmatpush1.msra.mxu0 0.0
        %1825 = vmatprep.subr.mxu0 0.0
        %1826 = vmatpush1.msra.mxu0 0.0
        %1827 = vmatprep.subr.mxu0 0.0
        %1828 = vmatpush1.msra.mxu0 0.0
        %1829 = vmatprep.subr.mxu0 0.0
        %1830 = vmatpush1.msra.mxu0 0.0
        %1831 = vmatprep.subr.mxu0 0.0
        %1832 = vmatpush1.msra.mxu0 0.0
        %1833 = vmatprep.subr.mxu0 0.0
        %1834 = vmatpush1.msra.mxu0 0.0
        %1835 = vmatprep.subr.mxu0 0.0
        %1836 = vmatpush1.msra.mxu0 0.0
        %1837 = vmatprep.subr.mxu0 0.0
        %1838 = vmatpush1.msra.mxu0 0.0
        %1839 = vmatprep.subr.mxu0 0.0
        %1840 = vmatpush1.msra.mxu0 0.0
        %1841 = vmatprep.subr.mxu0 0.0
        %1842 = vmatpush1.msra.mxu0 0.0
        %1843 = vmatprep.subr.mxu0 0.0
        %1844 = vmatpush1.msra.mxu0 0.0
        %1845 = vmatprep.mubr.f32.mxu0 0.0
        %1846 = vmatmul.mubr.f32.gmra.mrb[0].mxu0 %v1237
        %v1847 = vpop.f32.mrb[0].mxu0
        %v1848 = vadd.f32 0.0, %v1847
        %v1849 = vpop.f32.mrb[0].mxu0
        %v1850 = vadd.f32 0.0, %v1849
        %1851 = vmatprep.mubr.f32.mxu0 0.0
        %1852 = vmatmul.mubr.f32.gmra.mrb[0].mxu0 %v1240
        %v1853 = vpop.f32.mrb[0].mxu0
        %v1854 = vadd.f32 0.0, %v1853
        %v1855 = vpop.f32.mrb[0].mxu0
        %v1856 = vadd.f32 0.0, %v1855
        %1857 = vdwg.mxu0
        %1858 = vst [vmem:[%s293] sm:$0xff] %v1309
        %1859 = vst [vmem:[%s293 + $0x8] sm:$0xff] %v1311
        %1860 = vst [vmem:[%s293 + $0x10] sm:$0xff] %v1386
        %1861 = vst [vmem:[%s293 + $0x18] sm:$0xff] %v1388
        %1862 = vst [vmem:[%s293 + $0x20] sm:$0xff] %v1463
        %1863 = vst [vmem:[%s293 + $0x28] sm:$0xff] %v1465
        %1864 = vst [vmem:[%s293 + $0x30] sm:$0xff] %v1540
        %1865 = vst [vmem:[%s293 + $0x38] sm:$0xff] %v1542
        %1866 = vst [vmem:[%s293 + $0x40] sm:$0xff] %v1617
        %1867 = vst [vmem:[%s293 + $0x48] sm:$0xff] %v1619
        %1868 = vst [vmem:[%s293 + $0x50] sm:$0xff] %v1694
        %1869 = vst [vmem:[%s293 + $0x58] sm:$0xff] %v1696
        %1870 = vst [vmem:[%s293 + $0x60] sm:$0xff] %v1771
        %1871 = vst [vmem:[%s293 + $0x68] sm:$0xff] %v1773
        %1872 = vst [vmem:[%s293 + $0x70] sm:$0xff] %v1848
        %1873 = vst [vmem:[%s293 + $0x78] sm:$0xff] %v1850
        %1874 = vst [vmem:[%s293 + $0x80] sm:$0x1] %v1315
        %1875 = vst [vmem:[%s293 + $0x88] sm:$0x1] %v1317
        %1876 = vst [vmem:[%s293 + $0x90] sm:$0x1] %v1392
        %1877 = vst [vmem:[%s293 + $0x98] sm:$0x1] %v1394
        %1878 = vst [vmem:[%s293 + $0xa0] sm:$0x1] %v1469
        %1879 = vst [vmem:[%s293 + $0xa8] sm:$0x1] %v1471
        %1880 = vst [vmem:[%s293 + $0xb0] sm:$0x1] %v1546
        %1881 = vst [vmem:[%s293 + $0xb8] sm:$0x1] %v1548
        %1882 = vst [vmem:[%s293 + $0xc0] sm:$0x1] %v1623
        %1883 = vst [vmem:[%s293 + $0xc8] sm:$0x1] %v1625
        %1884 = vst [vmem:[%s293 + $0xd0] sm:$0x1] %v1700
        %1885 = vst [vmem:[%s293 + $0xd8] sm:$0x1] %v1702
        %1886 = vst [vmem:[%s293 + $0xe0] sm:$0x1] %v1777
        %1887 = vst [vmem:[%s293 + $0xe8] sm:$0x1] %v1779
        %1888 = vst [vmem:[%s293 + $0xf0] sm:$0x1] %v1854
        %1889 = vst [vmem:[%s293 + $0xf8] sm:$0x1] %v1856
        %v1890 = vld [vmem:[%s3] sm:$0x7]
        %v1892 = vsel %vm1235, %v1890, 0
        %1894 = vmatprep.subr.mxu0 %v1042
        %1895 = vmatpush1.msra.mxu0 %v1041
        %1896 = vmatprep.subr.mxu0 %v1058
        %1897 = vmatpush1.msra.mxu0 %v1057
        %1898 = vmatprep.subr.mxu0 %v1074
        %1899 = vmatpush1.msra.mxu0 %v1073
        %1900 = vmatprep.subr.mxu0 %v1090
        %1901 = vmatpush1.msra.mxu0 %v1089
        %1902 = vmatprep.subr.mxu0 0.0
        %1903 = vmatpush1.msra.mxu0 0.0
        %1904 = vmatprep.subr.mxu0 0.0
        %1905 = vmatpush1.msra.mxu0 0.0
        %1906 = vmatprep.subr.mxu0 0.0
        %1907 = vmatpush1.msra.mxu0 0.0
        %1908 = vmatprep.subr.mxu0 0.0
        %1909 = vmatpush1.msra.mxu0 0.0
        %1910 = vmatprep.subr.mxu0 0.0
        %1911 = vmatpush1.msra.mxu0 0.0
        %1912 = vmatprep.subr.mxu0 0.0
        %1913 = vmatpush1.msra.mxu0 0.0
        %1914 = vmatprep.subr.mxu0 0.0
        %1915 = vmatpush1.msra.mxu0 0.0
        %1916 = vmatprep.subr.mxu0 0.0
        %1917 = vmatpush1.msra.mxu0 0.0
        %1918 = vmatprep.subr.mxu0 0.0
        %1919 = vmatpush1.msra.mxu0 0.0
        %1920 = vmatprep.subr.mxu0 0.0
        %1921 = vmatpush1.msra.mxu0 0.0
        %1922 = vmatprep.subr.mxu0 0.0
        %1923 = vmatpush1.msra.mxu0 0.0
        %1924 = vmatprep.subr.mxu0 0.0
        %1925 = vmatpush1.msra.mxu0 0.0
        %1926 = vmatprep.subr.mxu0 0.0
        %1927 = vmatpush1.msra.mxu0 0.0
        %1928 = vmatprep.subr.mxu0 0.0
        %1929 = vmatpush1.msra.mxu0 0.0
        %1930 = vmatprep.subr.mxu0 0.0
        %1931 = vmatpush1.msra.mxu0 0.0
        %1932 = vmatprep.subr.mxu0 0.0
        %1933 = vmatpush1.msra.mxu0 0.0
        %1934 = vmatprep.subr.mxu0 0.0
        %1935 = vmatpush1.msra.mxu0 0.0
        %1936 = vmatprep.subr.mxu0 0.0
        %1937 = vmatpush1.msra.mxu0 0.0
        %1938 = vmatprep.subr.mxu0 0.0
        %1939 = vmatpush1.msra.mxu0 0.0
        %1940 = vmatprep.subr.mxu0 0.0
        %1941 = vmatpush1.msra.mxu0 0.0
        %1942 = vmatprep.subr.mxu0 0.0
        %1943 = vmatpush1.msra.mxu0 0.0
        %1944 = vmatprep.subr.mxu0 0.0
        %1945 = vmatpush1.msra.mxu0 0.0
        %1946 = vmatprep.subr.mxu0 0.0
        %1947 = vmatpush1.msra.mxu0 0.0
        %1948 = vmatprep.subr.mxu0 0.0
        %1949 = vmatpush1.msra.mxu0 0.0
        %1950 = vmatprep.subr.mxu0 0.0
        %1951 = vmatpush1.msra.mxu0 0.0
        %1952 = vmatprep.subr.mxu0 0.0
        %1953 = vmatpush1.msra.mxu0 0.0
        %1954 = vmatprep.subr.mxu0 0.0
        %1955 = vmatpush1.msra.mxu0 0.0
        %1956 = vmatprep.subr.mxu0 0.0
        %1957 = vmatpush1.msra.mxu0 0.0
        %1958 = vmatprep.mubr.f32.mxu0 0.0
        %1959 = vmatmul.mubr.f32.gmra.mrb[0].mxu0 %v1892
        %v1960 = vpop.f32.mrb[0].mxu0
        %v1961 = vadd.f32 0.0, %v1960
        %v1962 = vpop.f32.mrb[0].mxu0
        %v1963 = vadd.f32 0.0, %v1962
        %1964 = vdwg.mxu0
        %1965 = vmatprep.subr.mxu0 %v1044
        %1966 = vmatpush1.msra.mxu0 %v1043
        %1967 = vmatprep.subr.mxu0 %v1060
        %1968 = vmatpush1.msra.mxu0 %v1059
        %1969 = vmatprep.subr.mxu0 %v1076
        %1970 = vmatpush1.msra.mxu0 %v1075
        %1971 = vmatprep.subr.mxu0 %v1092
        %1972 = vmatpush1.msra.mxu0 %v1091
        %1973 = vmatprep.subr.mxu0 0.0
        %1974 = vmatpush1.msra.mxu0 0.0
        %1975 = vmatprep.subr.mxu0 0.0
        %1976 = vmatpush1.msra.mxu0 0.0
        %1977 = vmatprep.subr.mxu0 0.0
        %1978 = vmatpush1.msra.mxu0 0.0
        %1979 = vmatprep.subr.mxu0 0.0
        %1980 = vmatpush1.msra.mxu0 0.0
        %1981 = vmatprep.subr.mxu0 0.0
        %1982 = vmatpush1.msra.mxu0 0.0
        %1983 = vmatprep.subr.mxu0 0.0
        %1984 = vmatpush1.msra.mxu0 0.0
        %1985 = vmatprep.subr.mxu0 0.0
        %1986 = vmatpush1.msra.mxu0 0.0
        %1987 = vmatprep.subr.mxu0 0.0
        %1988 = vmatpush1.msra.mxu0 0.0
        %1989 = vmatprep.subr.mxu0 0.0
        %1990 = vmatpush1.msra.mxu0 0.0
        %1991 = vmatprep.subr.mxu0 0.0
        %1992 = vmatpush1.msra.mxu0 0.0
        %1993 = vmatprep.subr.mxu0 0.0
        %1994 = vmatpush1.msra.mxu0 0.0
        %1995 = vmatprep.subr.mxu0 0.0
        %1996 = vmatpush1.msra.mxu0 0.0
        %1997 = vmatprep.subr.mxu0 0.0
        %1998 = vmatpush1.msra.mxu0 0.0
        %1999 = vmatprep.subr.mxu0 0.0
        %2000 = vmatpush1.msra.mxu0 0.0
        %2001 = vmatprep.subr.mxu0 0.0
        %2002 = vmatpush1.msra.mxu0 0.0
        %2003 = vmatprep.subr.mxu0 0.0
        %2004 = vmatpush1.msra.mxu0 0.0
        %2005 = vmatprep.subr.mxu0 0.0
        %2006 = vmatpush1.msra.mxu0 0.0
        %2007 = vmatprep.subr.mxu0 0.0
        %2008 = vmatpush1.msra.mxu0 0.0
        %2009 = vmatprep.subr.mxu0 0.0
        %2010 = vmatpush1.msra.mxu0 0.0
        %2011 = vmatprep.subr.mxu0 0.0
        %2012 = vmatpush1.msra.mxu0 0.0
        %2013 = vmatprep.subr.mxu0 0.0
        %2014 = vmatpush1.msra.mxu0 0.0
        %2015 = vmatprep.subr.mxu0 0.0
        %2016 = vmatpush1.msra.mxu0 0.0
        %2017 = vmatprep.subr.mxu0 0.0
        %2018 = vmatpush1.msra.mxu0 0.0
        %2019 = vmatprep.subr.mxu0 0.0
        %2020 = vmatpush1.msra.mxu0 0.0
        %2021 = vmatprep.subr.mxu0 0.0
        %2022 = vmatpush1.msra.mxu0 0.0
        %2023 = vmatprep.subr.mxu0 0.0
        %2024 = vmatpush1.msra.mxu0 0.0
        %2025 = vmatprep.subr.mxu0 0.0
        %2026 = vmatpush1.msra.mxu0 0.0
        %2027 = vmatprep.subr.mxu0 0.0
        %2028 = vmatpush1.msra.mxu0 0.0
        %2029 = vmatprep.mubr.f32.mxu0 0.0
        %2030 = vmatmul.mubr.f32.gmra.mrb[0].mxu0 %v1892
        %v2031 = vpop.f32.mrb[0].mxu0
        %v2032 = vadd.f32 0.0, %v2031
        %v2033 = vpop.f32.mrb[0].mxu0
        %v2034 = vadd.f32 0.0, %v2033
        %2035 = vdwg.mxu0
        %2036 = vmatprep.subr.mxu0 %v1046
        %2037 = vmatpush1.msra.mxu0 %v1045
        %2038 = vmatprep.subr.mxu0 %v1062
        %2039 = vmatpush1.msra.mxu0 %v1061
        %2040 = vmatprep.subr.mxu0 %v1078
        %2041 = vmatpush1.msra.mxu0 %v1077
        %2042 = vmatprep.subr.mxu0 %v1094
        %2043 = vmatpush1.msra.mxu0 %v1093
        %2044 = vmatprep.subr.mxu0 0.0
        %2045 = vmatpush1.msra.mxu0 0.0
        %2046 = vmatprep.subr.mxu0 0.0
        %2047 = vmatpush1.msra.mxu0 0.0
        %2048 = vmatprep.subr.mxu0 0.0
        %2049 = vmatpush1.msra.mxu0 0.0
        %2050 = vmatprep.subr.mxu0 0.0
        %2051 = vmatpush1.msra.mxu0 0.0
        %2052 = vmatprep.subr.mxu0 0.0
        %2053 = vmatpush1.msra.mxu0 0.0
        %2054 = vmatprep.subr.mxu0 0.0
        %2055 = vmatpush1.msra.mxu0 0.0
        %2056 = vmatprep.subr.mxu0 0.0
        %2057 = vmatpush1.msra.mxu0 0.0
        %2058 = vmatprep.subr.mxu0 0.0
        %2059 = vmatpush1.msra.mxu0 0.0
        %2060 = vmatprep.subr.mxu0 0.0
        %2061 = vmatpush1.msra.mxu0 0.0
        %2062 = vmatprep.subr.mxu0 0.0
        %2063 = vmatpush1.msra.mxu0 0.0
        %2064 = vmatprep.subr.mxu0 0.0
        %2065 = vmatpush1.msra.mxu0 0.0
        %2066 = vmatprep.subr.mxu0 0.0
        %2067 = vmatpush1.msra.mxu0 0.0
        %2068 = vmatprep.subr.mxu0 0.0
        %2069 = vmatpush1.msra.mxu0 0.0
        %2070 = vmatprep.subr.mxu0 0.0
        %2071 = vmatpush1.msra.mxu0 0.0
        %2072 = vmatprep.subr.mxu0 0.0
        %2073 = vmatpush1.msra.mxu0 0.0
        %2074 = vmatprep.subr.mxu0 0.0
        %2075 = vmatpush1.msra.mxu0 0.0
        %2076 = vmatprep.subr.mxu0 0.0
        %2077 = vmatpush1.msra.mxu0 0.0
        %2078 = vmatprep.subr.mxu0 0.0
        %2079 = vmatpush1.msra.mxu0 0.0
        %2080 = vmatprep.subr.mxu0 0.0
        %2081 = vmatpush1.msra.mxu0 0.0
        %2082 = vmatprep.subr.mxu0 0.0
        %2083 = vmatpush1.msra.mxu0 0.0
        %2084 = vmatprep.subr.mxu0 0.0
        %2085 = vmatpush1.msra.mxu0 0.0
        %2086 = vmatprep.subr.mxu0 0.0
        %2087 = vmatpush1.msra.mxu0 0.0
        %2088 = vmatprep.subr.mxu0 0.0
        %2089 = vmatpush1.msra.mxu0 0.0
        %2090 = vmatprep.subr.mxu0 0.0
        %2091 = vmatpush1.msra.mxu0 0.0
        %2092 = vmatprep.subr.mxu0 0.0
        %2093 = vmatpush1.msra.mxu0 0.0
        %2094 = vmatprep.subr.mxu0 0.0
        %2095 = vmatpush1.msra.mxu0 0.0
        %2096 = vmatprep.subr.mxu0 0.0
        %2097 = vmatpush1.msra.mxu0 0.0
        %2098 = vmatprep.subr.mxu0 0.0
        %2099 = vmatpush1.msra.mxu0 0.0
        %2100 = vmatprep.mubr.f32.mxu0 0.0
        %2101 = vmatmul.mubr.f32.gmra.mrb[0].mxu0 %v1892
        %v2102 = vpop.f32.mrb[0].mxu0
        %v2103 = vadd.f32 0.0, %v2102
        %v2104 = vpop.f32.mrb[0].mxu0
        %v2105 = vadd.f32 0.0, %v2104
        %2106 = vdwg.mxu0
        %2107 = vmatprep.subr.mxu0 %v1048
        %2108 = vmatpush1.msra.mxu0 %v1047
        %2109 = vmatprep.subr.mxu0 %v1064
        %2110 = vmatpush1.msra.mxu0 %v1063
        %2111 = vmatprep.subr.mxu0 %v1080
        %2112 = vmatpush1.msra.mxu0 %v1079
        %2113 = vmatprep.subr.mxu0 %v1096
        %2114 = vmatpush1.msra.mxu0 %v1095
        %2115 = vmatprep.subr.mxu0 0.0
        %2116 = vmatpush1.msra.mxu0 0.0
        %2117 = vmatprep.subr.mxu0 0.0
        %2118 = vmatpush1.msra.mxu0 0.0
        %2119 = vmatprep.subr.mxu0 0.0
        %2120 = vmatpush1.msra.mxu0 0.0
        %2121 = vmatprep.subr.mxu0 0.0
        %2122 = vmatpush1.msra.mxu0 0.0
        %2123 = vmatprep.subr.mxu0 0.0
        %2124 = vmatpush1.msra.mxu0 0.0
        %2125 = vmatprep.subr.mxu0 0.0
        %2126 = vmatpush1.msra.mxu0 0.0
        %2127 = vmatprep.subr.mxu0 0.0
        %2128 = vmatpush1.msra.mxu0 0.0
        %2129 = vmatprep.subr.mxu0 0.0
        %2130 = vmatpush1.msra.mxu0 0.0
        %2131 = vmatprep.subr.mxu0 0.0
        %2132 = vmatpush1.msra.mxu0 0.0
        %2133 = vmatprep.subr.mxu0 0.0
        %2134 = vmatpush1.msra.mxu0 0.0
        %2135 = vmatprep.subr.mxu0 0.0
        %2136 = vmatpush1.msra.mxu0 0.0
        %2137 = vmatprep.subr.mxu0 0.0
        %2138 = vmatpush1.msra.mxu0 0.0
        %2139 = vmatprep.subr.mxu0 0.0
        %2140 = vmatpush1.msra.mxu0 0.0
        %2141 = vmatprep.subr.mxu0 0.0
        %2142 = vmatpush1.msra.mxu0 0.0
        %2143 = vmatprep.subr.mxu0 0.0
        %2144 = vmatpush1.msra.mxu0 0.0
        %2145 = vmatprep.subr.mxu0 0.0
        %2146 = vmatpush1.msra.mxu0 0.0
        %2147 = vmatprep.subr.mxu0 0.0
        %2148 = vmatpush1.msra.mxu0 0.0
        %2149 = vmatprep.subr.mxu0 0.0
        %2150 = vmatpush1.msra.mxu0 0.0
        %2151 = vmatprep.subr.mxu0 0.0
        %2152 = vmatpush1.msra.mxu0 0.0
        %2153 = vmatprep.subr.mxu0 0.0
        %2154 = vmatpush1.msra.mxu0 0.0
        %2155 = vmatprep.subr.mxu0 0.0
        %2156 = vmatpush1.msra.mxu0 0.0
        %2157 = vmatprep.subr.mxu0 0.0
        %2158 = vmatpush1.msra.mxu0 0.0
        %2159 = vmatprep.subr.mxu0 0.0
        %2160 = vmatpush1.msra.mxu0 0.0
        %2161 = vmatprep.subr.mxu0 0.0
        %2162 = vmatpush1.msra.mxu0 0.0
        %2163 = vmatprep.subr.mxu0 0.0
        %2164 = vmatpush1.msra.mxu0 0.0
        %2165 = vmatprep.subr.mxu0 0.0
        %2166 = vmatpush1.msra.mxu0 0.0
        %2167 = vmatprep.subr.mxu0 0.0
        %2168 = vmatpush1.msra.mxu0 0.0
        %2169 = vmatprep.subr.mxu0 0.0
        %2170 = vmatpush1.msra.mxu0 0.0
        %2171 = vmatprep.mubr.f32.mxu0 0.0
        %2172 = vmatmul.mubr.f32.gmra.mrb[0].mxu0 %v1892
        %v2173 = vpop.f32.mrb[0].mxu0
        %v2174 = vadd.f32 0.0, %v2173
        %v2175 = vpop.f32.mrb[0].mxu0
        %v2176 = vadd.f32 0.0, %v2175
        %2177 = vdwg.mxu0
        %2178 = vmatprep.subr.mxu0 %v1050
        %2179 = vmatpush1.msra.mxu0 %v1049
        %2180 = vmatprep.subr.mxu0 %v1066
        %2181 = vmatpush1.msra.mxu0 %v1065
        %2182 = vmatprep.subr.mxu0 %v1082
        %2183 = vmatpush1.msra.mxu0 %v1081
        %2184 = vmatprep.subr.mxu0 %v1098
        %2185 = vmatpush1.msra.mxu0 %v1097
        %2186 = vmatprep.subr.mxu0 0.0
        %2187 = vmatpush1.msra.mxu0 0.0
        %2188 = vmatprep.subr.mxu0 0.0
        %2189 = vmatpush1.msra.mxu0 0.0
        %2190 = vmatprep.subr.mxu0 0.0
        %2191 = vmatpush1.msra.mxu0 0.0
        %2192 = vmatprep.subr.mxu0 0.0
        %2193 = vmatpush1.msra.mxu0 0.0
        %2194 = vmatprep.subr.mxu0 0.0
        %2195 = vmatpush1.msra.mxu0 0.0
        %2196 = vmatprep.subr.mxu0 0.0
        %2197 = vmatpush1.msra.mxu0 0.0
        %2198 = vmatprep.subr.mxu0 0.0
        %2199 = vmatpush1.msra.mxu0 0.0
        %2200 = vmatprep.subr.mxu0 0.0
        %2201 = vmatpush1.msra.mxu0 0.0
        %2202 = vmatprep.subr.mxu0 0.0
        %2203 = vmatpush1.msra.mxu0 0.0
        %2204 = vmatprep.subr.mxu0 0.0
        %2205 = vmatpush1.msra.mxu0 0.0
        %2206 = vmatprep.subr.mxu0 0.0
        %2207 = vmatpush1.msra.mxu0 0.0
        %2208 = vmatprep.subr.mxu0 0.0
        %2209 = vmatpush1.msra.mxu0 0.0
        %2210 = vmatprep.subr.mxu0 0.0
        %2211 = vmatpush1.msra.mxu0 0.0
        %2212 = vmatprep.subr.mxu0 0.0
        %2213 = vmatpush1.msra.mxu0 0.0
        %2214 = vmatprep.subr.mxu0 0.0
        %2215 = vmatpush1.msra.mxu0 0.0
        %2216 = vmatprep.subr.mxu0 0.0
        %2217 = vmatpush1.msra.mxu0 0.0
        %2218 = vmatprep.subr.mxu0 0.0
        %2219 = vmatpush1.msra.mxu0 0.0
        %2220 = vmatprep.subr.mxu0 0.0
        %2221 = vmatpush1.msra.mxu0 0.0
        %2222 = vmatprep.subr.mxu0 0.0
        %2223 = vmatpush1.msra.mxu0 0.0
        %2224 = vmatprep.subr.mxu0 0.0
        %2225 = vmatpush1.msra.mxu0 0.0
        %2226 = vmatprep.subr.mxu0 0.0
        %2227 = vmatpush1.msra.mxu0 0.0
        %2228 = vmatprep.subr.mxu0 0.0
        %2229 = vmatpush1.msra.mxu0 0.0
        %2230 = vmatprep.subr.mxu0 0.0
        %2231 = vmatpush1.msra.mxu0 0.0
        %2232 = vmatprep.subr.mxu0 0.0
        %2233 = vmatpush1.msra.mxu0 0.0
        %2234 = vmatprep.subr.mxu0 0.0
        %2235 = vmatpush1.msra.mxu0 0.0
        %2236 = vmatprep.subr.mxu0 0.0
        %2237 = vmatpush1.msra.mxu0 0.0
        %2238 = vmatprep.subr.mxu0 0.0
        %2239 = vmatpush1.msra.mxu0 0.0
        %2240 = vmatprep.subr.mxu0 0.0
        %2241 = vmatpush1.msra.mxu0 0.0
        %2242 = vmatprep.mubr.f32.mxu0 0.0
        %2243 = vmatmul.mubr.f32.gmra.mrb[0].mxu0 %v1892
        %v2244 = vpop.f32.mrb[0].mxu0
        %v2245 = vadd.f32 0.0, %v2244
        %v2246 = vpop.f32.mrb[0].mxu0
        %v2247 = vadd.f32 0.0, %v2246
        %2248 = vdwg.mxu0
        %2249 = vmatprep.subr.mxu0 %v1052
        %2250 = vmatpush1.msra.mxu0 %v1051
        %2251 = vmatprep.subr.mxu0 %v1068
        %2252 = vmatpush1.msra.mxu0 %v1067
        %2253 = vmatprep.subr.mxu0 %v1084
        %2254 = vmatpush1.msra.mxu0 %v1083
        %2255 = vmatprep.subr.mxu0 %v1100
        %2256 = vmatpush1.msra.mxu0 %v1099
        %2257 = vmatprep.subr.mxu0 0.0
        %2258 = vmatpush1.msra.mxu0 0.0
        %2259 = vmatprep.subr.mxu0 0.0
        %2260 = vmatpush1.msra.mxu0 0.0
        %2261 = vmatprep.subr.mxu0 0.0
        %2262 = vmatpush1.msra.mxu0 0.0
        %2263 = vmatprep.subr.mxu0 0.0
        %2264 = vmatpush1.msra.mxu0 0.0
        %2265 = vmatprep.subr.mxu0 0.0
        %2266 = vmatpush1.msra.mxu0 0.0
        %2267 = vmatprep.subr.mxu0 0.0
        %2268 = vmatpush1.msra.mxu0 0.0
        %2269 = vmatprep.subr.mxu0 0.0
        %2270 = vmatpush1.msra.mxu0 0.0
        %2271 = vmatprep.subr.mxu0 0.0
        %2272 = vmatpush1.msra.mxu0 0.0
        %2273 = vmatprep.subr.mxu0 0.0
        %2274 = vmatpush1.msra.mxu0 0.0
        %2275 = vmatprep.subr.mxu0 0.0
        %2276 = vmatpush1.msra.mxu0 0.0
        %2277 = vmatprep.subr.mxu0 0.0
        %2278 = vmatpush1.msra.mxu0 0.0
        %2279 = vmatprep.subr.mxu0 0.0
        %2280 = vmatpush1.msra.mxu0 0.0
        %2281 = vmatprep.subr.mxu0 0.0
        %2282 = vmatpush1.msra.mxu0 0.0
        %2283 = vmatprep.subr.mxu0 0.0
        %2284 = vmatpush1.msra.mxu0 0.0
        %2285 = vmatprep.subr.mxu0 0.0
        %2286 = vmatpush1.msra.mxu0 0.0
        %2287 = vmatprep.subr.mxu0 0.0
        %2288 = vmatpush1.msra.mxu0 0.0
        %2289 = vmatprep.subr.mxu0 0.0
        %2290 = vmatpush1.msra.mxu0 0.0
        %2291 = vmatprep.subr.mxu0 0.0
        %2292 = vmatpush1.msra.mxu0 0.0
        %2293 = vmatprep.subr.mxu0 0.0
        %2294 = vmatpush1.msra.mxu0 0.0
        %2295 = vmatprep.subr.mxu0 0.0
        %2296 = vmatpush1.msra.mxu0 0.0
        %2297 = vmatprep.subr.mxu0 0.0
        %2298 = vmatpush1.msra.mxu0 0.0
        %2299 = vmatprep.subr.mxu0 0.0
        %2300 = vmatpush1.msra.mxu0 0.0
        %2301 = vmatprep.subr.mxu0 0.0
        %2302 = vmatpush1.msra.mxu0 0.0
        %2303 = vmatprep.subr.mxu0 0.0
        %2304 = vmatpush1.msra.mxu0 0.0
        %2305 = vmatprep.subr.mxu0 0.0
        %2306 = vmatpush1.msra.mxu0 0.0
        %2307 = vmatprep.subr.mxu0 0.0
        %2308 = vmatpush1.msra.mxu0 0.0
        %2309 = vmatprep.subr.mxu0 0.0
        %2310 = vmatpush1.msra.mxu0 0.0
        %2311 = vmatprep.subr.mxu0 0.0
        %2312 = vmatpush1.msra.mxu0 0.0
        %2313 = vmatprep.mubr.f32.mxu0 0.0
        %2314 = vmatmul.mubr.f32.gmra.mrb[0].mxu0 %v1892
        %v2315 = vpop.f32.mrb[0].mxu0
        %v2316 = vadd.f32 0.0, %v2315
        %v2317 = vpop.f32.mrb[0].mxu0
        %v2318 = vadd.f32 0.0, %v2317
        %2319 = vdwg.mxu0
        %2320 = vmatprep.subr.mxu0 %v1054
        %2321 = vmatpush1.msra.mxu0 %v1053
        %2322 = vmatprep.subr.mxu0 %v1070
        %2323 = vmatpush1.msra.mxu0 %v1069
        %2324 = vmatprep.subr.mxu0 %v1086
        %2325 = vmatpush1.msra.mxu0 %v1085
        %2326 = vmatprep.subr.mxu0 %v1102
        %2327 = vmatpush1.msra.mxu0 %v1101
        %2328 = vmatprep.subr.mxu0 0.0
        %2329 = vmatpush1.msra.mxu0 0.0
        %2330 = vmatprep.subr.mxu0 0.0
        %2331 = vmatpush1.msra.mxu0 0.0
        %2332 = vmatprep.subr.mxu0 0.0
        %2333 = vmatpush1.msra.mxu0 0.0
        %2334 = vmatprep.subr.mxu0 0.0
        %2335 = vmatpush1.msra.mxu0 0.0
        %2336 = vmatprep.subr.mxu0 0.0
        %2337 = vmatpush1.msra.mxu0 0.0
        %2338 = vmatprep.subr.mxu0 0.0
        %2339 = vmatpush1.msra.mxu0 0.0
        %2340 = vmatprep.subr.mxu0 0.0
        %2341 = vmatpush1.msra.mxu0 0.0
        %2342 = vmatprep.subr.mxu0 0.0
        %2343 = vmatpush1.msra.mxu0 0.0
        %2344 = vmatprep.subr.mxu0 0.0
        %2345 = vmatpush1.msra.mxu0 0.0
        %2346 = vmatprep.subr.mxu0 0.0
        %2347 = vmatpush1.msra.mxu0 0.0
        %2348 = vmatprep.subr.mxu0 0.0
        %2349 = vmatpush1.msra.mxu0 0.0
        %2350 = vmatprep.subr.mxu0 0.0
        %2351 = vmatpush1.msra.mxu0 0.0
        %2352 = vmatprep.subr.mxu0 0.0
        %2353 = vmatpush1.msra.mxu0 0.0
        %2354 = vmatprep.subr.mxu0 0.0
        %2355 = vmatpush1.msra.mxu0 0.0
        %2356 = vmatprep.subr.mxu0 0.0
        %2357 = vmatpush1.msra.mxu0 0.0
        %2358 = vmatprep.subr.mxu0 0.0
        %2359 = vmatpush1.msra.mxu0 0.0
        %2360 = vmatprep.subr.mxu0 0.0
        %2361 = vmatpush1.msra.mxu0 0.0
        %2362 = vmatprep.subr.mxu0 0.0
        %2363 = vmatpush1.msra.mxu0 0.0
        %2364 = vmatprep.subr.mxu0 0.0
        %2365 = vmatpush1.msra.mxu0 0.0
        %2366 = vmatprep.subr.mxu0 0.0
        %2367 = vmatpush1.msra.mxu0 0.0
        %2368 = vmatprep.subr.mxu0 0.0
        %2369 = vmatpush1.msra.mxu0 0.0
        %2370 = vmatprep.subr.mxu0 0.0
        %2371 = vmatpush1.msra.mxu0 0.0
        %2372 = vmatprep.subr.mxu0 0.0
        %2373 = vmatpush1.msra.mxu0 0.0
        %2374 = vmatprep.subr.mxu0 0.0
        %2375 = vmatpush1.msra.mxu0 0.0
        %2376 = vmatprep.subr.mxu0 0.0
        %2377 = vmatpush1.msra.mxu0 0.0
        %2378 = vmatprep.subr.mxu0 0.0
        %2379 = vmatpush1.msra.mxu0 0.0
        %2380 = vmatprep.subr.mxu0 0.0
        %2381 = vmatpush1.msra.mxu0 0.0
        %2382 = vmatprep.subr.mxu0 0.0
        %2383 = vmatpush1.msra.mxu0 0.0
        %2384 = vmatprep.mubr.f32.mxu0 0.0
        %2385 = vmatmul.mubr.f32.gmra.mrb[0].mxu0 %v1892
        %v2386 = vpop.f32.mrb[0].mxu0
        %v2387 = vadd.f32 0.0, %v2386
        %v2388 = vpop.f32.mrb[0].mxu0
        %v2389 = vadd.f32 0.0, %v2388
        %2390 = vdwg.mxu0
        %2391 = vmatprep.subr.mxu0 %v1056
        %2392 = vmatpush1.msra.mxu0 %v1055
        %2393 = vmatprep.subr.mxu0 %v1072
        %2394 = vmatpush1.msra.mxu0 %v1071
        %2395 = vmatprep.subr.mxu0 %v1088
        %2396 = vmatpush1.msra.mxu0 %v1087
        %2397 = vmatprep.subr.mxu0 %v1104
        %2398 = vmatpush1.msra.mxu0 %v1103
        %2399 = vmatprep.subr.mxu0 0.0
        %2400 = vmatpush1.msra.mxu0 0.0
        %2401 = vmatprep.subr.mxu0 0.0
        %2402 = vmatpush1.msra.mxu0 0.0
        %2403 = vmatprep.subr.mxu0 0.0
        %2404 = vmatpush1.msra.mxu0 0.0
        %2405 = vmatprep.subr.mxu0 0.0
        %2406 = vmatpush1.msra.mxu0 0.0
        %2407 = vmatprep.subr.mxu0 0.0
        %2408 = vmatpush1.msra.mxu0 0.0
        %2409 = vmatprep.subr.mxu0 0.0
        %2410 = vmatpush1.msra.mxu0 0.0
        %2411 = vmatprep.subr.mxu0 0.0
        %2412 = vmatpush1.msra.mxu0 0.0
        %2413 = vmatprep.subr.mxu0 0.0
        %2414 = vmatpush1.msra.mxu0 0.0
        %2415 = vmatprep.subr.mxu0 0.0
        %2416 = vmatpush1.msra.mxu0 0.0
        %2417 = vmatprep.subr.mxu0 0.0
        %2418 = vmatpush1.msra.mxu0 0.0
        %2419 = vmatprep.subr.mxu0 0.0
        %2420 = vmatpush1.msra.mxu0 0.0
        %2421 = vmatprep.subr.mxu0 0.0
        %2422 = vmatpush1.msra.mxu0 0.0
        %2423 = vmatprep.subr.mxu0 0.0
        %2424 = vmatpush1.msra.mxu0 0.0
        %2425 = vmatprep.subr.mxu0 0.0
        %2426 = vmatpush1.msra.mxu0 0.0
        %2427 = vmatprep.subr.mxu0 0.0
        %2428 = vmatpush1.msra.mxu0 0.0
        %2429 = vmatprep.subr.mxu0 0.0
        %2430 = vmatpush1.msra.mxu0 0.0
        %2431 = vmatprep.subr.mxu0 0.0
        %2432 = vmatpush1.msra.mxu0 0.0
        %2433 = vmatprep.subr.mxu0 0.0
        %2434 = vmatpush1.msra.mxu0 0.0
        %2435 = vmatprep.subr.mxu0 0.0
        %2436 = vmatpush1.msra.mxu0 0.0
        %2437 = vmatprep.subr.mxu0 0.0
        %2438 = vmatpush1.msra.mxu0 0.0
        %2439 = vmatprep.subr.mxu0 0.0
        %2440 = vmatpush1.msra.mxu0 0.0
        %2441 = vmatprep.subr.mxu0 0.0
        %2442 = vmatpush1.msra.mxu0 0.0
        %2443 = vmatprep.subr.mxu0 0.0
        %2444 = vmatpush1.msra.mxu0 0.0
        %2445 = vmatprep.subr.mxu0 0.0
        %2446 = vmatpush1.msra.mxu0 0.0
        %2447 = vmatprep.subr.mxu0 0.0
        %2448 = vmatpush1.msra.mxu0 0.0
        %2449 = vmatprep.subr.mxu0 0.0
        %2450 = vmatpush1.msra.mxu0 0.0
        %2451 = vmatprep.subr.mxu0 0.0
        %2452 = vmatpush1.msra.mxu0 0.0
        %2453 = vmatprep.subr.mxu0 0.0
        %2454 = vmatpush1.msra.mxu0 0.0
        %2455 = vmatprep.mubr.f32.mxu0 0.0
        %2456 = vmatmul.mubr.f32.gmra.mrb[0].mxu0 %v1892
        %v2457 = vpop.f32.mrb[0].mxu0
        %v2458 = vadd.f32 0.0, %v2457
        %v2459 = vpop.f32.mrb[0].mxu0
        %v2460 = vadd.f32 0.0, %v2459
        %2461 = vdwg.mxu0
        %v2462 = vld [vmem:[#allocation5] sm:$0xff]
        %v2463 = vld [vmem:[#allocation5 + $0x8] sm:$0xff]
        %v2464 = vld [vmem:[#allocation5 + $0x10] sm:$0xff]
        %v2465 = vld [vmem:[#allocation5 + $0x18] sm:$0xff]
        %v2466 = vld [vmem:[#allocation5 + $0x20] sm:$0xff]
        %v2467 = vld [vmem:[#allocation5 + $0x28] sm:$0xff]
        %v2468 = vld [vmem:[#allocation5 + $0x30] sm:$0xff]
        %v2469 = vld [vmem:[#allocation5 + $0x38] sm:$0xff]
        %v2470 = vld [vmem:[#allocation5 + $0x40] sm:$0xff]
        %v2471 = vld [vmem:[#allocation5 + $0x48] sm:$0xff]
        %v2472 = vld [vmem:[#allocation5 + $0x50] sm:$0xff]
        %v2473 = vld [vmem:[#allocation5 + $0x58] sm:$0xff]
        %v2474 = vld [vmem:[#allocation5 + $0x60] sm:$0xff]
        %v2475 = vld [vmem:[#allocation5 + $0x68] sm:$0xff]
        %v2476 = vld [vmem:[#allocation5 + $0x70] sm:$0xff]
        %v2477 = vld [vmem:[#allocation5 + $0x78] sm:$0xff]
        %v2478 = vld [vmem:[#allocation5 + $0x80] sm:$0xff]
        %v2479 = vld [vmem:[#allocation5 + $0x88] sm:$0xff]
        %v2480 = vld [vmem:[#allocation5 + $0x90] sm:$0xff]
        %v2481 = vld [vmem:[#allocation5 + $0x98] sm:$0xff]
        %v2482 = vld [vmem:[#allocation5 + $0xa0] sm:$0xff]
        %v2483 = vld [vmem:[#allocation5 + $0xa8] sm:$0xff]
        %v2484 = vld [vmem:[#allocation5 + $0xb0] sm:$0xff]
        %v2485 = vld [vmem:[#allocation5 + $0xb8] sm:$0xff]
        %v2486 = vld [vmem:[#allocation5 + $0xc0] sm:$0xff]
        %v2487 = vld [vmem:[#allocation5 + $0xc8] sm:$0xff]
        %v2488 = vld [vmem:[#allocation5 + $0xd0] sm:$0xff]
        %v2489 = vld [vmem:[#allocation5 + $0xd8] sm:$0xff]
        %v2490 = vld [vmem:[#allocation5 + $0xe0] sm:$0xff]
        %v2491 = vld [vmem:[#allocation5 + $0xe8] sm:$0xff]
        %v2492 = vld [vmem:[#allocation5 + $0xf0] sm:$0xff]
        %v2493 = vld [vmem:[#allocation5 + $0xf8] sm:$0xff]
        %v2494 = vld [vmem:[#allocation5 + $0x100] sm:$0xff]
        %v2495 = vld [vmem:[#allocation5 + $0x108] sm:$0xff]
        %v2496 = vld [vmem:[#allocation5 + $0x110] sm:$0xff]
        %v2497 = vld [vmem:[#allocation5 + $0x118] sm:$0xff]
        %v2498 = vld [vmem:[#allocation5 + $0x120] sm:$0xff]
        %v2499 = vld [vmem:[#allocation5 + $0x128] sm:$0xff]
        %v2500 = vld [vmem:[#allocation5 + $0x130] sm:$0xff]
        %v2501 = vld [vmem:[#allocation5 + $0x138] sm:$0xff]
        %v2502 = vld [vmem:[#allocation5 + $0x140] sm:$0xff]
        %v2503 = vld [vmem:[#allocation5 + $0x148] sm:$0xff]
        %v2504 = vld [vmem:[#allocation5 + $0x150] sm:$0xff]
        %v2505 = vld [vmem:[#allocation5 + $0x158] sm:$0xff]
        %v2506 = vld [vmem:[#allocation5 + $0x160] sm:$0xff]
        %v2507 = vld [vmem:[#allocation5 + $0x168] sm:$0xff]
        %v2508 = vld [vmem:[#allocation5 + $0x170] sm:$0xff]
        %v2509 = vld [vmem:[#allocation5 + $0x178] sm:$0xff]
        %v2510 = vld [vmem:[#allocation5 + $0x180] sm:$0xff]
        %v2511 = vld [vmem:[#allocation5 + $0x188] sm:$0xff]
        %v2512 = vld [vmem:[#allocation5 + $0x190] sm:$0xff]
        %v2513 = vld [vmem:[#allocation5 + $0x198] sm:$0xff]
        %v2514 = vld [vmem:[#allocation5 + $0x1a0] sm:$0xff]
        %v2515 = vld [vmem:[#allocation5 + $0x1a8] sm:$0xff]
        %v2516 = vld [vmem:[#allocation5 + $0x1b0] sm:$0xff]
        %v2517 = vld [vmem:[#allocation5 + $0x1b8] sm:$0xff]
        %v2518 = vld [vmem:[#allocation5 + $0x1c0] sm:$0xff]
        %v2519 = vld [vmem:[#allocation5 + $0x1c8] sm:$0xff]
        %v2520 = vld [vmem:[#allocation5 + $0x1d0] sm:$0xff]
        %v2521 = vld [vmem:[#allocation5 + $0x1d8] sm:$0xff]
        %v2522 = vld [vmem:[#allocation5 + $0x1e0] sm:$0xff]
        %v2523 = vld [vmem:[#allocation5 + $0x1e8] sm:$0xff]
        %v2524 = vld [vmem:[#allocation5 + $0x1f0] sm:$0xff]
        %v2525 = vld [vmem:[#allocation5 + $0x1f8] sm:$0xff]
        %v2526 = vld [vmem:[#allocation5 + $0x200] sm:$0xff]
        %v2527 = vld [vmem:[#allocation5 + $0x208] sm:$0xff]
        %v2528 = vld [vmem:[#allocation5 + $0x210] sm:$0xff]
        %v2529 = vld [vmem:[#allocation5 + $0x218] sm:$0xff]
        %v2530 = vld [vmem:[#allocation5 + $0x220] sm:$0xff]
        %v2531 = vld [vmem:[#allocation5 + $0x228] sm:$0xff]
        %v2532 = vld [vmem:[#allocation5 + $0x230] sm:$0xff]
        %v2533 = vld [vmem:[#allocation5 + $0x238] sm:$0xff]
        %v2534 = vld [vmem:[#allocation5 + $0x240] sm:$0xff]
        %v2535 = vld [vmem:[#allocation5 + $0x248] sm:$0xff]
        %v2536 = vld [vmem:[#allocation5 + $0x250] sm:$0xff]
        %v2537 = vld [vmem:[#allocation5 + $0x258] sm:$0xff]
        %v2538 = vld [vmem:[#allocation5 + $0x260] sm:$0xff]
        %v2539 = vld [vmem:[#allocation5 + $0x268] sm:$0xff]
        %v2540 = vld [vmem:[#allocation5 + $0x270] sm:$0xff]
        %v2541 = vld [vmem:[#allocation5 + $0x278] sm:$0xff]
        %v2542 = vld [vmem:[#allocation5 + $0x280] sm:$0xff]
        %v2543 = vld [vmem:[#allocation5 + $0x288] sm:$0xff]
        %v2544 = vld [vmem:[#allocation5 + $0x290] sm:$0xff]
        %v2545 = vld [vmem:[#allocation5 + $0x298] sm:$0xff]
        %v2546 = vld [vmem:[#allocation5 + $0x2a0] sm:$0xff]
        %v2547 = vld [vmem:[#allocation5 + $0x2a8] sm:$0xff]
        %v2548 = vld [vmem:[#allocation5 + $0x2b0] sm:$0xff]
        %v2549 = vld [vmem:[#allocation5 + $0x2b8] sm:$0xff]
        %v2550 = vld [vmem:[#allocation5 + $0x2c0] sm:$0xff]
        %v2551 = vld [vmem:[#allocation5 + $0x2c8] sm:$0xff]
        %v2552 = vld [vmem:[#allocation5 + $0x2d0] sm:$0xff]
        %v2553 = vld [vmem:[#allocation5 + $0x2d8] sm:$0xff]
        %v2554 = vld [vmem:[#allocation5 + $0x2e0] sm:$0xff]
        %v2555 = vld [vmem:[#allocation5 + $0x2e8] sm:$0xff]
        %v2556 = vld [vmem:[#allocation5 + $0x2f0] sm:$0xff]
        %v2557 = vld [vmem:[#allocation5 + $0x2f8] sm:$0xff]
        %v2558 = vld [vmem:[#allocation5 + $0x300] sm:$0xff]
        %v2559 = vld [vmem:[#allocation5 + $0x308] sm:$0xff]
        %v2560 = vld [vmem:[#allocation5 + $0x310] sm:$0xff]
        %v2561 = vld [vmem:[#allocation5 + $0x318] sm:$0xff]
        %v2562 = vld [vmem:[#allocation5 + $0x320] sm:$0xff]
        %v2563 = vld [vmem:[#allocation5 + $0x328] sm:$0xff]
        %v2564 = vld [vmem:[#allocation5 + $0x330] sm:$0xff]
        %v2565 = vld [vmem:[#allocation5 + $0x338] sm:$0xff]
        %v2566 = vld [vmem:[#allocation5 + $0x340] sm:$0xff]
        %v2567 = vld [vmem:[#allocation5 + $0x348] sm:$0xff]
        %v2568 = vld [vmem:[#allocation5 + $0x350] sm:$0xff]
        %v2569 = vld [vmem:[#allocation5 + $0x358] sm:$0xff]
        %v2570 = vld [vmem:[#allocation5 + $0x360] sm:$0xff]
        %v2571 = vld [vmem:[#allocation5 + $0x368] sm:$0xff]
        %v2572 = vld [vmem:[#allocation5 + $0x370] sm:$0xff]
        %v2573 = vld [vmem:[#allocation5 + $0x378] sm:$0xff]
        %v2574 = vld [vmem:[#allocation5 + $0x380] sm:$0xff]
        %v2575 = vld [vmem:[#allocation5 + $0x388] sm:$0xff]
        %v2576 = vld [vmem:[#allocation5 + $0x390] sm:$0xff]
        %v2577 = vld [vmem:[#allocation5 + $0x398] sm:$0xff]
        %v2578 = vld [vmem:[#allocation5 + $0x3a0] sm:$0xff]
        %v2579 = vld [vmem:[#allocation5 + $0x3a8] sm:$0xff]
        %v2580 = vld [vmem:[#allocation5 + $0x3b0] sm:$0xff]
        %v2581 = vld [vmem:[#allocation5 + $0x3b8] sm:$0xff]
        %v2582 = vld [vmem:[#allocation5 + $0x3c0] sm:$0xff]
        %v2583 = vld [vmem:[#allocation5 + $0x3c8] sm:$0xff]
        %v2584 = vld [vmem:[#allocation5 + $0x3d0] sm:$0xff]
        %v2585 = vld [vmem:[#allocation5 + $0x3d8] sm:$0xff]
        %v2586 = vld [vmem:[#allocation5 + $0x3e0] sm:$0xff]
        %v2587 = vld [vmem:[#allocation5 + $0x3e8] sm:$0xff]
        %v2588 = vld [vmem:[#allocation5 + $0x3f0] sm:$0xff]
        %v2589 = vld [vmem:[#allocation5 + $0x3f8] sm:$0xff]
        %v2590 = vld [vmem:[#allocation5 + $0x400] sm:$0xff]
        %v2591 = vld [vmem:[#allocation5 + $0x408] sm:$0xff]
        %v2592 = vld [vmem:[#allocation5 + $0x410] sm:$0xff]
        %v2593 = vld [vmem:[#allocation5 + $0x418] sm:$0xff]
        %v2594 = vld [vmem:[#allocation5 + $0x420] sm:$0xff]
        %v2595 = vld [vmem:[#allocation5 + $0x428] sm:$0xff]
        %v2596 = vld [vmem:[#allocation5 + $0x430] sm:$0xff]
        %v2597 = vld [vmem:[#allocation5 + $0x438] sm:$0xff]
        %v2598 = vld [vmem:[#allocation5 + $0x440] sm:$0xff]
        %v2599 = vld [vmem:[#allocation5 + $0x448] sm:$0xff]
        %v2600 = vld [vmem:[#allocation5 + $0x450] sm:$0xff]
        %v2601 = vld [vmem:[#allocation5 + $0x458] sm:$0xff]
        %v2602 = vld [vmem:[#allocation5 + $0x460] sm:$0xff]
        %v2603 = vld [vmem:[#allocation5 + $0x468] sm:$0xff]
        %v2604 = vld [vmem:[#allocation5 + $0x470] sm:$0xff]
        %v2605 = vld [vmem:[#allocation5 + $0x478] sm:$0xff]
        %v2606 = vld [vmem:[#allocation5 + $0x480] sm:$0xff]
        %v2607 = vld [vmem:[#allocation5 + $0x488] sm:$0xff]
        %v2608 = vld [vmem:[#allocation5 + $0x490] sm:$0xff]
        %v2609 = vld [vmem:[#allocation5 + $0x498] sm:$0xff]
        %v2610 = vld [vmem:[#allocation5 + $0x4a0] sm:$0xff]
        %v2611 = vld [vmem:[#allocation5 + $0x4a8] sm:$0xff]
        %v2612 = vld [vmem:[#allocation5 + $0x4b0] sm:$0xff]
        %v2613 = vld [vmem:[#allocation5 + $0x4b8] sm:$0xff]
        %v2614 = vld [vmem:[#allocation5 + $0x4c0] sm:$0xff]
        %v2615 = vld [vmem:[#allocation5 + $0x4c8] sm:$0xff]
        %v2616 = vld [vmem:[#allocation5 + $0x4d0] sm:$0xff]
        %v2617 = vld [vmem:[#allocation5 + $0x4d8] sm:$0xff]
        %v2618 = vld [vmem:[#allocation5 + $0x4e0] sm:$0xff]
        %v2619 = vld [vmem:[#allocation5 + $0x4e8] sm:$0xff]
        %v2620 = vld [vmem:[#allocation5 + $0x4f0] sm:$0xff]
        %v2621 = vld [vmem:[#allocation5 + $0x4f8] sm:$0xff]
        %v2622 = vld [vmem:[#allocation5 + $0x500] sm:$0xff]
        %v2623 = vld [vmem:[#allocation5 + $0x508] sm:$0xff]
        %v2624 = vld [vmem:[#allocation5 + $0x510] sm:$0xff]
        %v2625 = vld [vmem:[#allocation5 + $0x518] sm:$0xff]
        %v2626 = vld [vmem:[#allocation5 + $0x520] sm:$0xff]
        %v2627 = vld [vmem:[#allocation5 + $0x528] sm:$0xff]
        %v2628 = vld [vmem:[#allocation5 + $0x530] sm:$0xff]
        %v2629 = vld [vmem:[#allocation5 + $0x538] sm:$0xff]
        %v2630 = vld [vmem:[#allocation5 + $0x540] sm:$0xff]
        %v2631 = vld [vmem:[#allocation5 + $0x548] sm:$0xff]
        %v2632 = vld [vmem:[#allocation5 + $0x550] sm:$0xff]
        %v2633 = vld [vmem:[#allocation5 + $0x558] sm:$0xff]
        %v2634 = vld [vmem:[#allocation5 + $0x560] sm:$0xff]
        %v2635 = vld [vmem:[#allocation5 + $0x568] sm:$0xff]
        %v2636 = vld [vmem:[#allocation5 + $0x570] sm:$0xff]
        %v2637 = vld [vmem:[#allocation5 + $0x578] sm:$0xff]
        %v2638 = vld [vmem:[#allocation5 + $0x580] sm:$0xff]
        %v2639 = vld [vmem:[#allocation5 + $0x588] sm:$0xff]
        %v2640 = vld [vmem:[#allocation5 + $0x590] sm:$0xff]
        %v2641 = vld [vmem:[#allocation5 + $0x598] sm:$0xff]
        %v2642 = vld [vmem:[#allocation5 + $0x5a0] sm:$0xff]
        %v2643 = vld [vmem:[#allocation5 + $0x5a8] sm:$0xff]
        %v2644 = vld [vmem:[#allocation5 + $0x5b0] sm:$0xff]
        %v2645 = vld [vmem:[#allocation5 + $0x5b8] sm:$0xff]
        %v2646 = vld [vmem:[#allocation5 + $0x5c0] sm:$0xff]
        %v2647 = vld [vmem:[#allocation5 + $0x5c8] sm:$0xff]
        %v2648 = vld [vmem:[#allocation5 + $0x5d0] sm:$0xff]
        %v2649 = vld [vmem:[#allocation5 + $0x5d8] sm:$0xff]
        %v2650 = vld [vmem:[#allocation5 + $0x5e0] sm:$0xff]
        %v2651 = vld [vmem:[#allocation5 + $0x5e8] sm:$0xff]
        %v2652 = vld [vmem:[#allocation5 + $0x5f0] sm:$0xff]
        %v2653 = vld [vmem:[#allocation5 + $0x5f8] sm:$0xff]
        %v2654 = vld [vmem:[#allocation5 + $0x600] sm:$0xff]
        %v2655 = vld [vmem:[#allocation5 + $0x608] sm:$0xff]
        %v2656 = vld [vmem:[#allocation5 + $0x610] sm:$0xff]
        %v2657 = vld [vmem:[#allocation5 + $0x618] sm:$0xff]
        %v2658 = vld [vmem:[#allocation5 + $0x620] sm:$0xff]
        %v2659 = vld [vmem:[#allocation5 + $0x628] sm:$0xff]
        %v2660 = vld [vmem:[#allocation5 + $0x630] sm:$0xff]
        %v2661 = vld [vmem:[#allocation5 + $0x638] sm:$0xff]
        %v2662 = vld [vmem:[#allocation5 + $0x640] sm:$0xff]
        %v2663 = vld [vmem:[#allocation5 + $0x648] sm:$0xff]
        %v2664 = vld [vmem:[#allocation5 + $0x650] sm:$0xff]
        %v2665 = vld [vmem:[#allocation5 + $0x658] sm:$0xff]
        %v2666 = vld [vmem:[#allocation5 + $0x660] sm:$0xff]
        %v2667 = vld [vmem:[#allocation5 + $0x668] sm:$0xff]
        %v2668 = vld [vmem:[#allocation5 + $0x670] sm:$0xff]
        %v2669 = vld [vmem:[#allocation5 + $0x678] sm:$0xff]
        %v2670 = vld [vmem:[#allocation5 + $0x680] sm:$0xff]
        %v2671 = vld [vmem:[#allocation5 + $0x688] sm:$0xff]
        %v2672 = vld [vmem:[#allocation5 + $0x690] sm:$0xff]
        %v2673 = vld [vmem:[#allocation5 + $0x698] sm:$0xff]
        %v2674 = vld [vmem:[#allocation5 + $0x6a0] sm:$0xff]
        %v2675 = vld [vmem:[#allocation5 + $0x6a8] sm:$0xff]
        %v2676 = vld [vmem:[#allocation5 + $0x6b0] sm:$0xff]
        %v2677 = vld [vmem:[#allocation5 + $0x6b8] sm:$0xff]
        %v2678 = vld [vmem:[#allocation5 + $0x6c0] sm:$0xff]
        %v2679 = vld [vmem:[#allocation5 + $0x6c8] sm:$0xff]
        %v2680 = vld [vmem:[#allocation5 + $0x6d0] sm:$0xff]
        %v2681 = vld [vmem:[#allocation5 + $0x6d8] sm:$0xff]
        %v2682 = vld [vmem:[#allocation5 + $0x6e0] sm:$0xff]
        %v2683 = vld [vmem:[#allocation5 + $0x6e8] sm:$0xff]
        %v2684 = vld [vmem:[#allocation5 + $0x6f0] sm:$0xff]
        %v2685 = vld [vmem:[#allocation5 + $0x6f8] sm:$0xff]
        %v2686 = vld [vmem:[#allocation5 + $0x700] sm:$0xff]
        %v2687 = vld [vmem:[#allocation5 + $0x708] sm:$0xff]
        %v2688 = vld [vmem:[#allocation5 + $0x710] sm:$0xff]
        %v2689 = vld [vmem:[#allocation5 + $0x718] sm:$0xff]
        %v2690 = vld [vmem:[#allocation5 + $0x720] sm:$0xff]
        %v2691 = vld [vmem:[#allocation5 + $0x728] sm:$0xff]
        %v2692 = vld [vmem:[#allocation5 + $0x730] sm:$0xff]
        %v2693 = vld [vmem:[#allocation5 + $0x738] sm:$0xff]
        %v2694 = vld [vmem:[#allocation5 + $0x740] sm:$0xff]
        %v2695 = vld [vmem:[#allocation5 + $0x748] sm:$0xff]
        %v2696 = vld [vmem:[#allocation5 + $0x750] sm:$0xff]
        %v2697 = vld [vmem:[#allocation5 + $0x758] sm:$0xff]
        %v2698 = vld [vmem:[#allocation5 + $0x760] sm:$0xff]
        %v2699 = vld [vmem:[#allocation5 + $0x768] sm:$0xff]
        %v2700 = vld [vmem:[#allocation5 + $0x770] sm:$0xff]
        %v2701 = vld [vmem:[#allocation5 + $0x778] sm:$0xff]
        %v2702 = vld [vmem:[#allocation5 + $0x780] sm:$0xff]
        %v2703 = vld [vmem:[#allocation5 + $0x788] sm:$0xff]
        %v2704 = vld [vmem:[#allocation5 + $0x790] sm:$0xff]
        %v2705 = vld [vmem:[#allocation5 + $0x798] sm:$0xff]
        %v2706 = vld [vmem:[#allocation5 + $0x7a0] sm:$0xff]
        %v2707 = vld [vmem:[#allocation5 + $0x7a8] sm:$0xff]
        %v2708 = vld [vmem:[#allocation5 + $0x7b0] sm:$0xff]
        %v2709 = vld [vmem:[#allocation5 + $0x7b8] sm:$0xff]
        %v2710 = vld [vmem:[#allocation5 + $0x7c0] sm:$0xff]
        %v2711 = vld [vmem:[#allocation5 + $0x7c8] sm:$0xff]
        %v2712 = vld [vmem:[#allocation5 + $0x7d0] sm:$0xff]
        %v2713 = vld [vmem:[#allocation5 + $0x7d8] sm:$0xff]
        %v2714 = vld [vmem:[#allocation5 + $0x7e0] sm:$0xff]
        %v2715 = vld [vmem:[#allocation5 + $0x7e8] sm:$0xff]
        %v2716 = vld [vmem:[#allocation5 + $0x7f0] sm:$0xff]
        %v2717 = vld [vmem:[#allocation5 + $0x7f8] sm:$0xff]
        %2718 = vmatprep.subr.mxu0 0.0
        %2719 = vmatpush1.msra.mxu0 %v2462
        %2720 = vmatprep.subr.mxu0 0.0
        %2721 = vmatpush1.msra.mxu0 %v2463
        %2722 = vmatprep.subr.mxu0 0.0
        %2723 = vmatpush1.msra.mxu0 %v2464
        %2724 = vmatprep.subr.mxu0 0.0
        %2725 = vmatpush1.msra.mxu0 %v2465
        %2726 = vmatprep.subr.mxu0 0.0
        %2727 = vmatpush1.msra.mxu0 %v2466
        %2728 = vmatprep.subr.mxu0 0.0
        %2729 = vmatpush1.msra.mxu0 %v2467
        %2730 = vmatprep.subr.mxu0 0.0
        %2731 = vmatpush1.msra.mxu0 %v2468
        %2732 = vmatprep.subr.mxu0 0.0
        %2733 = vmatpush1.msra.mxu0 %v2469
        %2734 = vmatprep.subr.mxu0 0.0
        %2735 = vmatpush1.msra.mxu0 %v2470
        %2736 = vmatprep.subr.mxu0 0.0
        %2737 = vmatpush1.msra.mxu0 %v2471
        %2738 = vmatprep.subr.mxu0 0.0
        %2739 = vmatpush1.msra.mxu0 %v2472
        %2740 = vmatprep.subr.mxu0 0.0
        %2741 = vmatpush1.msra.mxu0 %v2473
        %2742 = vmatprep.subr.mxu0 0.0
        %2743 = vmatpush1.msra.mxu0 %v2474
        %2744 = vmatprep.subr.mxu0 0.0
        %2745 = vmatpush1.msra.mxu0 %v2475
        %2746 = vmatprep.subr.mxu0 0.0
        %2747 = vmatpush1.msra.mxu0 %v2476
        %2748 = vmatprep.subr.mxu0 0.0
        %2749 = vmatpush1.msra.mxu0 %v2477
        %2750 = vmatprep.subr.mxu0 0.0
        %2751 = vmatpush1.msra.mxu0 %v2478
        %2752 = vmatprep.subr.mxu0 0.0
        %2753 = vmatpush1.msra.mxu0 %v2479
        %2754 = vmatprep.subr.mxu0 0.0
        %2755 = vmatpush1.msra.mxu0 %v2480
        %2756 = vmatprep.subr.mxu0 0.0
        %2757 = vmatpush1.msra.mxu0 %v2481
        %2758 = vmatprep.subr.mxu0 0.0
        %2759 = vmatpush1.msra.mxu0 %v2482
        %2760 = vmatprep.subr.mxu0 0.0
        %2761 = vmatpush1.msra.mxu0 %v2483
        %2762 = vmatprep.subr.mxu0 0.0
        %2763 = vmatpush1.msra.mxu0 %v2484
        %2764 = vmatprep.subr.mxu0 0.0
        %2765 = vmatpush1.msra.mxu0 %v2485
        %2766 = vmatprep.subr.mxu0 0.0
        %2767 = vmatpush1.msra.mxu0 %v2486
        %2768 = vmatprep.subr.mxu0 0.0
        %2769 = vmatpush1.msra.mxu0 %v2487
        %2770 = vmatprep.subr.mxu0 0.0
        %2771 = vmatpush1.msra.mxu0 %v2488
        %2772 = vmatprep.subr.mxu0 0.0
        %2773 = vmatpush1.msra.mxu0 %v2489
        %2774 = vmatprep.subr.mxu0 0.0
        %2775 = vmatpush1.msra.mxu0 %v2490
        %2776 = vmatprep.subr.mxu0 0.0
        %2777 = vmatpush1.msra.mxu0 %v2491
        %2778 = vmatprep.subr.mxu0 0.0
        %2779 = vmatpush1.msra.mxu0 %v2492
        %2780 = vmatprep.subr.mxu0 0.0
        %2781 = vmatpush1.msra.mxu0 %v2493
        %2782 = vmatprep.mubr.f32.mxu0 %v1963
        %2783 = vmatmul.mubr.f32.gmra.mrb[0].mxu0 %v1961
        %v2784 = vpop.f32.mrb[0].mxu0
        %v2785 = vadd.f32 0.0, %v2784
        %v2786 = vpop.f32.mrb[0].mxu0
        %2787 = vdwg.mxu0
        %2788 = vmatprep.subr.mxu0 0.0
        %2789 = vmatpush1.msra.mxu0 %v2494
        %2790 = vmatprep.subr.mxu0 0.0
        %2791 = vmatpush1.msra.mxu0 %v2495
        %2792 = vmatprep.subr.mxu0 0.0
        %2793 = vmatpush1.msra.mxu0 %v2496
        %2794 = vmatprep.subr.mxu0 0.0
        %2795 = vmatpush1.msra.mxu0 %v2497
        %2796 = vmatprep.subr.mxu0 0.0
        %2797 = vmatpush1.msra.mxu0 %v2498
        %2798 = vmatprep.subr.mxu0 0.0
        %2799 = vmatpush1.msra.mxu0 %v2499
        %2800 = vmatprep.subr.mxu0 0.0
        %2801 = vmatpush1.msra.mxu0 %v2500
        %2802 = vmatprep.subr.mxu0 0.0
        %2803 = vmatpush1.msra.mxu0 %v2501
        %2804 = vmatprep.subr.mxu0 0.0
        %2805 = vmatpush1.msra.mxu0 %v2502
        %2806 = vmatprep.subr.mxu0 0.0
        %2807 = vmatpush1.msra.mxu0 %v2503
        %2808 = vmatprep.subr.mxu0 0.0
        %2809 = vmatpush1.msra.mxu0 %v2504
        %2810 = vmatprep.subr.mxu0 0.0
        %2811 = vmatpush1.msra.mxu0 %v2505
        %2812 = vmatprep.subr.mxu0 0.0
        %2813 = vmatpush1.msra.mxu0 %v2506
        %2814 = vmatprep.subr.mxu0 0.0
        %2815 = vmatpush1.msra.mxu0 %v2507
        %2816 = vmatprep.subr.mxu0 0.0
        %2817 = vmatpush1.msra.mxu0 %v2508
        %2818 = vmatprep.subr.mxu0 0.0
        %2819 = vmatpush1.msra.mxu0 %v2509
        %2820 = vmatprep.subr.mxu0 0.0
        %2821 = vmatpush1.msra.mxu0 %v2510
        %2822 = vmatprep.subr.mxu0 0.0
        %2823 = vmatpush1.msra.mxu0 %v2511
        %2824 = vmatprep.subr.mxu0 0.0
        %2825 = vmatpush1.msra.mxu0 %v2512
        %2826 = vmatprep.subr.mxu0 0.0
        %2827 = vmatpush1.msra.mxu0 %v2513
        %2828 = vmatprep.subr.mxu0 0.0
        %2829 = vmatpush1.msra.mxu0 %v2514
        %2830 = vmatprep.subr.mxu0 0.0
        %2831 = vmatpush1.msra.mxu0 %v2515
        %2832 = vmatprep.subr.mxu0 0.0
        %2833 = vmatpush1.msra.mxu0 %v2516
        %2834 = vmatprep.subr.mxu0 0.0
        %2835 = vmatpush1.msra.mxu0 %v2517
        %2836 = vmatprep.subr.mxu0 0.0
        %2837 = vmatpush1.msra.mxu0 %v2518
        %2838 = vmatprep.subr.mxu0 0.0
        %2839 = vmatpush1.msra.mxu0 %v2519
        %2840 = vmatprep.subr.mxu0 0.0
        %2841 = vmatpush1.msra.mxu0 %v2520
        %2842 = vmatprep.subr.mxu0 0.0
        %2843 = vmatpush1.msra.mxu0 %v2521
        %2844 = vmatprep.subr.mxu0 0.0
        %2845 = vmatpush1.msra.mxu0 %v2522
        %2846 = vmatprep.subr.mxu0 0.0
        %2847 = vmatpush1.msra.mxu0 %v2523
        %2848 = vmatprep.subr.mxu0 0.0
        %2849 = vmatpush1.msra.mxu0 %v2524
        %2850 = vmatprep.subr.mxu0 0.0
        %2851 = vmatpush1.msra.mxu0 %v2525
        %2852 = vmatprep.mubr.f32.mxu0 %v2034
        %2853 = vmatmul.mubr.f32.gmra.mrb[0].mxu0 %v2032
        %v2854 = vpop.f32.mrb[0].mxu0
        %v2855 = vadd.f32 %v2785, %v2854
        %v2856 = vpop.f32.mrb[0].mxu0
        %2857 = vdwg.mxu0
        %2858 = vmatprep.subr.mxu0 0.0
        %2859 = vmatpush1.msra.mxu0 %v2526
        %2860 = vmatprep.subr.mxu0 0.0
        %2861 = vmatpush1.msra.mxu0 %v2527
        %2862 = vmatprep.subr.mxu0 0.0
        %2863 = vmatpush1.msra.mxu0 %v2528
        %2864 = vmatprep.subr.mxu0 0.0
        %2865 = vmatpush1.msra.mxu0 %v2529
        %2866 = vmatprep.subr.mxu0 0.0
        %2867 = vmatpush1.msra.mxu0 %v2530
        %2868 = vmatprep.subr.mxu0 0.0
        %2869 = vmatpush1.msra.mxu0 %v2531
        %2870 = vmatprep.subr.mxu0 0.0
        %2871 = vmatpush1.msra.mxu0 %v2532
        %2872 = vmatprep.subr.mxu0 0.0
        %2873 = vmatpush1.msra.mxu0 %v2533
        %2874 = vmatprep.subr.mxu0 0.0
        %2875 = vmatpush1.msra.mxu0 %v2534
        %2876 = vmatprep.subr.mxu0 0.0
        %2877 = vmatpush1.msra.mxu0 %v2535
        %2878 = vmatprep.subr.mxu0 0.0
        %2879 = vmatpush1.msra.mxu0 %v2536
        %2880 = vmatprep.subr.mxu0 0.0
        %2881 = vmatpush1.msra.mxu0 %v2537
        %2882 = vmatprep.subr.mxu0 0.0
        %2883 = vmatpush1.msra.mxu0 %v2538
        %2884 = vmatprep.subr.mxu0 0.0
        %2885 = vmatpush1.msra.mxu0 %v2539
        %2886 = vmatprep.subr.mxu0 0.0
        %2887 = vmatpush1.msra.mxu0 %v2540
        %2888 = vmatprep.subr.mxu0 0.0
        %2889 = vmatpush1.msra.mxu0 %v2541
        %2890 = vmatprep.subr.mxu0 0.0
        %2891 = vmatpush1.msra.mxu0 %v2542
        %2892 = vmatprep.subr.mxu0 0.0
        %2893 = vmatpush1.msra.mxu0 %v2543
        %2894 = vmatprep.subr.mxu0 0.0
        %2895 = vmatpush1.msra.mxu0 %v2544
        %2896 = vmatprep.subr.mxu0 0.0
        %2897 = vmatpush1.msra.mxu0 %v2545
        %2898 = vmatprep.subr.mxu0 0.0
        %2899 = vmatpush1.msra.mxu0 %v2546
        %2900 = vmatprep.subr.mxu0 0.0
        %2901 = vmatpush1.msra.mxu0 %v2547
        %2902 = vmatprep.subr.mxu0 0.0
        %2903 = vmatpush1.msra.mxu0 %v2548
        %2904 = vmatprep.subr.mxu0 0.0
        %2905 = vmatpush1.msra.mxu0 %v2549
        %2906 = vmatprep.subr.mxu0 0.0
        %2907 = vmatpush1.msra.mxu0 %v2550
        %2908 = vmatprep.subr.mxu0 0.0
        %2909 = vmatpush1.msra.mxu0 %v2551
        %2910 = vmatprep.subr.mxu0 0.0
        %2911 = vmatpush1.msra.mxu0 %v2552
        %2912 = vmatprep.subr.mxu0 0.0
        %2913 = vmatpush1.msra.mxu0 %v2553
        %2914 = vmatprep.subr.mxu0 0.0
        %2915 = vmatpush1.msra.mxu0 %v2554
        %2916 = vmatprep.subr.mxu0 0.0
        %2917 = vmatpush1.msra.mxu0 %v2555
        %2918 = vmatprep.subr.mxu0 0.0
        %2919 = vmatpush1.msra.mxu0 %v2556
        %2920 = vmatprep.subr.mxu0 0.0
        %2921 = vmatpush1.msra.mxu0 %v2557
        %2922 = vmatprep.mubr.f32.mxu0 %v2105
        %2923 = vmatmul.mubr.f32.gmra.mrb[0].mxu0 %v2103
        %v2924 = vpop.f32.mrb[0].mxu0
        %v2925 = vadd.f32 %v2855, %v2924
        %v2926 = vpop.f32.mrb[0].mxu0
        %2927 = vdwg.mxu0
        %2928 = vmatprep.subr.mxu0 0.0
        %2929 = vmatpush1.msra.mxu0 %v2558
        %2930 = vmatprep.subr.mxu0 0.0
        %2931 = vmatpush1.msra.mxu0 %v2559
        %2932 = vmatprep.subr.mxu0 0.0
        %2933 = vmatpush1.msra.mxu0 %v2560
        %2934 = vmatprep.subr.mxu0 0.0
        %2935 = vmatpush1.msra.mxu0 %v2561
        %2936 = vmatprep.subr.mxu0 0.0
        %2937 = vmatpush1.msra.mxu0 %v2562
        %2938 = vmatprep.subr.mxu0 0.0
        %2939 = vmatpush1.msra.mxu0 %v2563
        %2940 = vmatprep.subr.mxu0 0.0
        %2941 = vmatpush1.msra.mxu0 %v2564
        %2942 = vmatprep.subr.mxu0 0.0
        %2943 = vmatpush1.msra.mxu0 %v2565
        %2944 = vmatprep.subr.mxu0 0.0
        %2945 = vmatpush1.msra.mxu0 %v2566
        %2946 = vmatprep.subr.mxu0 0.0
        %2947 = vmatpush1.msra.mxu0 %v2567
        %2948 = vmatprep.subr.mxu0 0.0
        %2949 = vmatpush1.msra.mxu0 %v2568
        %2950 = vmatprep.subr.mxu0 0.0
        %2951 = vmatpush1.msra.mxu0 %v2569
        %2952 = vmatprep.subr.mxu0 0.0
        %2953 = vmatpush1.msra.mxu0 %v2570
        %2954 = vmatprep.subr.mxu0 0.0
        %2955 = vmatpush1.msra.mxu0 %v2571
        %2956 = vmatprep.subr.mxu0 0.0
        %2957 = vmatpush1.msra.mxu0 %v2572
        %2958 = vmatprep.subr.mxu0 0.0
        %2959 = vmatpush1.msra.mxu0 %v2573
        %2960 = vmatprep.subr.mxu0 0.0
        %2961 = vmatpush1.msra.mxu0 %v2574
        %2962 = vmatprep.subr.mxu0 0.0
        %2963 = vmatpush1.msra.mxu0 %v2575
        %2964 = vmatprep.subr.mxu0 0.0
        %2965 = vmatpush1.msra.mxu0 %v2576
        %2966 = vmatprep.subr.mxu0 0.0
        %2967 = vmatpush1.msra.mxu0 %v2577
        %2968 = vmatprep.subr.mxu0 0.0
        %2969 = vmatpush1.msra.mxu0 %v2578
        %2970 = vmatprep.subr.mxu0 0.0
        %2971 = vmatpush1.msra.mxu0 %v2579
        %2972 = vmatprep.subr.mxu0 0.0
        %2973 = vmatpush1.msra.mxu0 %v2580
        %2974 = vmatprep.subr.mxu0 0.0
        %2975 = vmatpush1.msra.mxu0 %v2581
        %2976 = vmatprep.subr.mxu0 0.0
        %2977 = vmatpush1.msra.mxu0 %v2582
        %2978 = vmatprep.subr.mxu0 0.0
        %2979 = vmatpush1.msra.mxu0 %v2583
        %2980 = vmatprep.subr.mxu0 0.0
        %2981 = vmatpush1.msra.mxu0 %v2584
        %2982 = vmatprep.subr.mxu0 0.0
        %2983 = vmatpush1.msra.mxu0 %v2585
        %2984 = vmatprep.subr.mxu0 0.0
        %2985 = vmatpush1.msra.mxu0 %v2586
        %2986 = vmatprep.subr.mxu0 0.0
        %2987 = vmatpush1.msra.mxu0 %v2587
        %2988 = vmatprep.subr.mxu0 0.0
        %2989 = vmatpush1.msra.mxu0 %v2588
        %2990 = vmatprep.subr.mxu0 0.0
        %2991 = vmatpush1.msra.mxu0 %v2589
        %2992 = vmatprep.mubr.f32.mxu0 %v2176
        %2993 = vmatmul.mubr.f32.gmra.mrb[0].mxu0 %v2174
        %v2994 = vpop.f32.mrb[0].mxu0
        %v2995 = vadd.f32 %v2925, %v2994
        %v2996 = vpop.f32.mrb[0].mxu0
        %2997 = vdwg.mxu0
        %2998 = vmatprep.subr.mxu0 0.0
        %2999 = vmatpush1.msra.mxu0 %v2590
        %3000 = vmatprep.subr.mxu0 0.0
        %3001 = vmatpush1.msra.mxu0 %v2591
        %3002 = vmatprep.subr.mxu0 0.0
        %3003 = vmatpush1.msra.mxu0 %v2592
        %3004 = vmatprep.subr.mxu0 0.0
        %3005 = vmatpush1.msra.mxu0 %v2593
        %3006 = vmatprep.subr.mxu0 0.0
        %3007 = vmatpush1.msra.mxu0 %v2594
        %3008 = vmatprep.subr.mxu0 0.0
        %3009 = vmatpush1.msra.mxu0 %v2595
        %3010 = vmatprep.subr.mxu0 0.0
        %3011 = vmatpush1.msra.mxu0 %v2596
        %3012 = vmatprep.subr.mxu0 0.0
        %3013 = vmatpush1.msra.mxu0 %v2597
        %3014 = vmatprep.subr.mxu0 0.0
        %3015 = vmatpush1.msra.mxu0 %v2598
        %3016 = vmatprep.subr.mxu0 0.0
        %3017 = vmatpush1.msra.mxu0 %v2599
        %3018 = vmatprep.subr.mxu0 0.0
        %3019 = vmatpush1.msra.mxu0 %v2600
        %3020 = vmatprep.subr.mxu0 0.0
        %3021 = vmatpush1.msra.mxu0 %v2601
        %3022 = vmatprep.subr.mxu0 0.0
        %3023 = vmatpush1.msra.mxu0 %v2602
        %3024 = vmatprep.subr.mxu0 0.0
        %3025 = vmatpush1.msra.mxu0 %v2603
        %3026 = vmatprep.subr.mxu0 0.0
        %3027 = vmatpush1.msra.mxu0 %v2604
        %3028 = vmatprep.subr.mxu0 0.0
        %3029 = vmatpush1.msra.mxu0 %v2605
        %3030 = vmatprep.subr.mxu0 0.0
        %3031 = vmatpush1.msra.mxu0 %v2606
        %3032 = vmatprep.subr.mxu0 0.0
        %3033 = vmatpush1.msra.mxu0 %v2607
        %3034 = vmatprep.subr.mxu0 0.0
        %3035 = vmatpush1.msra.mxu0 %v2608
        %3036 = vmatprep.subr.mxu0 0.0
        %3037 = vmatpush1.msra.mxu0 %v2609
        %3038 = vmatprep.subr.mxu0 0.0
        %3039 = vmatpush1.msra.mxu0 %v2610
        %3040 = vmatprep.subr.mxu0 0.0
        %3041 = vmatpush1.msra.mxu0 %v2611
        %3042 = vmatprep.subr.mxu0 0.0
        %3043 = vmatpush1.msra.mxu0 %v2612
        %3044 = vmatprep.subr.mxu0 0.0
        %3045 = vmatpush1.msra.mxu0 %v2613
        %3046 = vmatprep.subr.mxu0 0.0
        %3047 = vmatpush1.msra.mxu0 %v2614
        %3048 = vmatprep.subr.mxu0 0.0
        %3049 = vmatpush1.msra.mxu0 %v2615
        %3050 = vmatprep.subr.mxu0 0.0
        %3051 = vmatpush1.msra.mxu0 %v2616
        %3052 = vmatprep.subr.mxu0 0.0
        %3053 = vmatpush1.msra.mxu0 %v2617
        %3054 = vmatprep.subr.mxu0 0.0
        %3055 = vmatpush1.msra.mxu0 %v2618
        %3056 = vmatprep.subr.mxu0 0.0
        %3057 = vmatpush1.msra.mxu0 %v2619
        %3058 = vmatprep.subr.mxu0 0.0
        %3059 = vmatpush1.msra.mxu0 %v2620
        %3060 = vmatprep.subr.mxu0 0.0
        %3061 = vmatpush1.msra.mxu0 %v2621
        %3062 = vmatprep.mubr.f32.mxu0 %v2247
        %3063 = vmatmul.mubr.f32.gmra.mrb[0].mxu0 %v2245
        %v3064 = vpop.f32.mrb[0].mxu0
        %v3065 = vadd.f32 %v2995, %v3064
        %v3066 = vpop.f32.mrb[0].mxu0
        %3067 = vdwg.mxu0
        %3068 = vmatprep.subr.mxu0 0.0
        %3069 = vmatpush1.msra.mxu0 %v2622
        %3070 = vmatprep.subr.mxu0 0.0
        %3071 = vmatpush1.msra.mxu0 %v2623
        %3072 = vmatprep.subr.mxu0 0.0
        %3073 = vmatpush1.msra.mxu0 %v2624
        %3074 = vmatprep.subr.mxu0 0.0
        %3075 = vmatpush1.msra.mxu0 %v2625
        %3076 = vmatprep.subr.mxu0 0.0
        %3077 = vmatpush1.msra.mxu0 %v2626
        %3078 = vmatprep.subr.mxu0 0.0
        %3079 = vmatpush1.msra.mxu0 %v2627
        %3080 = vmatprep.subr.mxu0 0.0
        %3081 = vmatpush1.msra.mxu0 %v2628
        %3082 = vmatprep.subr.mxu0 0.0
        %3083 = vmatpush1.msra.mxu0 %v2629
        %3084 = vmatprep.subr.mxu0 0.0
        %3085 = vmatpush1.msra.mxu0 %v2630
        %3086 = vmatprep.subr.mxu0 0.0
        %3087 = vmatpush1.msra.mxu0 %v2631
        %3088 = vmatprep.subr.mxu0 0.0
        %3089 = vmatpush1.msra.mxu0 %v2632
        %3090 = vmatprep.subr.mxu0 0.0
        %3091 = vmatpush1.msra.mxu0 %v2633
        %3092 = vmatprep.subr.mxu0 0.0
        %3093 = vmatpush1.msra.mxu0 %v2634
        %3094 = vmatprep.subr.mxu0 0.0
        %3095 = vmatpush1.msra.mxu0 %v2635
        %3096 = vmatprep.subr.mxu0 0.0
        %3097 = vmatpush1.msra.mxu0 %v2636
        %3098 = vmatprep.subr.mxu0 0.0
        %3099 = vmatpush1.msra.mxu0 %v2637
        %3100 = vmatprep.subr.mxu0 0.0
        %3101 = vmatpush1.msra.mxu0 %v2638
        %3102 = vmatprep.subr.mxu0 0.0
        %3103 = vmatpush1.msra.mxu0 %v2639
        %3104 = vmatprep.subr.mxu0 0.0
        %3105 = vmatpush1.msra.mxu0 %v2640
        %3106 = vmatprep.subr.mxu0 0.0
        %3107 = vmatpush1.msra.mxu0 %v2641
        %3108 = vmatprep.subr.mxu0 0.0
        %3109 = vmatpush1.msra.mxu0 %v2642
        %3110 = vmatprep.subr.mxu0 0.0
        %3111 = vmatpush1.msra.mxu0 %v2643
        %3112 = vmatprep.subr.mxu0 0.0
        %3113 = vmatpush1.msra.mxu0 %v2644
        %3114 = vmatprep.subr.mxu0 0.0
        %3115 = vmatpush1.msra.mxu0 %v2645
        %3116 = vmatprep.subr.mxu0 0.0
        %3117 = vmatpush1.msra.mxu0 %v2646
        %3118 = vmatprep.subr.mxu0 0.0
        %3119 = vmatpush1.msra.mxu0 %v2647
        %3120 = vmatprep.subr.mxu0 0.0
        %3121 = vmatpush1.msra.mxu0 %v2648
        %3122 = vmatprep.subr.mxu0 0.0
        %3123 = vmatpush1.msra.mxu0 %v2649
        %3124 = vmatprep.subr.mxu0 0.0
        %3125 = vmatpush1.msra.mxu0 %v2650
        %3126 = vmatprep.subr.mxu0 0.0
        %3127 = vmatpush1.msra.mxu0 %v2651
        %3128 = vmatprep.subr.mxu0 0.0
        %3129 = vmatpush1.msra.mxu0 %v2652
        %3130 = vmatprep.subr.mxu0 0.0
        %3131 = vmatpush1.msra.mxu0 %v2653
        %3132 = vmatprep.mubr.f32.mxu0 %v2318
        %3133 = vmatmul.mubr.f32.gmra.mrb[0].mxu0 %v2316
        %v3134 = vpop.f32.mrb[0].mxu0
        %v3135 = vadd.f32 %v3065, %v3134
        %v3136 = vpop.f32.mrb[0].mxu0
        %3137 = vdwg.mxu0
        %3138 = vmatprep.subr.mxu0 0.0
        %3139 = vmatpush1.msra.mxu0 %v2654
        %3140 = vmatprep.subr.mxu0 0.0
        %3141 = vmatpush1.msra.mxu0 %v2655
        %3142 = vmatprep.subr.mxu0 0.0
        %3143 = vmatpush1.msra.mxu0 %v2656
        %3144 = vmatprep.subr.mxu0 0.0
        %3145 = vmatpush1.msra.mxu0 %v2657
        %3146 = vmatprep.subr.mxu0 0.0
        %3147 = vmatpush1.msra.mxu0 %v2658
        %3148 = vmatprep.subr.mxu0 0.0
        %3149 = vmatpush1.msra.mxu0 %v2659
        %3150 = vmatprep.subr.mxu0 0.0
        %3151 = vmatpush1.msra.mxu0 %v2660
        %3152 = vmatprep.subr.mxu0 0.0
        %3153 = vmatpush1.msra.mxu0 %v2661
        %3154 = vmatprep.subr.mxu0 0.0
        %3155 = vmatpush1.msra.mxu0 %v2662
        %3156 = vmatprep.subr.mxu0 0.0
        %3157 = vmatpush1.msra.mxu0 %v2663
        %3158 = vmatprep.subr.mxu0 0.0
        %3159 = vmatpush1.msra.mxu0 %v2664
        %3160 = vmatprep.subr.mxu0 0.0
        %3161 = vmatpush1.msra.mxu0 %v2665
        %3162 = vmatprep.subr.mxu0 0.0
        %3163 = vmatpush1.msra.mxu0 %v2666
        %3164 = vmatprep.subr.mxu0 0.0
        %3165 = vmatpush1.msra.mxu0 %v2667
        %3166 = vmatprep.subr.mxu0 0.0
        %3167 = vmatpush1.msra.mxu0 %v2668
        %3168 = vmatprep.subr.mxu0 0.0
        %3169 = vmatpush1.msra.mxu0 %v2669
        %3170 = vmatprep.subr.mxu0 0.0
        %3171 = vmatpush1.msra.mxu0 %v2670
        %3172 = vmatprep.subr.mxu0 0.0
        %3173 = vmatpush1.msra.mxu0 %v2671
        %3174 = vmatprep.subr.mxu0 0.0
        %3175 = vmatpush1.msra.mxu0 %v2672
        %3176 = vmatprep.subr.mxu0 0.0
        %3177 = vmatpush1.msra.mxu0 %v2673
        %3178 = vmatprep.subr.mxu0 0.0
        %3179 = vmatpush1.msra.mxu0 %v2674
        %3180 = vmatprep.subr.mxu0 0.0
        %3181 = vmatpush1.msra.mxu0 %v2675
        %3182 = vmatprep.subr.mxu0 0.0
        %3183 = vmatpush1.msra.mxu0 %v2676
        %3184 = vmatprep.subr.mxu0 0.0
        %3185 = vmatpush1.msra.mxu0 %v2677
        %3186 = vmatprep.subr.mxu0 0.0
        %3187 = vmatpush1.msra.mxu0 %v2678
        %3188 = vmatprep.subr.mxu0 0.0
        %3189 = vmatpush1.msra.mxu0 %v2679
        %3190 = vmatprep.subr.mxu0 0.0
        %3191 = vmatpush1.msra.mxu0 %v2680
        %3192 = vmatprep.subr.mxu0 0.0
        %3193 = vmatpush1.msra.mxu0 %v2681
        %3194 = vmatprep.subr.mxu0 0.0
        %3195 = vmatpush1.msra.mxu0 %v2682
        %3196 = vmatprep.subr.mxu0 0.0
        %3197 = vmatpush1.msra.mxu0 %v2683
        %3198 = vmatprep.subr.mxu0 0.0
        %3199 = vmatpush1.msra.mxu0 %v2684
        %3200 = vmatprep.subr.mxu0 0.0
        %3201 = vmatpush1.msra.mxu0 %v2685
        %3202 = vmatprep.mubr.f32.mxu0 %v2389
        %3203 = vmatmul.mubr.f32.gmra.mrb[0].mxu0 %v2387
        %v3204 = vpop.f32.mrb[0].mxu0
        %v3205 = vadd.f32 %v3135, %v3204
        %v3206 = vpop.f32.mrb[0].mxu0
        %3207 = vdwg.mxu0
        %3208 = vmatprep.subr.mxu0 0.0
        %3209 = vmatpush1.msra.mxu0 %v2686
        %3210 = vmatprep.subr.mxu0 0.0
        %3211 = vmatpush1.msra.mxu0 %v2687
        %3212 = vmatprep.subr.mxu0 0.0
        %3213 = vmatpush1.msra.mxu0 %v2688
        %3214 = vmatprep.subr.mxu0 0.0
        %3215 = vmatpush1.msra.mxu0 %v2689
        %3216 = vmatprep.subr.mxu0 0.0
        %3217 = vmatpush1.msra.mxu0 %v2690
        %3218 = vmatprep.subr.mxu0 0.0
        %3219 = vmatpush1.msra.mxu0 %v2691
        %3220 = vmatprep.subr.mxu0 0.0
        %3221 = vmatpush1.msra.mxu0 %v2692
        %3222 = vmatprep.subr.mxu0 0.0
        %3223 = vmatpush1.msra.mxu0 %v2693
        %3224 = vmatprep.subr.mxu0 0.0
        %3225 = vmatpush1.msra.mxu0 %v2694
        %3226 = vmatprep.subr.mxu0 0.0
        %3227 = vmatpush1.msra.mxu0 %v2695
        %3228 = vmatprep.subr.mxu0 0.0
        %3229 = vmatpush1.msra.mxu0 %v2696
        %3230 = vmatprep.subr.mxu0 0.0
        %3231 = vmatpush1.msra.mxu0 %v2697
        %3232 = vmatprep.subr.mxu0 0.0
        %3233 = vmatpush1.msra.mxu0 %v2698
        %3234 = vmatprep.subr.mxu0 0.0
        %3235 = vmatpush1.msra.mxu0 %v2699
        %3236 = vmatprep.subr.mxu0 0.0
        %3237 = vmatpush1.msra.mxu0 %v2700
        %3238 = vmatprep.subr.mxu0 0.0
        %3239 = vmatpush1.msra.mxu0 %v2701
        %3240 = vmatprep.subr.mxu0 0.0
        %3241 = vmatpush1.msra.mxu0 %v2702
        %3242 = vmatprep.subr.mxu0 0.0
        %3243 = vmatpush1.msra.mxu0 %v2703
        %3244 = vmatprep.subr.mxu0 0.0
        %3245 = vmatpush1.msra.mxu0 %v2704
        %3246 = vmatprep.subr.mxu0 0.0
        %3247 = vmatpush1.msra.mxu0 %v2705
        %3248 = vmatprep.subr.mxu0 0.0
        %3249 = vmatpush1.msra.mxu0 %v2706
        %3250 = vmatprep.subr.mxu0 0.0
        %3251 = vmatpush1.msra.mxu0 %v2707
        %3252 = vmatprep.subr.mxu0 0.0
        %3253 = vmatpush1.msra.mxu0 %v2708
        %3254 = vmatprep.subr.mxu0 0.0
        %3255 = vmatpush1.msra.mxu0 %v2709
        %3256 = vmatprep.subr.mxu0 0.0
        %3257 = vmatpush1.msra.mxu0 %v2710
        %3258 = vmatprep.subr.mxu0 0.0
        %3259 = vmatpush1.msra.mxu0 %v2711
        %3260 = vmatprep.subr.mxu0 0.0
        %3261 = vmatpush1.msra.mxu0 %v2712
        %3262 = vmatprep.subr.mxu0 0.0
        %3263 = vmatpush1.msra.mxu0 %v2713
        %3264 = vmatprep.subr.mxu0 0.0
        %3265 = vmatpush1.msra.mxu0 %v2714
        %3266 = vmatprep.subr.mxu0 0.0
        %3267 = vmatpush1.msra.mxu0 %v2715
        %3268 = vmatprep.subr.mxu0 0.0
        %3269 = vmatpush1.msra.mxu0 %v2716
        %3270 = vmatprep.subr.mxu0 0.0
        %3271 = vmatpush1.msra.mxu0 %v2717
        %3272 = vmatprep.mubr.f32.mxu0 %v2460
        %3273 = vmatmul.mubr.f32.gmra.mrb[0].mxu0 %v2458
        %v3274 = vpop.f32.mrb[0].mxu0
        %v3275 = vadd.f32 %v3205, %v3274
        %v3276 = vpop.f32.mrb[0].mxu0
        %3277 = vdwg.mxu0
        %3278 = vst [vmem:[%s286] sm:$0x7] %v3275
        %s3279 = sand.u32 %s146, 1
        %s3280 = scalar_lea.sflag [#allocation4], %s3279
        %s3281 = sand.u32 %s146, 1
        %s3282 = smul.addr %s3281, 4
        %s3283 = scalar_lea.vmem [#allocation7], %s3282
        %s3284 = sand.u32 %s172, 1
        %s3285 = scalar_lea.sflag [#allocation9], %s3284
        %s3286 = sand.u32 %s172, 1
        %s3287 = smul.addr %s3286, 256
        %s3288 = scalar_lea.vmem [#allocation8], %s3287
        // Predicated region
        $region49: #{tpu_custom_call.1} parent=39 // pred_check
          %p3289 = pneg %p156
        $region50: #{tpu_custom_call.1} parent=39 // pred_check_branch
          %3291 = sbr.rel (%p3289) target = $region52
        $region51: #{tpu_custom_call.1} parent=39 // pred_region
          %s3293 = ssub.s32 64, 64
          %3294 = vsyncadd %s3280, %s3293
          %s3295 = smul.addr %s28, 64
          %s3296 = scalar_lea.hbm %s5, %s3295
          %s3298 = sshll.u32 %s3283, 4
          %s3299 = int_to_ptr.vmem [resolvable:$true] %s3298
          %3301 = dma.vmem_to_hbm [thread:$0]  %s3299, 64, %s3296, %s3280
        $region52: #{tpu_custom_call.1} parent=39 // pred_fallthru
          _
        // Predicated region
        $region53: #{tpu_custom_call.1} parent=39 // pred_check
          %p3302 = pneg %p182
        $region54: #{tpu_custom_call.1} parent=39 // pred_check_branch
          %3304 = sbr.rel (%p3302) target = $region56
        $region55: #{tpu_custom_call.1} parent=39 // pred_region
          %s3305 = smul.u32 16, %s28
          %s3307 = ssub.s32 4096, 4096
          %3308 = vsyncadd %s3285, %s3307
          %s3309 = smul.addr %s3305, 128
          %s3310 = scalar_lea.hbm %s6, %s3309
          %s3311 = sshll.u32 %s3288, 4
          %s3312 = int_to_ptr.vmem [resolvable:$true] %s3311
          %3317 = dma.vmem_to_hbm [thread:$0]  %s3312, 4096, %s3310, %s3285, 2048, 4096, 128
        $region56: #{tpu_custom_call.1} parent=39 // pred_fallthru
          _
      $region40: #{tpu_custom_call.1} parent=5 // pred_fallthru
        _
      %p3318 = scmp.le.s32.totalorder 2, %s23
      // Predicated region
      $region57: #{tpu_custom_call.1} parent=5 // pred_check
        %p3319 = pneg %p3318
      $region58: #{tpu_custom_call.1} parent=5 // pred_check_branch
        %3321 = sbr.rel (%p3319) target = $region60
      $region59: #{tpu_custom_call.1} parent=5 // pred_region
        %s3322 = ssub.s32 %s23, 2
        // Predicated region
        $region61: #{tpu_custom_call.1} parent=59 // pred_check
          %p3323 = pneg %p162
        $region62: #{tpu_custom_call.1} parent=59 // pred_check_branch
          %3325 = sbr.rel (%p3323) target = $region64
        $region63: #{tpu_custom_call.1} parent=59 // pred_region
          %s3326 = sand.u32 %s147, 1
          %s3327 = scalar_lea.sflag [#allocation4], %s3326
          %s3328 = sand.u32 %s147, 1
          %s3329 = smul.addr %s3328, 4
          %s3330 = scalar_lea.vmem [#allocation7], %s3329
          %3331 = dma.done %s3327, 64
        $region64: #{tpu_custom_call.1} parent=59 // pred_fallthru
          _
        // Predicated region
        $region65: #{tpu_custom_call.1} parent=59 // pred_check
          %p3332 = pneg %p188
        $region66: #{tpu_custom_call.1} parent=59 // pred_check_branch
          %3334 = sbr.rel (%p3332) target = $region68
        $region67: #{tpu_custom_call.1} parent=59 // pred_region
          %s3335 = sand.u32 %s173, 1
          %s3336 = scalar_lea.sflag [#allocation9], %s3335
          %s3337 = sand.u32 %s173, 1
          %s3338 = smul.addr %s3337, 256
          %s3339 = scalar_lea.vmem [#allocation8], %s3338
          %3340 = dma.done %s3336, 4096
        $region68: #{tpu_custom_call.1} parent=59 // pred_fallthru
          _
      $region60: #{tpu_custom_call.1} parent=5 // pred_fallthru
        _
    $region6: #{tpu_custom_call.1} parent=1 // loop_footer
      %s27 = sadd.s32 1, %s23
    $region7: #{tpu_custom_call.1} parent=1 // loop_footer_branch
      %22 = sbr.rel target = $region3
    $region8: #{tpu_custom_call.1} parent=1 // loop_exit
      _
    %3341 = vsyncpa [#allocation3], 1
    %s3342 = scalar_lea.sflag [#allocation3], 1
    %3343 = vsyncpa %s3342, 1
    %3344 = vsyncpa [#allocation6], 1
    %3345 = vsyncpa [#allocation4], 1
    %s3346 = scalar_lea.sflag [#allocation4], 1
    %3347 = vsyncpa %s3346, 1
    %3348 = vsyncpa [#allocation9], 1
    %s3349 = scalar_lea.sflag [#allocation9], 1
    %3350 = vsyncpa %s3349, 1

</llo_original>
